<compile_context>
chip_gen: v5e
topology: v5e:2x2
jax: 0.10.0
libtpu: 0.0.40
codegen_flags: <defaults>
</compile_context>

<pallas_src>
import functools
import math

import numpy as np
import jax
import jax.numpy as jnp
from jax import lax
from jax.experimental import pallas as pl
from jax.experimental.pallas import tpu as pltpu


TBLK = 16                                   # timesteps per GRU grid step
GRU_VMEM_LIMIT = 32 * 1024 * 1024
ATTN_VMEM_LIMIT = 48 * 1024 * 1024          # safe on v7x (64 MiB physical)


def _gru_batch_blocks(N):
    # Batch-parallel leading grid axis only pays off with >1 TensorCore
    # (v7x megacore); on single-core v5e/v6e it just adds serial grid steps
    # and shrinks the tiny recurrent matmul.
    try:
        kind = jax.devices()[0].device_kind.lower()
    except Exception:
        kind = ""
    if ("v7" in kind or "7x" in kind) and N % 32 == 0:
        return 2
    return 1


def _attn_batch_block(N, S, H, budget_bytes=ATTN_VMEM_LIMIT // 2):
    # Pick the attention batch block from a VMEM working-set estimate
    # (double-buffered bf16 inputs + weights + qkv + bias + per-head scores),
    # preferring >= 2 grid steps so input/output DMA double-buffers.
    D = 2 * H

    def block_bytes(nb):
        inp = 2 * (nb * S * H * 2) * 2          # hf/hb bf16, double-buffered
        w = 2 * (H * 3 * D * 2) * 2             # QKV weights (bf16)
        qkv = nb * S * 3 * D * 4
        bias = nb * S * S * 4
        scores = 2 * nb * S * S * 4             # scores + probs live at once
        out = nb * D * 4 * 2
        return inp + w + qkv + bias + scores + out

    cands = [c for c in range(8, N + 1, 8) if N % c == 0]
    if not cands:                               # tiny batch: one block of all rows
        return N
    pool = [c for c in cands if c <= N // 2] or cands
    for c in sorted(pool, reverse=True):
        if block_bytes(c) <= budget_bytes:
            return c
    return min(pool)


# ---------------------------------------------------------------------------
# Fused bidirectional GRU recurrence.
# grid = (batch_blocks, time_blocks); h_fwd / h_bwd live in f32 VMEM scratch
# persisting across the serial time axis.  Packed-sequence semantics are
# reproduced with an in-kernel per-(time, batch) validity mask built from the
# sequence lengths: padded steps neither update the state nor write nonzero
# output.
# ---------------------------------------------------------------------------
def bigru_kernel(gif_ref, gib_ref, lens_ref, whhf_ref, whhb_ref, bhhf_ref,
                 bhhb_ref, outf_ref, outb_ref, hf_ref, hb_ref, of_stage,
                 ob_stage, *, tblk):
    H = outf_ref.shape[-1]
    t_id = pl.program_id(1)
    nT = pl.num_programs(1)

    @pl.when(t_id == 0)
    def _():
        hf_ref[...] = jnp.zeros_like(hf_ref)
        hb_ref[...] = jnp.zeros_like(hb_ref)

    # hoisted loads: once per grid step, reused by the whole tblk unroll
    whh_f = whhf_ref[...]
    whh_b = whhb_ref[...]
    bhh_f = bhhf_ref[...]
    bhh_b = bhhb_ref[...]
    lens = lens_ref[...]                        # (Nb, 1) int32

    t0_f = t_id * tblk                          # first global timestep (fwd chunk)
    t0_b = (nT - 1 - t_id) * tblk               # first global timestep (bwd chunk)

    def gates(a, g, h_old):                     # PyTorch GRU gate order: r, z, n
        r = jax.nn.sigmoid(a[:, :H] + g[:, :H])
        z = jax.nn.sigmoid(a[:, H:2 * H] + g[:, H:2 * H])
        n = jnp.tanh(a[:, 2 * H:] + r * g[:, 2 * H:])
        return (1.0 - z) * n + z * h_old

    h_f = hf_ref[...]                           # f32 carries
    h_b = hb_ref[...]
    for i in range(tblk):                       # static unroll over the chunk
        j = tblk - 1 - i                        # reversed in-block index (bwd)
        gh_f = jnp.dot(h_f, whh_f, preferred_element_type=jnp.float32) + bhh_f
        gh_b = jnp.dot(h_b, whh_b, preferred_element_type=jnp.float32) + bhh_b
        a_f = gif_ref[i].astype(jnp.float32)    # bf16 -> f32 gating math
        a_b = gib_ref[j].astype(jnp.float32)
        hf_new = gates(a_f, gh_f, h_f)
        hb_new = gates(a_b, gh_b, h_b)
        # packed-sequence validity masks built in-kernel (two VPU compares)
        mf = (lens > (t0_f + i)).astype(jnp.float32)     # (Nb, 1)
        mb = (lens > (t0_b + j)).astype(jnp.float32)
        of = mf * hf_new                        # zeros at padded timesteps
        ob = mb * hb_new
        of_stage[:, i, :] = of                  # f32 staging; dense bf16 store below
        ob_stage[:, j, :] = ob
        h_f = of + (1.0 - mf) * h_f             # hold state across padding
        h_b = ob + (1.0 - mb) * h_b
    hf_ref[...] = h_f
    hb_ref[...] = h_b
    outf_ref[...] = of_stage[...].astype(outf_ref.dtype)   # one dense block store
    outb_ref[...] = ob_stage[...].astype(outb_ref.dtype)


def run_bigru(gi_f, gi_b, lens_col, whh_f_t, whh_b_t, bhh_f, bhh_b,
              *, hidden_size, tblk=TBLK, out_dtype=jnp.bfloat16):
    S_pad, N, G3 = gi_f.shape
    H = hidden_size
    nT = S_pad // tblk
    nB = _gru_batch_blocks(N)
    Nb = N // nB

    return pl.pallas_call(
        functools.partial(bigru_kernel, tblk=tblk),
        out_shape=(jax.ShapeDtypeStruct((N, S_pad, H), out_dtype),
                   jax.ShapeDtypeStruct((N, S_pad, H), out_dtype)),
        grid_spec=pltpu.PrefetchScalarGridSpec(
            num_scalar_prefetch=0,
            grid=(nB, nT),
            in_specs=[
                pl.BlockSpec((tblk, Nb, G3), lambda b, t: (t, b, 0)),           # gi fwd (bf16)
                pl.BlockSpec((tblk, Nb, G3), lambda b, t: (nT - 1 - t, b, 0)),  # gi bwd (bf16)
                pl.BlockSpec((Nb, 1), lambda b, t: (b, 0)),                     # seq lengths
                pl.BlockSpec((H, G3), lambda b, t: (0, 0)),                     # W_hh fwd^T
                pl.BlockSpec((H, G3), lambda b, t: (0, 0)),                     # W_hh bwd^T
                pl.BlockSpec((1, G3), lambda b, t: (0, 0)),                     # b_hh fwd
                pl.BlockSpec((1, G3), lambda b, t: (0, 0)),                     # b_hh bwd
            ],
            out_specs=(pl.BlockSpec((Nb, tblk, H), lambda b, t: (b, t, 0)),
                       pl.BlockSpec((Nb, tblk, H), lambda b, t: (b, nT - 1 - t, 0))),
            scratch_shapes=[pltpu.VMEM((Nb, H), jnp.float32),        # h fwd carry
                            pltpu.VMEM((Nb, H), jnp.float32),        # h bwd carry
                            pltpu.VMEM((Nb, tblk, H), jnp.float32),  # fwd out staging
                            pltpu.VMEM((Nb, tblk, H), jnp.float32)], # bwd out staging
        ),
        compiler_params=pltpu.CompilerParams(
            dimension_semantics=("parallel", "arbitrary"),
            vmem_limit_bytes=GRU_VMEM_LIMIT),
    )(gi_f, gi_b, lens_col, whh_f_t, whh_b_t, bhh_f, bhh_b)


# ---------------------------------------------------------------------------
# Self-attention + max-pool over a block of Nb batch elements per grid step.
# Fused QKV projection from hf/hb (no hs concat), key bias materialized once,
# per-head scaled-dot-product attention with the (1 - mask) * -10000 key bias,
# softmax via EUP reciprocal, and per-head max-pool written directly into the
# 2-D (N, D) output (no context concat).
# ---------------------------------------------------------------------------
def attn_pool_kernel(hf_ref, hb_ref, mask_ref, wf_ref, wb_ref, bqkv_ref,
                     out_ref, *, num_heads, smax):
    Nb, S, H = hf_ref.shape
    D = 2 * H
    dh = D // num_heads

    # fused QKV projection: two MXU pushes (bf16 x bf16 -> f32), no hs concat.
    hf2 = hf_ref[...].reshape(Nb * S, H)
    hb2 = hb_ref[...].reshape(Nb * S, H)
    qkv = (jnp.dot(hf2, wf_ref[...], preferred_element_type=jnp.float32)
           + jnp.dot(hb2, wb_ref[...], preferred_element_type=jnp.float32)
           + bqkv_ref[...])
    qkv = qkv.reshape(Nb, S, 3 * D)
    q = qkv[:, :, :D]                           # 1/sqrt(dh) folded into Q weights
    k = qkv[:, :, D:2 * D]
    v = qkv[:, :, 2 * D:]

    # key bias materialized ONCE (JAX does not CSE broadcast_in_dim per head)
    bias = jnp.broadcast_to((1.0 - mask_ref[...]) * (-10000.0), (Nb, S, S))
    # torch.max(context, dim=1) runs over the smax original rows only
    row_valid = lax.broadcasted_iota(jnp.int32, (1, S, 1), 1) < smax
    neg = jnp.finfo(jnp.float32).min

    # TODO(synk): a single head-batched einsum ('bqhd,bkhd->bhqk') needs a
    # multi-batch-dim dot_general Mosaic does not lower; heads stay in a static
    # loop, but the per-head max-pool writes straight into out_ref so the 8-way
    # context concat is gone.
    for h in range(num_heads):                  # static unroll; batched over Nb
        sl = slice(h * dh, (h + 1) * dh)
        s = jnp.einsum('bqd,bkd->bqk', q[:, :, sl], k[:, :, sl],
                       preferred_element_type=jnp.float32)
        s = s + bias
        s = s - jnp.max(s, axis=-1, keepdims=True)
        p = jnp.exp(s)
        p = p * pl.reciprocal(jnp.sum(p, axis=-1, keepdims=True), approx=True)
        # TODO(synk): nn.Dropout(0.2) on attention probs is training-only; identity here.
        ctx_h = jnp.einsum('bqk,bkd->bqd', p, v[:, :, sl],
                           preferred_element_type=jnp.float32)
        ctx_h = jnp.where(row_valid, ctx_h, neg)
        out_ref[:, sl] = jnp.max(ctx_h, axis=1)            # (Nb, dh) pooled


def self_attention_maxpool(out_f, out_b, q_mask3, wqkv_f, wqkv_b, bqkv,
                           *, num_heads, smax):
    N, S_pad, H = out_f.shape
    D = 2 * H
    Nb = _attn_batch_block(N, S_pad, H)
    # TODO(synk): for long sequences, tile over keys with an online-softmax
    # accumulator instead of materializing (Nb, S, S) scores (v7x 64 MiB VMEM).
    return pl.pallas_call(
        functools.partial(attn_pool_kernel, num_heads=num_heads, smax=smax),
        out_shape=jax.ShapeDtypeStruct((N, D), jnp.float32),
        grid_spec=pltpu.PrefetchScalarGridSpec(
            num_scalar_prefetch=0,
            grid=(N // Nb,),
            in_specs=[
                pl.BlockSpec((Nb, S_pad, H), lambda n: (n, 0, 0)),   # GRU fwd (bf16)
                pl.BlockSpec((Nb, S_pad, H), lambda n: (n, 0, 0)),   # GRU bwd (bf16)
                pl.BlockSpec((Nb, 1, S_pad), lambda n: (n, 0, 0)),   # key mask
                pl.BlockSpec((H, 3 * D), lambda n: (0, 0)),          # Wqkv rows for hf
                pl.BlockSpec((H, 3 * D), lambda n: (0, 0)),          # Wqkv rows for hb
                pl.BlockSpec((1, 3 * D), lambda n: (0, 0)),          # bqkv
            ],
            out_specs=pl.BlockSpec((Nb, D), lambda n: (n, 0)),
        ),
        compiler_params=pltpu.CompilerParams(
            dimension_semantics=("parallel",),
            vmem_limit_bytes=ATTN_VMEM_LIMIT),
    )(out_f, out_b, q_mask3, wqkv_f, wqkv_b, bqkv)


# ---------------------------------------------------------------------------
# Full BiGRUCNN forward (glue in plain JAX / numpy, hot paths in Pallas).
# ---------------------------------------------------------------------------
def forward(params, q_ids, q_len, a_ids, a_len, *, num_heads=8, tblk=TBLK):
    bs = q_ids.shape[0]
    sent = np.concatenate([q_ids, a_ids], axis=0)           # (N, S_full)
    sent_len = np.concatenate([q_len, a_len], axis=0)       # (N,)
    N = sent.shape[0]

    # fit_seq_max_len: truncate to the batch max; pad up to a multiple of TBLK
    smax = int(sent_len.max())
    s_pad = ((smax + tblk - 1) // tblk) * tblk
    ids = np.zeros((N, s_pad), dtype=np.int32)
    ids[:, :smax] = sent[:, :smax]
    sent_j = jnp.asarray(ids)

    H = params["w_hh_f"].shape[1]
    E = params["embed"].shape[1]
    D = 2 * H

    # get_mask: 1.0 where token id != 0 (attention key mask)
    q_mask3 = (sent_j != 0).astype(jnp.float32).reshape(N, 1, s_pad)

    # sequence lengths: packed-seq validity masks are rebuilt in-kernel from these
    lens_col = jnp.asarray(sent_len.astype(np.int32)).reshape(N, 1)

    # hoisted input projections: embeddings gathered time-major, one large
    # (S*N, E) x (E, 3H) matmul per direction, stored bf16 (dominant GRU stream)
    emb_tm = jnp.take(params["embed"], sent_j.T, axis=0)              # (s_pad, N, E)
    x2 = emb_tm.reshape(s_pad * N, E)
    gi_f = (x2 @ params["w_ih_f"].T + params["b_ih_f"]).reshape(
        s_pad, N, 3 * H).astype(jnp.bfloat16)
    gi_b = (x2 @ params["w_ih_b"].T + params["b_ih_b"]).reshape(
        s_pad, N, 3 * H).astype(jnp.bfloat16)

    whh_f_t = params["w_hh_f"].T                                      # (H, 3H) f32
    whh_b_t = params["w_hh_b"].T
    bhh_f = params["b_hh_f"].reshape(1, 3 * H)
    bhh_b = params["b_hh_b"].reshape(1, 3 * H)

    out_f, out_b = run_bigru(gi_f, gi_b, lens_col, whh_f_t, whh_b_t, bhh_f, bhh_b,
                             hidden_size=H, tblk=tblk)

    # fused QKV weights, 1/sqrt(head_dim) folded into the query columns;
    # split by input half so the kernel needs no hs concat.
    scale = 1.0 / math.sqrt(D // num_heads)
    wqkv = jnp.concatenate([params["wq_t"] * scale, params["wk_t"], params["wv_t"]],
                           axis=1)                                    # (D, 3D)
    bqkv = jnp.concatenate([params["bq"] * scale, params["bk"], params["bv"]],
                           axis=1)                                    # (1, 3D)
    wqkv_f = wqkv[:H].astype(jnp.bfloat16)
    wqkv_b = wqkv[H:].astype(jnp.bfloat16)

    pooled = self_attention_maxpool(out_f, out_b, q_mask3, wqkv_f, wqkv_b, bqkv,
                                    num_heads=num_heads, smax=smax)   # (N, D)

    # cosine similarity (nn.CosineSimilarity(dim=1), eps=1e-8)
    a = pooled[:bs]
    b = pooled[bs:]
    dot = jnp.sum(a * b, axis=1)
    na = jnp.maximum(jnp.sqrt(jnp.sum(a * a, axis=1)), 1e-8)
    nb = jnp.maximum(jnp.sqrt(jnp.sum(b * b, axis=1)), 1e-8)
    return dot / (na * nb)


def init_params(key, vocab_size, embedding_dim, hidden_size):
    D = 2 * hidden_size
    ks = jax.random.split(key, 15)

    def norm(k, shape, scale=0.1):
        return (scale * jax.random.normal(k, shape)).astype(jnp.float32)

    return {
        "embed": norm(ks[0], (vocab_size, embedding_dim)),
        # GRU, forward direction (PyTorch layout: weight_ih (3H, E), weight_hh (3H, H))
        "w_ih_f": norm(ks[1], (3 * hidden_size, embedding_dim)),
        "w_hh_f": norm(ks[2], (3 * hidden_size, hidden_size)),
        "b_ih_f": norm(ks[3], (3 * hidden_size,)),
        "b_hh_f": norm(ks[4], (3 * hidden_size,)),
        # GRU, backward direction
        "w_ih_b": norm(ks[5], (3 * hidden_size, embedding_dim)),
        "w_hh_b": norm(ks[6], (3 * hidden_size, hidden_size)),
        "b_ih_b": norm(ks[7], (3 * hidden_size,)),
        "b_hh_b": norm(ks[8], (3 * hidden_size,)),
        # Self-attention linear layers (stored pre-transposed: (in, out))
        "wq_t": norm(ks[9], (D, D)),
        "bq": norm(ks[10], (1, D)),
        "wk_t": norm(ks[11], (D, D)),
        "bk": norm(ks[12], (1, D)),
        "wv_t": norm(ks[13], (D, D)),
        "bv": norm(ks[14], (1, D)),
    }


if __name__ == "__main__":
    vocab_size, embedding_dim, hidden_size = 40, 16, 32   # ST hidden = 64, 8 heads
    B, S = 2, 20

    params = init_params(jax.random.PRNGKey(0), vocab_size, embedding_dim, hidden_size)

    kq, ka = jax.random.split(jax.random.PRNGKey(1), 2)
    q_len = np.array([12, 16], dtype=np.int32)
    a_len = np.array([16, 10], dtype=np.int32)
    q_ids = np.array(jax.random.randint(kq, (B, S), 1, vocab_size), dtype=np.int32)
    a_ids = np.array(jax.random.randint(ka, (B, S), 1, vocab_size), dtype=np.int32)
    pos = np.arange(S)
    q_ids = q_ids * (pos[None, :] < q_len[:, None])   # 0 = padding token
    a_ids = a_ids * (pos[None, :] < a_len[:, None])

    sim = forward(params, q_ids, q_len, a_ids, a_len, num_heads=8)
    sim = jax.block_until_ready(sim)
    assert sim.shape == (B,)
    assert np.all(np.isfinite(np.asarray(sim)))
    print("KERNEL_OK")
</pallas_src>

<mosaic_0001>
module attributes {stable_mosaic.version = 11 : i64} {
  func.func @bigru_kernel(%arg0: i32, %arg1: i32, %arg2: memref<16x4x96xbf16, #tpu.memory_space<vmem>>, %arg3: memref<16x4x96xbf16, #tpu.memory_space<vmem>>, %arg4: memref<4x1xi32, #tpu.memory_space<vmem>>, %arg5: memref<32x96xf32, #tpu.memory_space<vmem>>, %arg6: memref<32x96xf32, #tpu.memory_space<vmem>>, %arg7: memref<1x96xf32, #tpu.memory_space<vmem>>, %arg8: memref<1x96xf32, #tpu.memory_space<vmem>>, %arg9: memref<4x16x32xbf16, #tpu.memory_space<vmem>>, %arg10: memref<4x16x32xbf16, #tpu.memory_space<vmem>>, %arg11: memref<4x32xf32, #tpu.memory_space<vmem>>, %arg12: memref<4x32xf32, #tpu.memory_space<vmem>>, %arg13: memref<4x16x32xf32, #tpu.memory_space<vmem>>, %arg14: memref<4x16x32xf32, #tpu.memory_space<vmem>>) attributes {dimension_semantics = [#tpu.dimension_semantics<parallel>, #tpu.dimension_semantics<arbitrary>], iteration_bounds = array<i64: 1, 1>, scalar_prefetch = 0 : i64, scratch_operands = 4 : i64, tpu.core_type = #tpu.core_type<tc>, window_params = [{transform_indices = @transform_0, window_bounds = array<i64: 16, 4, 96>}, {transform_indices = @transform_1, window_bounds = array<i64: 16, 4, 96>}, {transform_indices = @transform_2, window_bounds = array<i64: 4, 1>}, {pipeline_mode = #tpu.pipeline_mode<synchronous>, transform_indices = @transform_3, window_bounds = array<i64: 32, 96>}, {pipeline_mode = #tpu.pipeline_mode<synchronous>, transform_indices = @transform_4, window_bounds = array<i64: 32, 96>}, {pipeline_mode = #tpu.pipeline_mode<synchronous>, transform_indices = @transform_5, window_bounds = array<i64: 1, 96>}, {pipeline_mode = #tpu.pipeline_mode<synchronous>, transform_indices = @transform_6, window_bounds = array<i64: 1, 96>}, {transform_indices = @transform_7, window_bounds = array<i64: 4, 16, 32>}, {transform_indices = @transform_8, window_bounds = array<i64: 4, 16, 32>}]} {
    %c0_i32 = arith.constant 0 : i32
    %0 = arith.cmpi eq, %arg1, %c0_i32 : i32
    %1 = arith.extui %0 : i1 to i32
    %c0_i32_0 = arith.constant 0 : i32
    %2 = arith.cmpi ne, %1, %c0_i32_0 : i32
    scf.if %2 {
      %cst_385 = arith.constant 0.000000e+00 : f32
      %1525 = vector.broadcast %cst_385 : f32 to vector<4x32xf32>
      %c0_386 = arith.constant 0 : index
      %c0_387 = arith.constant 0 : index
      %1526 = vector.load %arg11[%c0_386, %c0_387] : memref<4x32xf32, #tpu.memory_space<vmem>>, vector<4x32xf32>
      tpu.vector_store %arg11[%c0_386, %c0_387], %1525 {strides = array<i32>} : memref<4x32xf32, #tpu.memory_space<vmem>>, vector<4x32xf32>,
      %cst_388 = arith.constant 0.000000e+00 : f32
      %1527 = vector.broadcast %cst_388 : f32 to vector<4x32xf32>
      %c0_389 = arith.constant 0 : index
      %c0_390 = arith.constant 0 : index
      %1528 = vector.load %arg12[%c0_389, %c0_390] : memref<4x32xf32, #tpu.memory_space<vmem>>, vector<4x32xf32>
      tpu.vector_store %arg12[%c0_389, %c0_390], %1527 {strides = array<i32>} : memref<4x32xf32, #tpu.memory_space<vmem>>, vector<4x32xf32>,
    } else {
    }
    %c0 = arith.constant 0 : index
    %c0_1 = arith.constant 0 : index
    %3 = vector.load %arg5[%c0, %c0_1] : memref<32x96xf32, #tpu.memory_space<vmem>>, vector<32x96xf32>
    %c0_2 = arith.constant 0 : index
    %c0_3 = arith.constant 0 : index
    %4 = vector.load %arg6[%c0_2, %c0_3] : memref<32x96xf32, #tpu.memory_space<vmem>>, vector<32x96xf32>
    %c0_4 = arith.constant 0 : index
    %c0_5 = arith.constant 0 : index
    %5 = vector.load %arg7[%c0_4, %c0_5] : memref<1x96xf32, #tpu.memory_space<vmem>>, vector<1x96xf32>
    %c0_6 = arith.constant 0 : index
    %c0_7 = arith.constant 0 : index
    %6 = vector.load %arg8[%c0_6, %c0_7] : memref<1x96xf32, #tpu.memory_space<vmem>>, vector<1x96xf32>
    %c0_8 = arith.constant 0 : index
    %c0_9 = arith.constant 0 : index
    %7 = vector.load %arg4[%c0_8, %c0_9] : memref<4x1xi32, #tpu.memory_space<vmem>>, vector<4x1xi32>
    %c16_i32 = arith.constant 16 : i32
    %8 = arith.muli %arg1, %c16_i32 : i32
    %c0_i32_10 = arith.constant 0 : i32
    %9 = arith.subi %c0_i32_10, %arg1 : i32
    %c16_i32_11 = arith.constant 16 : i32
    %10 = arith.muli %9, %c16_i32_11 : i32
    %c0_12 = arith.constant 0 : index
    %c0_13 = arith.constant 0 : index
    %11 = vector.load %arg11[%c0_12, %c0_13] : memref<4x32xf32, #tpu.memory_space<vmem>>, vector<4x32xf32>
    %c0_14 = arith.constant 0 : index
    %c0_15 = arith.constant 0 : index
    %12 = vector.load %arg12[%c0_14, %c0_15] : memref<4x32xf32, #tpu.memory_space<vmem>>, vector<4x32xf32>
    %cst = arith.constant dense<0.000000e+00> : vector<4x96xf32>
    %13 = tpu.matmul %11, %3, %cst {dimension_numbers = #tpu.dot_dimension_numbers<[1], [0], [0], [1], [0, 0, 1, 1], [], []>} : vector<4x32xf32>, vector<32x96xf32>, vector<4x96xf32> -> vector<4x96xf32>
    %14 = vector.broadcast %5 : vector<1x96xf32> to vector<4x96xf32>
    %15 = arith.addf %13, %14 : vector<4x96xf32>
    %cst_16 = arith.constant dense<0.000000e+00> : vector<4x96xf32>
    %16 = tpu.matmul %12, %4, %cst_16 {dimension_numbers = #tpu.dot_dimension_numbers<[1], [0], [0], [1], [0, 0, 1, 1], [], []>} : vector<4x32xf32>, vector<32x96xf32>, vector<4x96xf32> -> vector<4x96xf32>
    %17 = vector.broadcast %6 : vector<1x96xf32> to vector<4x96xf32>
    %18 = arith.addf %16, %17 : vector<4x96xf32>
    %c0_17 = arith.constant 0 : index
    %c0_18 = arith.constant 0 : index
    %c0_19 = arith.constant 0 : index
    %19 = vector.load %arg2[%c0_17, %c0_18, %c0_19] : memref<16x4x96xbf16, #tpu.memory_space<vmem>>, vector<1x4x96xbf16>
    %20 = vector.shape_cast %19 : vector<1x4x96xbf16> to vector<4x96xbf16>
    %21 = arith.extf %20 : vector<4x96xbf16> to vector<4x96xf32>
    %c15 = arith.constant 15 : index
    %c0_20 = arith.constant 0 : index
    %c0_21 = arith.constant 0 : index
    %22 = vector.load %arg3[%c15, %c0_20, %c0_21] : memref<16x4x96xbf16, #tpu.memory_space<vmem>>, vector<1x4x96xbf16>
    %23 = vector.shape_cast %22 : vector<1x4x96xbf16> to vector<4x96xbf16>
    %24 = arith.extf %23 : vector<4x96xbf16> to vector<4x96xf32>
    %25 = vector.extract_strided_slice %21 {offsets = [0, 0], sizes = [4, 32], strides = [1, 1]} : vector<4x96xf32> to vector<4x32xf32>
    %26 = vector.extract_strided_slice %15 {offsets = [0, 0], sizes = [4, 32], strides = [1, 1]} : vector<4x96xf32> to vector<4x32xf32>
    %27 = arith.addf %25, %26 : vector<4x32xf32>
    %28 = arith.negf %27 : vector<4x32xf32>
    %29 = math.exp %28 : vector<4x32xf32>
    %cst_22 = arith.constant 1.000000e+00 : f32
    %30 = vector.broadcast %cst_22 : f32 to vector<4x32xf32>
    %31 = arith.addf %30, %29 : vector<4x32xf32>
    %32 = arith.divf %30, %31 : vector<4x32xf32>
    %33 = vector.extract_strided_slice %21 {offsets = [0, 32], sizes = [4, 32], strides = [1, 1]} : vector<4x96xf32> to vector<4x32xf32>
    %34 = vector.extract_strided_slice %15 {offsets = [0, 32], sizes = [4, 32], strides = [1, 1]} : vector<4x96xf32> to vector<4x32xf32>
    %35 = arith.addf %33, %34 : vector<4x32xf32>
    %36 = arith.negf %35 : vector<4x32xf32>
    %37 = math.exp %36 : vector<4x32xf32>
    %cst_23 = arith.constant 1.000000e+00 : f32
    %38 = vector.broadcast %cst_23 : f32 to vector<4x32xf32>
    %39 = arith.addf %38, %37 : vector<4x32xf32>
    %40 = arith.divf %38, %39 : vector<4x32xf32>
    %41 = vector.extract_strided_slice %21 {offsets = [0, 64], sizes = [4, 32], strides = [1, 1]} : vector<4x96xf32> to vector<4x32xf32>
    %42 = vector.extract_strided_slice %15 {offsets = [0, 64], sizes = [4, 32], strides = [1, 1]} : vector<4x96xf32> to vector<4x32xf32>
    %43 = arith.mulf %32, %42 : vector<4x32xf32>
    %44 = arith.addf %41, %43 : vector<4x32xf32>
    %45 = math.tanh %44 : vector<4x32xf32>
    %cst_24 = arith.constant 1.000000e+00 : f32
    %46 = vector.broadcast %cst_24 : f32 to vector<4x32xf32>
    %47 = arith.subf %46, %40 : vector<4x32xf32>
    %48 = arith.mulf %47, %45 : vector<4x32xf32>
    %49 = arith.mulf %40, %11 : vector<4x32xf32>
    %50 = arith.addf %48, %49 : vector<4x32xf32>
    %51 = vector.extract_strided_slice %24 {offsets = [0, 0], sizes = [4, 32], strides = [1, 1]} : vector<4x96xf32> to vector<4x32xf32>
    %52 = vector.extract_strided_slice %18 {offsets = [0, 0], sizes = [4, 32], strides = [1, 1]} : vector<4x96xf32> to vector<4x32xf32>
    %53 = arith.addf %51, %52 : vector<4x32xf32>
    %54 = arith.negf %53 : vector<4x32xf32>
    %55 = math.exp %54 : vector<4x32xf32>
    %cst_25 = arith.constant 1.000000e+00 : f32
    %56 = vector.broadcast %cst_25 : f32 to vector<4x32xf32>
    %57 = arith.addf %56, %55 : vector<4x32xf32>
    %58 = arith.divf %56, %57 : vector<4x32xf32>
    %59 = vector.extract_strided_slice %24 {offsets = [0, 32], sizes = [4, 32], strides = [1, 1]} : vector<4x96xf32> to vector<4x32xf32>
    %60 = vector.extract_strided_slice %18 {offsets = [0, 32], sizes = [4, 32], strides = [1, 1]} : vector<4x96xf32> to vector<4x32xf32>
    %61 = arith.addf %59, %60 : vector<4x32xf32>
    %62 = arith.negf %61 : vector<4x32xf32>
    %63 = math.exp %62 : vector<4x32xf32>
    %cst_26 = arith.constant 1.000000e+00 : f32
    %64 = vector.broadcast %cst_26 : f32 to vector<4x32xf32>
    %65 = arith.addf %64, %63 : vector<4x32xf32>
    %66 = arith.divf %64, %65 : vector<4x32xf32>
    %67 = vector.extract_strided_slice %24 {offsets = [0, 64], sizes = [4, 32], strides = [1, 1]} : vector<4x96xf32> to vector<4x32xf32>
    %68 = vector.extract_strided_slice %18 {offsets = [0, 64], sizes = [4, 32], strides = [1, 1]} : vector<4x96xf32> to vector<4x32xf32>
    %69 = arith.mulf %58, %68 : vector<4x32xf32>
    %70 = arith.addf %67, %69 : vector<4x32xf32>
    %71 = math.tanh %70 : vector<4x32xf32>
    %cst_27 = arith.constant 1.000000e+00 : f32
    %72 = vector.broadcast %cst_27 : f32 to vector<4x32xf32>
    %73 = arith.subf %72, %66 : vector<4x32xf32>
    %74 = arith.mulf %73, %71 : vector<4x32xf32>
    %75 = arith.mulf %66, %12 : vector<4x32xf32>
    %76 = arith.addf %74, %75 : vector<4x32xf32>
    %c0_i32_28 = arith.constant 0 : i32
    %77 = arith.addi %8, %c0_i32_28 : i32
    %78 = vector.broadcast %77 : i32 to vector<4x1xi32>
    %79 = arith.cmpi sgt, %7, %78 : vector<4x1xi32>
    %80 = arith.extui %79 : vector<4x1xi1> to vector<4x1xi32>
    %81 = arith.sitofp %80 : vector<4x1xi32> to vector<4x1xf32>
    %c15_i32 = arith.constant 15 : i32
    %82 = arith.addi %10, %c15_i32 : i32
    %83 = vector.broadcast %82 : i32 to vector<4x1xi32>
    %84 = arith.cmpi sgt, %7, %83 : vector<4x1xi32>
    %85 = arith.extui %84 : vector<4x1xi1> to vector<4x1xi32>
    %86 = arith.sitofp %85 : vector<4x1xi32> to vector<4x1xf32>
    %87 = vector.broadcast %81 : vector<4x1xf32> to vector<4x32xf32>
    %88 = arith.mulf %87, %50 : vector<4x32xf32>
    %89 = vector.broadcast %86 : vector<4x1xf32> to vector<4x32xf32>
    %90 = arith.mulf %89, %76 : vector<4x32xf32>
    %c0_29 = arith.constant 0 : index
    %c0_30 = arith.constant 0 : index
    %c0_31 = arith.constant 0 : index
    %91 = vector.load %arg13[%c0_29, %c0_30, %c0_31] : memref<4x16x32xf32, #tpu.memory_space<vmem>>, vector<4x1x32xf32>
    %92 = vector.shape_cast %91 : vector<4x1x32xf32> to vector<4x32xf32>
    %93 = vector.shape_cast %88 : vector<4x32xf32> to vector<4x1x32xf32>
    tpu.vector_store %arg13[%c0_29, %c0_30, %c0_31], %93 {strides = array<i32>} : memref<4x16x32xf32, #tpu.memory_space<vmem>>, vector<4x1x32xf32>,
    %c0_32 = arith.constant 0 : index
    %c15_33 = arith.constant 15 : index
    %c0_34 = arith.constant 0 : index
    %94 = vector.load %arg14[%c0_32, %c15_33, %c0_34] : memref<4x16x32xf32, #tpu.memory_space<vmem>>, vector<4x1x32xf32>
    %95 = vector.shape_cast %94 : vector<4x1x32xf32> to vector<4x32xf32>
    %96 = vector.shape_cast %90 : vector<4x32xf32> to vector<4x1x32xf32>
    tpu.vector_store %arg14[%c0_32, %c15_33, %c0_34], %96 {strides = array<i32>} : memref<4x16x32xf32, #tpu.memory_space<vmem>>, vector<4x1x32xf32>,
    %cst_35 = arith.constant 1.000000e+00 : f32
    %97 = vector.broadcast %cst_35 : f32 to vector<4x1xf32>
    %98 = arith.subf %97, %81 : vector<4x1xf32>
    %99 = vector.broadcast %98 : vector<4x1xf32> to vector<4x32xf32>
    %100 = arith.mulf %99, %11 : vector<4x32xf32>
    %101 = arith.addf %88, %100 : vector<4x32xf32>
    %cst_36 = arith.constant 1.000000e+00 : f32
    %102 = vector.broadcast %cst_36 : f32 to vector<4x1xf32>
    %103 = arith.subf %102, %86 : vector<4x1xf32>
    %104 = vector.broadcast %103 : vector<4x1xf32> to vector<4x32xf32>
    %105 = arith.mulf %104, %12 : vector<4x32xf32>
    %106 = arith.addf %90, %105 : vector<4x32xf32>
    %cst_37 = arith.constant dense<0.000000e+00> : vector<4x96xf32>
    %107 = tpu.matmul %101, %3, %cst_37 {dimension_numbers = #tpu.dot_dimension_numbers<[1], [0], [0], [1], [0, 0, 1, 1], [], []>} : vector<4x32xf32>, vector<32x96xf32>, vector<4x96xf32> -> vector<4x96xf32>
    %108 = vector.broadcast %5 : vector<1x96xf32> to vector<4x96xf32>
    %109 = arith.addf %107, %108 : vector<4x96xf32>
    %cst_38 = arith.constant dense<0.000000e+00> : vector<4x96xf32>
    %110 = tpu.matmul %106, %4, %cst_38 {dimension_numbers = #tpu.dot_dimension_numbers<[1], [0], [0], [1], [0, 0, 1, 1], [], []>} : vector<4x32xf32>, vector<32x96xf32>, vector<4x96xf32> -> vector<4x96xf32>
    %111 = vector.broadcast %6 : vector<1x96xf32> to vector<4x96xf32>
    %112 = arith.addf %110, %111 : vector<4x96xf32>
    %c1 = arith.constant 1 : index
    %c0_39 = arith.constant 0 : index
    %c0_40 = arith.constant 0 : index
    %113 = vector.load %arg2[%c1, %c0_39, %c0_40] : memref<16x4x96xbf16, #tpu.memory_space<vmem>>, vector<1x4x96xbf16>
    %114 = vector.shape_cast %113 : vector<1x4x96xbf16> to vector<4x96xbf16>
    %115 = arith.extf %114 : vector<4x96xbf16> to vector<4x96xf32>
    %c14 = arith.constant 14 : index
    %c0_41 = arith.constant 0 : index
    %c0_42 = arith.constant 0 : index
    %116 = vector.load %arg3[%c14, %c0_41, %c0_42] : memref<16x4x96xbf16, #tpu.memory_space<vmem>>, vector<1x4x96xbf16>
    %117 = vector.shape_cast %116 : vector<1x4x96xbf16> to vector<4x96xbf16>
    %118 = arith.extf %117 : vector<4x96xbf16> to vector<4x96xf32>
    %119 = vector.extract_strided_slice %115 {offsets = [0, 0], sizes = [4, 32], strides = [1, 1]} : vector<4x96xf32> to vector<4x32xf32>
    %120 = vector.extract_strided_slice %109 {offsets = [0, 0], sizes = [4, 32], strides = [1, 1]} : vector<4x96xf32> to vector<4x32xf32>
    %121 = arith.addf %119, %120 : vector<4x32xf32>
    %122 = arith.negf %121 : vector<4x32xf32>
    %123 = math.exp %122 : vector<4x32xf32>
    %cst_43 = arith.constant 1.000000e+00 : f32
    %124 = vector.broadcast %cst_43 : f32 to vector<4x32xf32>
    %125 = arith.addf %124, %123 : vector<4x32xf32>
    %126 = arith.divf %124, %125 : vector<4x32xf32>
    %127 = vector.extract_strided_slice %115 {offsets = [0, 32], sizes = [4, 32], strides = [1, 1]} : vector<4x96xf32> to vector<4x32xf32>
    %128 = vector.extract_strided_slice %109 {offsets = [0, 32], sizes = [4, 32], strides = [1, 1]} : vector<4x96xf32> to vector<4x32xf32>
    %129 = arith.addf %127, %128 : vector<4x32xf32>
    %130 = arith.negf %129 : vector<4x32xf32>
    %131 = math.exp %130 : vector<4x32xf32>
    %cst_44 = arith.constant 1.000000e+00 : f32
    %132 = vector.broadcast %cst_44 : f32 to vector<4x32xf32>
    %133 = arith.addf %132, %131 : vector<4x32xf32>
    %134 = arith.divf %132, %133 : vector<4x32xf32>
    %135 = vector.extract_strided_slice %115 {offsets = [0, 64], sizes = [4, 32], strides = [1, 1]} : vector<4x96xf32> to vector<4x32xf32>
    %136 = vector.extract_strided_slice %109 {offsets = [0, 64], sizes = [4, 32], strides = [1, 1]} : vector<4x96xf32> to vector<4x32xf32>
    %137 = arith.mulf %126, %136 : vector<4x32xf32>
    %138 = arith.addf %135, %137 : vector<4x32xf32>
    %139 = math.tanh %138 : vector<4x32xf32>
    %cst_45 = arith.constant 1.000000e+00 : f32
    %140 = vector.broadcast %cst_45 : f32 to vector<4x32xf32>
    %141 = arith.subf %140, %134 : vector<4x32xf32>
    %142 = arith.mulf %141, %139 : vector<4x32xf32>
    %143 = arith.mulf %134, %101 : vector<4x32xf32>
    %144 = arith.addf %142, %143 : vector<4x32xf32>
    %145 = vector.extract_strided_slice %118 {offsets = [0, 0], sizes = [4, 32], strides = [1, 1]} : vector<4x96xf32> to vector<4x32xf32>
    %146 = vector.extract_strided_slice %112 {offsets = [0, 0], sizes = [4, 32], strides = [1, 1]} : vector<4x96xf32> to vector<4x32xf32>
    %147 = arith.addf %145, %146 : vector<4x32xf32>
    %148 = arith.negf %147 : vector<4x32xf32>
    %149 = math.exp %148 : vector<4x32xf32>
    %cst_46 = arith.constant 1.000000e+00 : f32
    %150 = vector.broadcast %cst_46 : f32 to vector<4x32xf32>
    %151 = arith.addf %150, %149 : vector<4x32xf32>
    %152 = arith.divf %150, %151 : vector<4x32xf32>
    %153 = vector.extract_strided_slice %118 {offsets = [0, 32], sizes = [4, 32], strides = [1, 1]} : vector<4x96xf32> to vector<4x32xf32>
    %154 = vector.extract_strided_slice %112 {offsets = [0, 32], sizes = [4, 32], strides = [1, 1]} : vector<4x96xf32> to vector<4x32xf32>
    %155 = arith.addf %153, %154 : vector<4x32xf32>
    %156 = arith.negf %155 : vector<4x32xf32>
    %157 = math.exp %156 : vector<4x32xf32>
    %cst_47 = arith.constant 1.000000e+00 : f32
    %158 = vector.broadcast %cst_47 : f32 to vector<4x32xf32>
    %159 = arith.addf %158, %157 : vector<4x32xf32>
    %160 = arith.divf %158, %159 : vector<4x32xf32>
    %161 = vector.extract_strided_slice %118 {offsets = [0, 64], sizes = [4, 32], strides = [1, 1]} : vector<4x96xf32> to vector<4x32xf32>
    %162 = vector.extract_strided_slice %112 {offsets = [0, 64], sizes = [4, 32], strides = [1, 1]} : vector<4x96xf32> to vector<4x32xf32>
    %163 = arith.mulf %152, %162 : vector<4x32xf32>
    %164 = arith.addf %161, %163 : vector<4x32xf32>
    %165 = math.tanh %164 : vector<4x32xf32>
    %cst_48 = arith.constant 1.000000e+00 : f32
    %166 = vector.broadcast %cst_48 : f32 to vector<4x32xf32>
    %167 = arith.subf %166, %160 : vector<4x32xf32>
    %168 = arith.mulf %167, %165 : vector<4x32xf32>
    %169 = arith.mulf %160, %106 : vector<4x32xf32>
    %170 = arith.addf %168, %169 : vector<4x32xf32>
    %c1_i32 = arith.constant 1 : i32
    %171 = arith.addi %8, %c1_i32 : i32
    %172 = vector.broadcast %171 : i32 to vector<4x1xi32>
    %173 = arith.cmpi sgt, %7, %172 : vector<4x1xi32>
    %174 = arith.extui %173 : vector<4x1xi1> to vector<4x1xi32>
    %175 = arith.sitofp %174 : vector<4x1xi32> to vector<4x1xf32>
    %c14_i32 = arith.constant 14 : i32
    %176 = arith.addi %10, %c14_i32 : i32
    %177 = vector.broadcast %176 : i32 to vector<4x1xi32>
    %178 = arith.cmpi sgt, %7, %177 : vector<4x1xi32>
    %179 = arith.extui %178 : vector<4x1xi1> to vector<4x1xi32>
    %180 = arith.sitofp %179 : vector<4x1xi32> to vector<4x1xf32>
    %181 = vector.broadcast %175 : vector<4x1xf32> to vector<4x32xf32>
    %182 = arith.mulf %181, %144 : vector<4x32xf32>
    %183 = vector.broadcast %180 : vector<4x1xf32> to vector<4x32xf32>
    %184 = arith.mulf %183, %170 : vector<4x32xf32>
    %c0_49 = arith.constant 0 : index
    %c1_50 = arith.constant 1 : index
    %c0_51 = arith.constant 0 : index
    %185 = vector.load %arg13[%c0_49, %c1_50, %c0_51] : memref<4x16x32xf32, #tpu.memory_space<vmem>>, vector<4x1x32xf32>
    %186 = vector.shape_cast %185 : vector<4x1x32xf32> to vector<4x32xf32>
    %187 = vector.shape_cast %182 : vector<4x32xf32> to vector<4x1x32xf32>
    tpu.vector_store %arg13[%c0_49, %c1_50, %c0_51], %187 {strides = array<i32>} : memref<4x16x32xf32, #tpu.memory_space<vmem>>, vector<4x1x32xf32>,
    %c0_52 = arith.constant 0 : index
    %c14_53 = arith.constant 14 : index
    %c0_54 = arith.constant 0 : index
    %188 = vector.load %arg14[%c0_52, %c14_53, %c0_54] : memref<4x16x32xf32, #tpu.memory_space<vmem>>, vector<4x1x32xf32>
    %189 = vector.shape_cast %188 : vector<4x1x32xf32> to vector<4x32xf32>
    %190 = vector.shape_cast %184 : vector<4x32xf32> to vector<4x1x32xf32>
    tpu.vector_store %arg14[%c0_52, %c14_53, %c0_54], %190 {strides = array<i32>} : memref<4x16x32xf32, #tpu.memory_space<vmem>>, vector<4x1x32xf32>,
    %cst_55 = arith.constant 1.000000e+00 : f32
    %191 = vector.broadcast %cst_55 : f32 to vector<4x1xf32>
    %192 = arith.subf %191, %175 : vector<4x1xf32>
    %193 = vector.broadcast %192 : vector<4x1xf32> to vector<4x32xf32>
    %194 = arith.mulf %193, %101 : vector<4x32xf32>
    %195 = arith.addf %182, %194 : vector<4x32xf32>
    %cst_56 = arith.constant 1.000000e+00 : f32
    %196 = vector.broadcast %cst_56 : f32 to vector<4x1xf32>
    %197 = arith.subf %196, %180 : vector<4x1xf32>
    %198 = vector.broadcast %197 : vector<4x1xf32> to vector<4x32xf32>
    %199 = arith.mulf %198, %106 : vector<4x32xf32>
    %200 = arith.addf %184, %199 : vector<4x32xf32>
    %cst_57 = arith.constant dense<0.000000e+00> : vector<4x96xf32>
    %201 = tpu.matmul %195, %3, %cst_57 {dimension_numbers = #tpu.dot_dimension_numbers<[1], [0], [0], [1], [0, 0, 1, 1], [], []>} : vector<4x32xf32>, vector<32x96xf32>, vector<4x96xf32> -> vector<4x96xf32>
    %202 = vector.broadcast %5 : vector<1x96xf32> to vector<4x96xf32>
    %203 = arith.addf %201, %202 : vector<4x96xf32>
    %cst_58 = arith.constant dense<0.000000e+00> : vector<4x96xf32>
    %204 = tpu.matmul %200, %4, %cst_58 {dimension_numbers = #tpu.dot_dimension_numbers<[1], [0], [0], [1], [0, 0, 1, 1], [], []>} : vector<4x32xf32>, vector<32x96xf32>, vector<4x96xf32> -> vector<4x96xf32>
    %205 = vector.broadcast %6 : vector<1x96xf32> to vector<4x96xf32>
    %206 = arith.addf %204, %205 : vector<4x96xf32>
    %c2 = arith.constant 2 : index
    %c0_59 = arith.constant 0 : index
    %c0_60 = arith.constant 0 : index
    %207 = vector.load %arg2[%c2, %c0_59, %c0_60] : memref<16x4x96xbf16, #tpu.memory_space<vmem>>, vector<1x4x96xbf16>
    %208 = vector.shape_cast %207 : vector<1x4x96xbf16> to vector<4x96xbf16>
    %209 = arith.extf %208 : vector<4x96xbf16> to vector<4x96xf32>
    %c13 = arith.constant 13 : index
    %c0_61 = arith.constant 0 : index
    %c0_62 = arith.constant 0 : index
    %210 = vector.load %arg3[%c13, %c0_61, %c0_62] : memref<16x4x96xbf16, #tpu.memory_space<vmem>>, vector<1x4x96xbf16>
    %211 = vector.shape_cast %210 : vector<1x4x96xbf16> to vector<4x96xbf16>
    %212 = arith.extf %211 : vector<4x96xbf16> to vector<4x96xf32>
    %213 = vector.extract_strided_slice %209 {offsets = [0, 0], sizes = [4, 32], strides = [1, 1]} : vector<4x96xf32> to vector<4x32xf32>
    %214 = vector.extract_strided_slice %203 {offsets = [0, 0], sizes = [4, 32], strides = [1, 1]} : vector<4x96xf32> to vector<4x32xf32>
    %215 = arith.addf %213, %214 : vector<4x32xf32>
    %216 = arith.negf %215 : vector<4x32xf32>
    %217 = math.exp %216 : vector<4x32xf32>
    %cst_63 = arith.constant 1.000000e+00 : f32
    %218 = vector.broadcast %cst_63 : f32 to vector<4x32xf32>
    %219 = arith.addf %218, %217 : vector<4x32xf32>
    %220 = arith.divf %218, %219 : vector<4x32xf32>
    %221 = vector.extract_strided_slice %209 {offsets = [0, 32], sizes = [4, 32], strides = [1, 1]} : vector<4x96xf32> to vector<4x32xf32>
    %222 = vector.extract_strided_slice %203 {offsets = [0, 32], sizes = [4, 32], strides = [1, 1]} : vector<4x96xf32> to vector<4x32xf32>
    %223 = arith.addf %221, %222 : vector<4x32xf32>
    %224 = arith.negf %223 : vector<4x32xf32>
    %225 = math.exp %224 : vector<4x32xf32>
    %cst_64 = arith.constant 1.000000e+00 : f32
    %226 = vector.broadcast %cst_64 : f32 to vector<4x32xf32>
    %227 = arith.addf %226, %225 : vector<4x32xf32>
    %228 = arith.divf %226, %227 : vector<4x32xf32>
    %229 = vector.extract_strided_slice %209 {offsets = [0, 64], sizes = [4, 32], strides = [1, 1]} : vector<4x96xf32> to vector<4x32xf32>
    %230 = vector.extract_strided_slice %203 {offsets = [0, 64], sizes = [4, 32], strides = [1, 1]} : vector<4x96xf32> to vector<4x32xf32>
    %231 = arith.mulf %220, %230 : vector<4x32xf32>
    %232 = arith.addf %229, %231 : vector<4x32xf32>
    %233 = math.tanh %232 : vector<4x32xf32>
    %cst_65 = arith.constant 1.000000e+00 : f32
    %234 = vector.broadcast %cst_65 : f32 to vector<4x32xf32>
    %235 = arith.subf %234, %228 : vector<4x32xf32>
    %236 = arith.mulf %235, %233 : vector<4x32xf32>
    %237 = arith.mulf %228, %195 : vector<4x32xf32>
    %238 = arith.addf %236, %237 : vector<4x32xf32>
    %239 = vector.extract_strided_slice %212 {offsets = [0, 0], sizes = [4, 32], strides = [1, 1]} : vector<4x96xf32> to vector<4x32xf32>
    %240 = vector.extract_strided_slice %206 {offsets = [0, 0], sizes = [4, 32], strides = [1, 1]} : vector<4x96xf32> to vector<4x32xf32>
    %241 = arith.addf %239, %240 : vector<4x32xf32>
    %242 = arith.negf %241 : vector<4x32xf32>
    %243 = math.exp %242 : vector<4x32xf32>
    %cst_66 = arith.constant 1.000000e+00 : f32
    %244 = vector.broadcast %cst_66 : f32 to vector<4x32xf32>
    %245 = arith.addf %244, %243 : vector<4x32xf32>
    %246 = arith.divf %244, %245 : vector<4x32xf32>
    %247 = vector.extract_strided_slice %212 {offsets = [0, 32], sizes = [4, 32], strides = [1, 1]} : vector<4x96xf32> to vector<4x32xf32>
    %248 = vector.extract_strided_slice %206 {offsets = [0, 32], sizes = [4, 32], strides = [1, 1]} : vector<4x96xf32> to vector<4x32xf32>
    %249 = arith.addf %247, %248 : vector<4x32xf32>
    %250 = arith.negf %249 : vector<4x32xf32>
    %251 = math.exp %250 : vector<4x32xf32>
    %cst_67 = arith.constant 1.000000e+00 : f32
    %252 = vector.broadcast %cst_67 : f32 to vector<4x32xf32>
    %253 = arith.addf %252, %251 : vector<4x32xf32>
    %254 = arith.divf %252, %253 : vector<4x32xf32>
    %255 = vector.extract_strided_slice %212 {offsets = [0, 64], sizes = [4, 32], strides = [1, 1]} : vector<4x96xf32> to vector<4x32xf32>
    %256 = vector.extract_strided_slice %206 {offsets = [0, 64], sizes = [4, 32], strides = [1, 1]} : vector<4x96xf32> to vector<4x32xf32>
    %257 = arith.mulf %246, %256 : vector<4x32xf32>
    %258 = arith.addf %255, %257 : vector<4x32xf32>
    %259 = math.tanh %258 : vector<4x32xf32>
    %cst_68 = arith.constant 1.000000e+00 : f32
    %260 = vector.broadcast %cst_68 : f32 to vector<4x32xf32>
    %261 = arith.subf %260, %254 : vector<4x32xf32>
    %262 = arith.mulf %261, %259 : vector<4x32xf32>
    %263 = arith.mulf %254, %200 : vector<4x32xf32>
    %264 = arith.addf %262, %263 : vector<4x32xf32>
    %c2_i32 = arith.constant 2 : i32
    %265 = arith.addi %8, %c2_i32 : i32
    %266 = vector.broadcast %265 : i32 to vector<4x1xi32>
    %267 = arith.cmpi sgt, %7, %266 : vector<4x1xi32>
    %268 = arith.extui %267 : vector<4x1xi1> to vector<4x1xi32>
    %269 = arith.sitofp %268 : vector<4x1xi32> to vector<4x1xf32>
    %c13_i32 = arith.constant 13 : i32
    %270 = arith.addi %10, %c13_i32 : i32
    %271 = vector.broadcast %270 : i32 to vector<4x1xi32>
    %272 = arith.cmpi sgt, %7, %271 : vector<4x1xi32>
    %273 = arith.extui %272 : vector<4x1xi1> to vector<4x1xi32>
    %274 = arith.sitofp %273 : vector<4x1xi32> to vector<4x1xf32>
    %275 = vector.broadcast %269 : vector<4x1xf32> to vector<4x32xf32>
    %276 = arith.mulf %275, %238 : vector<4x32xf32>
    %277 = vector.broadcast %274 : vector<4x1xf32> to vector<4x32xf32>
    %278 = arith.mulf %277, %264 : vector<4x32xf32>
    %c0_69 = arith.constant 0 : index
    %c2_70 = arith.constant 2 : index
    %c0_71 = arith.constant 0 : index
    %279 = vector.load %arg13[%c0_69, %c2_70, %c0_71] : memref<4x16x32xf32, #tpu.memory_space<vmem>>, vector<4x1x32xf32>
    %280 = vector.shape_cast %279 : vector<4x1x32xf32> to vector<4x32xf32>
    %281 = vector.shape_cast %276 : vector<4x32xf32> to vector<4x1x32xf32>
    tpu.vector_store %arg13[%c0_69, %c2_70, %c0_71], %281 {strides = array<i32>} : memref<4x16x32xf32, #tpu.memory_space<vmem>>, vector<4x1x32xf32>,
    %c0_72 = arith.constant 0 : index
    %c13_73 = arith.constant 13 : index
    %c0_74 = arith.constant 0 : index
    %282 = vector.load %arg14[%c0_72, %c13_73, %c0_74] : memref<4x16x32xf32, #tpu.memory_space<vmem>>, vector<4x1x32xf32>
    %283 = vector.shape_cast %282 : vector<4x1x32xf32> to vector<4x32xf32>
    %284 = vector.shape_cast %278 : vector<4x32xf32> to vector<4x1x32xf32>
    tpu.vector_store %arg14[%c0_72, %c13_73, %c0_74], %284 {strides = array<i32>} : memref<4x16x32xf32, #tpu.memory_space<vmem>>, vector<4x1x32xf32>,
    %cst_75 = arith.constant 1.000000e+00 : f32
    %285 = vector.broadcast %cst_75 : f32 to vector<4x1xf32>
    %286 = arith.subf %285, %269 : vector<4x1xf32>
    %287 = vector.broadcast %286 : vector<4x1xf32> to vector<4x32xf32>
    %288 = arith.mulf %287, %195 : vector<4x32xf32>
    %289 = arith.addf %276, %288 : vector<4x32xf32>
    %cst_76 = arith.constant 1.000000e+00 : f32
    %290 = vector.broadcast %cst_76 : f32 to vector<4x1xf32>
    %291 = arith.subf %290, %274 : vector<4x1xf32>
    %292 = vector.broadcast %291 : vector<4x1xf32> to vector<4x32xf32>
    %293 = arith.mulf %292, %200 : vector<4x32xf32>
    %294 = arith.addf %278, %293 : vector<4x32xf32>
    %cst_77 = arith.constant dense<0.000000e+00> : vector<4x96xf32>
    %295 = tpu.matmul %289, %3, %cst_77 {dimension_numbers = #tpu.dot_dimension_numbers<[1], [0], [0], [1], [0, 0, 1, 1], [], []>} : vector<4x32xf32>, vector<32x96xf32>, vector<4x96xf32> -> vector<4x96xf32>
    %296 = vector.broadcast %5 : vector<1x96xf32> to vector<4x96xf32>
    %297 = arith.addf %295, %296 : vector<4x96xf32>
    %cst_78 = arith.constant dense<0.000000e+00> : vector<4x96xf32>
    %298 = tpu.matmul %294, %4, %cst_78 {dimension_numbers = #tpu.dot_dimension_numbers<[1], [0], [0], [1], [0, 0, 1, 1], [], []>} : vector<4x32xf32>, vector<32x96xf32>, vector<4x96xf32> -> vector<4x96xf32>
    %299 = vector.broadcast %6 : vector<1x96xf32> to vector<4x96xf32>
    %300 = arith.addf %298, %299 : vector<4x96xf32>
    %c3 = arith.constant 3 : index
    %c0_79 = arith.constant 0 : index
    %c0_80 = arith.constant 0 : index
    %301 = vector.load %arg2[%c3, %c0_79, %c0_80] : memref<16x4x96xbf16, #tpu.memory_space<vmem>>, vector<1x4x96xbf16>
    %302 = vector.shape_cast %301 : vector<1x4x96xbf16> to vector<4x96xbf16>
    %303 = arith.extf %302 : vector<4x96xbf16> to vector<4x96xf32>
    %c12 = arith.constant 12 : index
    %c0_81 = arith.constant 0 : index
    %c0_82 = arith.constant 0 : index
    %304 = vector.load %arg3[%c12, %c0_81, %c0_82] : memref<16x4x96xbf16, #tpu.memory_space<vmem>>, vector<1x4x96xbf16>
    %305 = vector.shape_cast %304 : vector<1x4x96xbf16> to vector<4x96xbf16>
    %306 = arith.extf %305 : vector<4x96xbf16> to vector<4x96xf32>
    %307 = vector.extract_strided_slice %303 {offsets = [0, 0], sizes = [4, 32], strides = [1, 1]} : vector<4x96xf32> to vector<4x32xf32>
    %308 = vector.extract_strided_slice %297 {offsets = [0, 0], sizes = [4, 32], strides = [1, 1]} : vector<4x96xf32> to vector<4x32xf32>
    %309 = arith.addf %307, %308 : vector<4x32xf32>
    %310 = arith.negf %309 : vector<4x32xf32>
    %311 = math.exp %310 : vector<4x32xf32>
    %cst_83 = arith.constant 1.000000e+00 : f32
    %312 = vector.broadcast %cst_83 : f32 to vector<4x32xf32>
    %313 = arith.addf %312, %311 : vector<4x32xf32>
    %314 = arith.divf %312, %313 : vector<4x32xf32>
    %315 = vector.extract_strided_slice %303 {offsets = [0, 32], sizes = [4, 32], strides = [1, 1]} : vector<4x96xf32> to vector<4x32xf32>
    %316 = vector.extract_strided_slice %297 {offsets = [0, 32], sizes = [4, 32], strides = [1, 1]} : vector<4x96xf32> to vector<4x32xf32>
    %317 = arith.addf %315, %316 : vector<4x32xf32>
    %318 = arith.negf %317 : vector<4x32xf32>
    %319 = math.exp %318 : vector<4x32xf32>
    %cst_84 = arith.constant 1.000000e+00 : f32
    %320 = vector.broadcast %cst_84 : f32 to vector<4x32xf32>
    %321 = arith.addf %320, %319 : vector<4x32xf32>
    %322 = arith.divf %320, %321 : vector<4x32xf32>
    %323 = vector.extract_strided_slice %303 {offsets = [0, 64], sizes = [4, 32], strides = [1, 1]} : vector<4x96xf32> to vector<4x32xf32>
    %324 = vector.extract_strided_slice %297 {offsets = [0, 64], sizes = [4, 32], strides = [1, 1]} : vector<4x96xf32> to vector<4x32xf32>
    %325 = arith.mulf %314, %324 : vector<4x32xf32>
    %326 = arith.addf %323, %325 : vector<4x32xf32>
    %327 = math.tanh %326 : vector<4x32xf32>
    %cst_85 = arith.constant 1.000000e+00 : f32
    %328 = vector.broadcast %cst_85 : f32 to vector<4x32xf32>
    %329 = arith.subf %328, %322 : vector<4x32xf32>
    %330 = arith.mulf %329, %327 : vector<4x32xf32>
    %331 = arith.mulf %322, %289 : vector<4x32xf32>
    %332 = arith.addf %330, %331 : vector<4x32xf32>
    %333 = vector.extract_strided_slice %306 {offsets = [0, 0], sizes = [4, 32], strides = [1, 1]} : vector<4x96xf32> to vector<4x32xf32>
    %334 = vector.extract_strided_slice %300 {offsets = [0, 0], sizes = [4, 32], strides = [1, 1]} : vector<4x96xf32> to vector<4x32xf32>
    %335 = arith.addf %333, %334 : vector<4x32xf32>
    %336 = arith.negf %335 : vector<4x32xf32>
    %337 = math.exp %336 : vector<4x32xf32>
    %cst_86 = arith.constant 1.000000e+00 : f32
    %338 = vector.broadcast %cst_86 : f32 to vector<4x32xf32>
    %339 = arith.addf %338, %337 : vector<4x32xf32>
    %340 = arith.divf %338, %339 : vector<4x32xf32>
    %341 = vector.extract_strided_slice %306 {offsets = [0, 32], sizes = [4, 32], strides = [1, 1]} : vector<4x96xf32> to vector<4x32xf32>
    %342 = vector.extract_strided_slice %300 {offsets = [0, 32], sizes = [4, 32], strides = [1, 1]} : vector<4x96xf32> to vector<4x32xf32>
    %343 = arith.addf %341, %342 : vector<4x32xf32>
    %344 = arith.negf %343 : vector<4x32xf32>
    %345 = math.exp %344 : vector<4x32xf32>
    %cst_87 = arith.constant 1.000000e+00 : f32
    %346 = vector.broadcast %cst_87 : f32 to vector<4x32xf32>
    %347 = arith.addf %346, %345 : vector<4x32xf32>
    %348 = arith.divf %346, %347 : vector<4x32xf32>
    %349 = vector.extract_strided_slice %306 {offsets = [0, 64], sizes = [4, 32], strides = [1, 1]} : vector<4x96xf32> to vector<4x32xf32>
    %350 = vector.extract_strided_slice %300 {offsets = [0, 64], sizes = [4, 32], strides = [1, 1]} : vector<4x96xf32> to vector<4x32xf32>
    %351 = arith.mulf %340, %350 : vector<4x32xf32>
    %352 = arith.addf %349, %351 : vector<4x32xf32>
    %353 = math.tanh %352 : vector<4x32xf32>
    %cst_88 = arith.constant 1.000000e+00 : f32
    %354 = vector.broadcast %cst_88 : f32 to vector<4x32xf32>
    %355 = arith.subf %354, %348 : vector<4x32xf32>
    %356 = arith.mulf %355, %353 : vector<4x32xf32>
    %357 = arith.mulf %348, %294 : vector<4x32xf32>
    %358 = arith.addf %356, %357 : vector<4x32xf32>
    %c3_i32 = arith.constant 3 : i32
    %359 = arith.addi %8, %c3_i32 : i32
    %360 = vector.broadcast %359 : i32 to vector<4x1xi32>
    %361 = arith.cmpi sgt, %7, %360 : vector<4x1xi32>
    %362 = arith.extui %361 : vector<4x1xi1> to vector<4x1xi32>
    %363 = arith.sitofp %362 : vector<4x1xi32> to vector<4x1xf32>
    %c12_i32 = arith.constant 12 : i32
    %364 = arith.addi %10, %c12_i32 : i32
    %365 = vector.broadcast %364 : i32 to vector<4x1xi32>
    %366 = arith.cmpi sgt, %7, %365 : vector<4x1xi32>
    %367 = arith.extui %366 : vector<4x1xi1> to vector<4x1xi32>
    %368 = arith.sitofp %367 : vector<4x1xi32> to vector<4x1xf32>
    %369 = vector.broadcast %363 : vector<4x1xf32> to vector<4x32xf32>
    %370 = arith.mulf %369, %332 : vector<4x32xf32>
    %371 = vector.broadcast %368 : vector<4x1xf32> to vector<4x32xf32>
    %372 = arith.mulf %371, %358 : vector<4x32xf32>
    %c0_89 = arith.constant 0 : index
    %c3_90 = arith.constant 3 : index
    %c0_91 = arith.constant 0 : index
    %373 = vector.load %arg13[%c0_89, %c3_90, %c0_91] : memref<4x16x32xf32, #tpu.memory_space<vmem>>, vector<4x1x32xf32>
    %374 = vector.shape_cast %373 : vector<4x1x32xf32> to vector<4x32xf32>
    %375 = vector.shape_cast %370 : vector<4x32xf32> to vector<4x1x32xf32>
    tpu.vector_store %arg13[%c0_89, %c3_90, %c0_91], %375 {strides = array<i32>} : memref<4x16x32xf32, #tpu.memory_space<vmem>>, vector<4x1x32xf32>,
    %c0_92 = arith.constant 0 : index
    %c12_93 = arith.constant 12 : index
    %c0_94 = arith.constant 0 : index
    %376 = vector.load %arg14[%c0_92, %c12_93, %c0_94] : memref<4x16x32xf32, #tpu.memory_space<vmem>>, vector<4x1x32xf32>
    %377 = vector.shape_cast %376 : vector<4x1x32xf32> to vector<4x32xf32>
    %378 = vector.shape_cast %372 : vector<4x32xf32> to vector<4x1x32xf32>
    tpu.vector_store %arg14[%c0_92, %c12_93, %c0_94], %378 {strides = array<i32>} : memref<4x16x32xf32, #tpu.memory_space<vmem>>, vector<4x1x32xf32>,
    %cst_95 = arith.constant 1.000000e+00 : f32
    %379 = vector.broadcast %cst_95 : f32 to vector<4x1xf32>
    %380 = arith.subf %379, %363 : vector<4x1xf32>
    %381 = vector.broadcast %380 : vector<4x1xf32> to vector<4x32xf32>
    %382 = arith.mulf %381, %289 : vector<4x32xf32>
    %383 = arith.addf %370, %382 : vector<4x32xf32>
    %cst_96 = arith.constant 1.000000e+00 : f32
    %384 = vector.broadcast %cst_96 : f32 to vector<4x1xf32>
    %385 = arith.subf %384, %368 : vector<4x1xf32>
    %386 = vector.broadcast %385 : vector<4x1xf32> to vector<4x32xf32>
    %387 = arith.mulf %386, %294 : vector<4x32xf32>
    %388 = arith.addf %372, %387 : vector<4x32xf32>
    %cst_97 = arith.constant dense<0.000000e+00> : vector<4x96xf32>
    %389 = tpu.matmul %383, %3, %cst_97 {dimension_numbers = #tpu.dot_dimension_numbers<[1], [0], [0], [1], [0, 0, 1, 1], [], []>} : vector<4x32xf32>, vector<32x96xf32>, vector<4x96xf32> -> vector<4x96xf32>
    %390 = vector.broadcast %5 : vector<1x96xf32> to vector<4x96xf32>
    %391 = arith.addf %389, %390 : vector<4x96xf32>
    %cst_98 = arith.constant dense<0.000000e+00> : vector<4x96xf32>
    %392 = tpu.matmul %388, %4, %cst_98 {dimension_numbers = #tpu.dot_dimension_numbers<[1], [0], [0], [1], [0, 0, 1, 1], [], []>} : vector<4x32xf32>, vector<32x96xf32>, vector<4x96xf32> -> vector<4x96xf32>
    %393 = vector.broadcast %6 : vector<1x96xf32> to vector<4x96xf32>
    %394 = arith.addf %392, %393 : vector<4x96xf32>
    %c4 = arith.constant 4 : index
    %c0_99 = arith.constant 0 : index
    %c0_100 = arith.constant 0 : index
    %395 = vector.load %arg2[%c4, %c0_99, %c0_100] : memref<16x4x96xbf16, #tpu.memory_space<vmem>>, vector<1x4x96xbf16>
    %396 = vector.shape_cast %395 : vector<1x4x96xbf16> to vector<4x96xbf16>
    %397 = arith.extf %396 : vector<4x96xbf16> to vector<4x96xf32>
    %c11 = arith.constant 11 : index
    %c0_101 = arith.constant 0 : index
    %c0_102 = arith.constant 0 : index
    %398 = vector.load %arg3[%c11, %c0_101, %c0_102] : memref<16x4x96xbf16, #tpu.memory_space<vmem>>, vector<1x4x96xbf16>
    %399 = vector.shape_cast %398 : vector<1x4x96xbf16> to vector<4x96xbf16>
    %400 = arith.extf %399 : vector<4x96xbf16> to vector<4x96xf32>
    %401 = vector.extract_strided_slice %397 {offsets = [0, 0], sizes = [4, 32], strides = [1, 1]} : vector<4x96xf32> to vector<4x32xf32>
    %402 = vector.extract_strided_slice %391 {offsets = [0, 0], sizes = [4, 32], strides = [1, 1]} : vector<4x96xf32> to vector<4x32xf32>
    %403 = arith.addf %401, %402 : vector<4x32xf32>
    %404 = arith.negf %403 : vector<4x32xf32>
    %405 = math.exp %404 : vector<4x32xf32>
    %cst_103 = arith.constant 1.000000e+00 : f32
    %406 = vector.broadcast %cst_103 : f32 to vector<4x32xf32>
    %407 = arith.addf %406, %405 : vector<4x32xf32>
    %408 = arith.divf %406, %407 : vector<4x32xf32>
    %409 = vector.extract_strided_slice %397 {offsets = [0, 32], sizes = [4, 32], strides = [1, 1]} : vector<4x96xf32> to vector<4x32xf32>
    %410 = vector.extract_strided_slice %391 {offsets = [0, 32], sizes = [4, 32], strides = [1, 1]} : vector<4x96xf32> to vector<4x32xf32>
    %411 = arith.addf %409, %410 : vector<4x32xf32>
    %412 = arith.negf %411 : vector<4x32xf32>
    %413 = math.exp %412 : vector<4x32xf32>
    %cst_104 = arith.constant 1.000000e+00 : f32
    %414 = vector.broadcast %cst_104 : f32 to vector<4x32xf32>
    %415 = arith.addf %414, %413 : vector<4x32xf32>
    %416 = arith.divf %414, %415 : vector<4x32xf32>
    %417 = vector.extract_strided_slice %397 {offsets = [0, 64], sizes = [4, 32], strides = [1, 1]} : vector<4x96xf32> to vector<4x32xf32>
    %418 = vector.extract_strided_slice %391 {offsets = [0, 64], sizes = [4, 32], strides = [1, 1]} : vector<4x96xf32> to vector<4x32xf32>
    %419 = arith.mulf %408, %418 : vector<4x32xf32>
    %420 = arith.addf %417, %419 : vector<4x32xf32>
    %421 = math.tanh %420 : vector<4x32xf32>
    %cst_105 = arith.constant 1.000000e+00 : f32
    %422 = vector.broadcast %cst_105 : f32 to vector<4x32xf32>
    %423 = arith.subf %422, %416 : vector<4x32xf32>
    %424 = arith.mulf %423, %421 : vector<4x32xf32>
    %425 = arith.mulf %416, %383 : vector<4x32xf32>
    %426 = arith.addf %424, %425 : vector<4x32xf32>
    %427 = vector.extract_strided_slice %400 {offsets = [0, 0], sizes = [4, 32], strides = [1, 1]} : vector<4x96xf32> to vector<4x32xf32>
    %428 = vector.extract_strided_slice %394 {offsets = [0, 0], sizes = [4, 32], strides = [1, 1]} : vector<4x96xf32> to vector<4x32xf32>
    %429 = arith.addf %427, %428 : vector<4x32xf32>
    %430 = arith.negf %429 : vector<4x32xf32>
    %431 = math.exp %430 : vector<4x32xf32>
    %cst_106 = arith.constant 1.000000e+00 : f32
    %432 = vector.broadcast %cst_106 : f32 to vector<4x32xf32>
    %433 = arith.addf %432, %431 : vector<4x32xf32>
    %434 = arith.divf %432, %433 : vector<4x32xf32>
    %435 = vector.extract_strided_slice %400 {offsets = [0, 32], sizes = [4, 32], strides = [1, 1]} : vector<4x96xf32> to vector<4x32xf32>
    %436 = vector.extract_strided_slice %394 {offsets = [0, 32], sizes = [4, 32], strides = [1, 1]} : vector<4x96xf32> to vector<4x32xf32>
    %437 = arith.addf %435, %436 : vector<4x32xf32>
    %438 = arith.negf %437 : vector<4x32xf32>
    %439 = math.exp %438 : vector<4x32xf32>
    %cst_107 = arith.constant 1.000000e+00 : f32
    %440 = vector.broadcast %cst_107 : f32 to vector<4x32xf32>
    %441 = arith.addf %440, %439 : vector<4x32xf32>
    %442 = arith.divf %440, %441 : vector<4x32xf32>
    %443 = vector.extract_strided_slice %400 {offsets = [0, 64], sizes = [4, 32], strides = [1, 1]} : vector<4x96xf32> to vector<4x32xf32>
    %444 = vector.extract_strided_slice %394 {offsets = [0, 64], sizes = [4, 32], strides = [1, 1]} : vector<4x96xf32> to vector<4x32xf32>
    %445 = arith.mulf %434, %444 : vector<4x32xf32>
    %446 = arith.addf %443, %445 : vector<4x32xf32>
    %447 = math.tanh %446 : vector<4x32xf32>
    %cst_108 = arith.constant 1.000000e+00 : f32
    %448 = vector.broadcast %cst_108 : f32 to vector<4x32xf32>
    %449 = arith.subf %448, %442 : vector<4x32xf32>
    %450 = arith.mulf %449, %447 : vector<4x32xf32>
    %451 = arith.mulf %442, %388 : vector<4x32xf32>
    %452 = arith.addf %450, %451 : vector<4x32xf32>
    %c4_i32 = arith.constant 4 : i32
    %453 = arith.addi %8, %c4_i32 : i32
    %454 = vector.broadcast %453 : i32 to vector<4x1xi32>
    %455 = arith.cmpi sgt, %7, %454 : vector<4x1xi32>
    %456 = arith.extui %455 : vector<4x1xi1> to vector<4x1xi32>
    %457 = arith.sitofp %456 : vector<4x1xi32> to vector<4x1xf32>
    %c11_i32 = arith.constant 11 : i32
    %458 = arith.addi %10, %c11_i32 : i32
    %459 = vector.broadcast %458 : i32 to vector<4x1xi32>
    %460 = arith.cmpi sgt, %7, %459 : vector<4x1xi32>
    %461 = arith.extui %460 : vector<4x1xi1> to vector<4x1xi32>
    %462 = arith.sitofp %461 : vector<4x1xi32> to vector<4x1xf32>
    %463 = vector.broadcast %457 : vector<4x1xf32> to vector<4x32xf32>
    %464 = arith.mulf %463, %426 : vector<4x32xf32>
    %465 = vector.broadcast %462 : vector<4x1xf32> to vector<4x32xf32>
    %466 = arith.mulf %465, %452 : vector<4x32xf32>
    %c0_109 = arith.constant 0 : index
    %c4_110 = arith.constant 4 : index
    %c0_111 = arith.constant 0 : index
    %467 = vector.load %arg13[%c0_109, %c4_110, %c0_111] : memref<4x16x32xf32, #tpu.memory_space<vmem>>, vector<4x1x32xf32>
    %468 = vector.shape_cast %467 : vector<4x1x32xf32> to vector<4x32xf32>
    %469 = vector.shape_cast %464 : vector<4x32xf32> to vector<4x1x32xf32>
    tpu.vector_store %arg13[%c0_109, %c4_110, %c0_111], %469 {strides = array<i32>} : memref<4x16x32xf32, #tpu.memory_space<vmem>>, vector<4x1x32xf32>,
    %c0_112 = arith.constant 0 : index
    %c11_113 = arith.constant 11 : index
    %c0_114 = arith.constant 0 : index
    %470 = vector.load %arg14[%c0_112, %c11_113, %c0_114] : memref<4x16x32xf32, #tpu.memory_space<vmem>>, vector<4x1x32xf32>
    %471 = vector.shape_cast %470 : vector<4x1x32xf32> to vector<4x32xf32>
    %472 = vector.shape_cast %466 : vector<4x32xf32> to vector<4x1x32xf32>
    tpu.vector_store %arg14[%c0_112, %c11_113, %c0_114], %472 {strides = array<i32>} : memref<4x16x32xf32, #tpu.memory_space<vmem>>, vector<4x1x32xf32>,
    %cst_115 = arith.constant 1.000000e+00 : f32
    %473 = vector.broadcast %cst_115 : f32 to vector<4x1xf32>
    %474 = arith.subf %473, %457 : vector<4x1xf32>
    %475 = vector.broadcast %474 : vector<4x1xf32> to vector<4x32xf32>
    %476 = arith.mulf %475, %383 : vector<4x32xf32>
    %477 = arith.addf %464, %476 : vector<4x32xf32>
    %cst_116 = arith.constant 1.000000e+00 : f32
    %478 = vector.broadcast %cst_116 : f32 to vector<4x1xf32>
    %479 = arith.subf %478, %462 : vector<4x1xf32>
    %480 = vector.broadcast %479 : vector<4x1xf32> to vector<4x32xf32>
    %481 = arith.mulf %480, %388 : vector<4x32xf32>
    %482 = arith.addf %466, %481 : vector<4x32xf32>
    %cst_117 = arith.constant dense<0.000000e+00> : vector<4x96xf32>
    %483 = tpu.matmul %477, %3, %cst_117 {dimension_numbers = #tpu.dot_dimension_numbers<[1], [0], [0], [1], [0, 0, 1, 1], [], []>} : vector<4x32xf32>, vector<32x96xf32>, vector<4x96xf32> -> vector<4x96xf32>
    %484 = vector.broadcast %5 : vector<1x96xf32> to vector<4x96xf32>
    %485 = arith.addf %483, %484 : vector<4x96xf32>
    %cst_118 = arith.constant dense<0.000000e+00> : vector<4x96xf32>
    %486 = tpu.matmul %482, %4, %cst_118 {dimension_numbers = #tpu.dot_dimension_numbers<[1], [0], [0], [1], [0, 0, 1, 1], [], []>} : vector<4x32xf32>, vector<32x96xf32>, vector<4x96xf32> -> vector<4x96xf32>
    %487 = vector.broadcast %6 : vector<1x96xf32> to vector<4x96xf32>
    %488 = arith.addf %486, %487 : vector<4x96xf32>
    %c5 = arith.constant 5 : index
    %c0_119 = arith.constant 0 : index
    %c0_120 = arith.constant 0 : index
    %489 = vector.load %arg2[%c5, %c0_119, %c0_120] : memref<16x4x96xbf16, #tpu.memory_space<vmem>>, vector<1x4x96xbf16>
    %490 = vector.shape_cast %489 : vector<1x4x96xbf16> to vector<4x96xbf16>
    %491 = arith.extf %490 : vector<4x96xbf16> to vector<4x96xf32>
    %c10 = arith.constant 10 : index
    %c0_121 = arith.constant 0 : index
    %c0_122 = arith.constant 0 : index
    %492 = vector.load %arg3[%c10, %c0_121, %c0_122] : memref<16x4x96xbf16, #tpu.memory_space<vmem>>, vector<1x4x96xbf16>
    %493 = vector.shape_cast %492 : vector<1x4x96xbf16> to vector<4x96xbf16>
    %494 = arith.extf %493 : vector<4x96xbf16> to vector<4x96xf32>
    %495 = vector.extract_strided_slice %491 {offsets = [0, 0], sizes = [4, 32], strides = [1, 1]} : vector<4x96xf32> to vector<4x32xf32>
    %496 = vector.extract_strided_slice %485 {offsets = [0, 0], sizes = [4, 32], strides = [1, 1]} : vector<4x96xf32> to vector<4x32xf32>
    %497 = arith.addf %495, %496 : vector<4x32xf32>
    %498 = arith.negf %497 : vector<4x32xf32>
    %499 = math.exp %498 : vector<4x32xf32>
    %cst_123 = arith.constant 1.000000e+00 : f32
    %500 = vector.broadcast %cst_123 : f32 to vector<4x32xf32>
    %501 = arith.addf %500, %499 : vector<4x32xf32>
    %502 = arith.divf %500, %501 : vector<4x32xf32>
    %503 = vector.extract_strided_slice %491 {offsets = [0, 32], sizes = [4, 32], strides = [1, 1]} : vector<4x96xf32> to vector<4x32xf32>
    %504 = vector.extract_strided_slice %485 {offsets = [0, 32], sizes = [4, 32], strides = [1, 1]} : vector<4x96xf32> to vector<4x32xf32>
    %505 = arith.addf %503, %504 : vector<4x32xf32>
    %506 = arith.negf %505 : vector<4x32xf32>
    %507 = math.exp %506 : vector<4x32xf32>
    %cst_124 = arith.constant 1.000000e+00 : f32
    %508 = vector.broadcast %cst_124 : f32 to vector<4x32xf32>
    %509 = arith.addf %508, %507 : vector<4x32xf32>
    %510 = arith.divf %508, %509 : vector<4x32xf32>
    %511 = vector.extract_strided_slice %491 {offsets = [0, 64], sizes = [4, 32], strides = [1, 1]} : vector<4x96xf32> to vector<4x32xf32>
    %512 = vector.extract_strided_slice %485 {offsets = [0, 64], sizes = [4, 32], strides = [1, 1]} : vector<4x96xf32> to vector<4x32xf32>
    %513 = arith.mulf %502, %512 : vector<4x32xf32>
    %514 = arith.addf %511, %513 : vector<4x32xf32>
    %515 = math.tanh %514 : vector<4x32xf32>
    %cst_125 = arith.constant 1.000000e+00 : f32
    %516 = vector.broadcast %cst_125 : f32 to vector<4x32xf32>
    %517 = arith.subf %516, %510 : vector<4x32xf32>
    %518 = arith.mulf %517, %515 : vector<4x32xf32>
    %519 = arith.mulf %510, %477 : vector<4x32xf32>
    %520 = arith.addf %518, %519 : vector<4x32xf32>
    %521 = vector.extract_strided_slice %494 {offsets = [0, 0], sizes = [4, 32], strides = [1, 1]} : vector<4x96xf32> to vector<4x32xf32>
    %522 = vector.extract_strided_slice %488 {offsets = [0, 0], sizes = [4, 32], strides = [1, 1]} : vector<4x96xf32> to vector<4x32xf32>
    %523 = arith.addf %521, %522 : vector<4x32xf32>
    %524 = arith.negf %523 : vector<4x32xf32>
    %525 = math.exp %524 : vector<4x32xf32>
    %cst_126 = arith.constant 1.000000e+00 : f32
    %526 = vector.broadcast %cst_126 : f32 to vector<4x32xf32>
    %527 = arith.addf %526, %525 : vector<4x32xf32>
    %528 = arith.divf %526, %527 : vector<4x32xf32>
    %529 = vector.extract_strided_slice %494 {offsets = [0, 32], sizes = [4, 32], strides = [1, 1]} : vector<4x96xf32> to vector<4x32xf32>
    %530 = vector.extract_strided_slice %488 {offsets = [0, 32], sizes = [4, 32], strides = [1, 1]} : vector<4x96xf32> to vector<4x32xf32>
    %531 = arith.addf %529, %530 : vector<4x32xf32>
    %532 = arith.negf %531 : vector<4x32xf32>
    %533 = math.exp %532 : vector<4x32xf32>
    %cst_127 = arith.constant 1.000000e+00 : f32
    %534 = vector.broadcast %cst_127 : f32 to vector<4x32xf32>
    %535 = arith.addf %534, %533 : vector<4x32xf32>
    %536 = arith.divf %534, %535 : vector<4x32xf32>
    %537 = vector.extract_strided_slice %494 {offsets = [0, 64], sizes = [4, 32], strides = [1, 1]} : vector<4x96xf32> to vector<4x32xf32>
    %538 = vector.extract_strided_slice %488 {offsets = [0, 64], sizes = [4, 32], strides = [1, 1]} : vector<4x96xf32> to vector<4x32xf32>
    %539 = arith.mulf %528, %538 : vector<4x32xf32>
    %540 = arith.addf %537, %539 : vector<4x32xf32>
    %541 = math.tanh %540 : vector<4x32xf32>
    %cst_128 = arith.constant 1.000000e+00 : f32
    %542 = vector.broadcast %cst_128 : f32 to vector<4x32xf32>
    %543 = arith.subf %542, %536 : vector<4x32xf32>
    %544 = arith.mulf %543, %541 : vector<4x32xf32>
    %545 = arith.mulf %536, %482 : vector<4x32xf32>
    %546 = arith.addf %544, %545 : vector<4x32xf32>
    %c5_i32 = arith.constant 5 : i32
    %547 = arith.addi %8, %c5_i32 : i32
    %548 = vector.broadcast %547 : i32 to vector<4x1xi32>
    %549 = arith.cmpi sgt, %7, %548 : vector<4x1xi32>
    %550 = arith.extui %549 : vector<4x1xi1> to vector<4x1xi32>
    %551 = arith.sitofp %550 : vector<4x1xi32> to vector<4x1xf32>
    %c10_i32 = arith.constant 10 : i32
    %552 = arith.addi %10, %c10_i32 : i32
    %553 = vector.broadcast %552 : i32 to vector<4x1xi32>
    %554 = arith.cmpi sgt, %7, %553 : vector<4x1xi32>
    %555 = arith.extui %554 : vector<4x1xi1> to vector<4x1xi32>
    %556 = arith.sitofp %555 : vector<4x1xi32> to vector<4x1xf32>
    %557 = vector.broadcast %551 : vector<4x1xf32> to vector<4x32xf32>
    %558 = arith.mulf %557, %520 : vector<4x32xf32>
    %559 = vector.broadcast %556 : vector<4x1xf32> to vector<4x32xf32>
    %560 = arith.mulf %559, %546 : vector<4x32xf32>
    %c0_129 = arith.constant 0 : index
    %c5_130 = arith.constant 5 : index
    %c0_131 = arith.constant 0 : index
    %561 = vector.load %arg13[%c0_129, %c5_130, %c0_131] : memref<4x16x32xf32, #tpu.memory_space<vmem>>, vector<4x1x32xf32>
    %562 = vector.shape_cast %561 : vector<4x1x32xf32> to vector<4x32xf32>
    %563 = vector.shape_cast %558 : vector<4x32xf32> to vector<4x1x32xf32>
    tpu.vector_store %arg13[%c0_129, %c5_130, %c0_131], %563 {strides = array<i32>} : memref<4x16x32xf32, #tpu.memory_space<vmem>>, vector<4x1x32xf32>,
    %c0_132 = arith.constant 0 : index
    %c10_133 = arith.constant 10 : index
    %c0_134 = arith.constant 0 : index
    %564 = vector.load %arg14[%c0_132, %c10_133, %c0_134] : memref<4x16x32xf32, #tpu.memory_space<vmem>>, vector<4x1x32xf32>
    %565 = vector.shape_cast %564 : vector<4x1x32xf32> to vector<4x32xf32>
    %566 = vector.shape_cast %560 : vector<4x32xf32> to vector<4x1x32xf32>
    tpu.vector_store %arg14[%c0_132, %c10_133, %c0_134], %566 {strides = array<i32>} : memref<4x16x32xf32, #tpu.memory_space<vmem>>, vector<4x1x32xf32>,
    %cst_135 = arith.constant 1.000000e+00 : f32
    %567 = vector.broadcast %cst_135 : f32 to vector<4x1xf32>
    %568 = arith.subf %567, %551 : vector<4x1xf32>
    %569 = vector.broadcast %568 : vector<4x1xf32> to vector<4x32xf32>
    %570 = arith.mulf %569, %477 : vector<4x32xf32>
    %571 = arith.addf %558, %570 : vector<4x32xf32>
    %cst_136 = arith.constant 1.000000e+00 : f32
    %572 = vector.broadcast %cst_136 : f32 to vector<4x1xf32>
    %573 = arith.subf %572, %556 : vector<4x1xf32>
    %574 = vector.broadcast %573 : vector<4x1xf32> to vector<4x32xf32>
    %575 = arith.mulf %574, %482 : vector<4x32xf32>
    %576 = arith.addf %560, %575 : vector<4x32xf32>
    %cst_137 = arith.constant dense<0.000000e+00> : vector<4x96xf32>
    %577 = tpu.matmul %571, %3, %cst_137 {dimension_numbers = #tpu.dot_dimension_numbers<[1], [0], [0], [1], [0, 0, 1, 1], [], []>} : vector<4x32xf32>, vector<32x96xf32>, vector<4x96xf32> -> vector<4x96xf32>
    %578 = vector.broadcast %5 : vector<1x96xf32> to vector<4x96xf32>
    %579 = arith.addf %577, %578 : vector<4x96xf32>
    %cst_138 = arith.constant dense<0.000000e+00> : vector<4x96xf32>
    %580 = tpu.matmul %576, %4, %cst_138 {dimension_numbers = #tpu.dot_dimension_numbers<[1], [0], [0], [1], [0, 0, 1, 1], [], []>} : vector<4x32xf32>, vector<32x96xf32>, vector<4x96xf32> -> vector<4x96xf32>
    %581 = vector.broadcast %6 : vector<1x96xf32> to vector<4x96xf32>
    %582 = arith.addf %580, %581 : vector<4x96xf32>
    %c6 = arith.constant 6 : index
    %c0_139 = arith.constant 0 : index
    %c0_140 = arith.constant 0 : index
    %583 = vector.load %arg2[%c6, %c0_139, %c0_140] : memref<16x4x96xbf16, #tpu.memory_space<vmem>>, vector<1x4x96xbf16>
    %584 = vector.shape_cast %583 : vector<1x4x96xbf16> to vector<4x96xbf16>
    %585 = arith.extf %584 : vector<4x96xbf16> to vector<4x96xf32>
    %c9 = arith.constant 9 : index
    %c0_141 = arith.constant 0 : index
    %c0_142 = arith.constant 0 : index
    %586 = vector.load %arg3[%c9, %c0_141, %c0_142] : memref<16x4x96xbf16, #tpu.memory_space<vmem>>, vector<1x4x96xbf16>
    %587 = vector.shape_cast %586 : vector<1x4x96xbf16> to vector<4x96xbf16>
    %588 = arith.extf %587 : vector<4x96xbf16> to vector<4x96xf32>
    %589 = vector.extract_strided_slice %585 {offsets = [0, 0], sizes = [4, 32], strides = [1, 1]} : vector<4x96xf32> to vector<4x32xf32>
    %590 = vector.extract_strided_slice %579 {offsets = [0, 0], sizes = [4, 32], strides = [1, 1]} : vector<4x96xf32> to vector<4x32xf32>
    %591 = arith.addf %589, %590 : vector<4x32xf32>
    %592 = arith.negf %591 : vector<4x32xf32>
    %593 = math.exp %592 : vector<4x32xf32>
    %cst_143 = arith.constant 1.000000e+00 : f32
    %594 = vector.broadcast %cst_143 : f32 to vector<4x32xf32>
    %595 = arith.addf %594, %593 : vector<4x32xf32>
    %596 = arith.divf %594, %595 : vector<4x32xf32>
    %597 = vector.extract_strided_slice %585 {offsets = [0, 32], sizes = [4, 32], strides = [1, 1]} : vector<4x96xf32> to vector<4x32xf32>
    %598 = vector.extract_strided_slice %579 {offsets = [0, 32], sizes = [4, 32], strides = [1, 1]} : vector<4x96xf32> to vector<4x32xf32>
    %599 = arith.addf %597, %598 : vector<4x32xf32>
    %600 = arith.negf %599 : vector<4x32xf32>
    %601 = math.exp %600 : vector<4x32xf32>
    %cst_144 = arith.constant 1.000000e+00 : f32
    %602 = vector.broadcast %cst_144 : f32 to vector<4x32xf32>
    %603 = arith.addf %602, %601 : vector<4x32xf32>
    %604 = arith.divf %602, %603 : vector<4x32xf32>
    %605 = vector.extract_strided_slice %585 {offsets = [0, 64], sizes = [4, 32], strides = [1, 1]} : vector<4x96xf32> to vector<4x32xf32>
    %606 = vector.extract_strided_slice %579 {offsets = [0, 64], sizes = [4, 32], strides = [1, 1]} : vector<4x96xf32> to vector<4x32xf32>
    %607 = arith.mulf %596, %606 : vector<4x32xf32>
    %608 = arith.addf %605, %607 : vector<4x32xf32>
    %609 = math.tanh %608 : vector<4x32xf32>
    %cst_145 = arith.constant 1.000000e+00 : f32
    %610 = vector.broadcast %cst_145 : f32 to vector<4x32xf32>
    %611 = arith.subf %610, %604 : vector<4x32xf32>
    %612 = arith.mulf %611, %609 : vector<4x32xf32>
    %613 = arith.mulf %604, %571 : vector<4x32xf32>
    %614 = arith.addf %612, %613 : vector<4x32xf32>
    %615 = vector.extract_strided_slice %588 {offsets = [0, 0], sizes = [4, 32], strides = [1, 1]} : vector<4x96xf32> to vector<4x32xf32>
    %616 = vector.extract_strided_slice %582 {offsets = [0, 0], sizes = [4, 32], strides = [1, 1]} : vector<4x96xf32> to vector<4x32xf32>
    %617 = arith.addf %615, %616 : vector<4x32xf32>
    %618 = arith.negf %617 : vector<4x32xf32>
    %619 = math.exp %618 : vector<4x32xf32>
    %cst_146 = arith.constant 1.000000e+00 : f32
    %620 = vector.broadcast %cst_146 : f32 to vector<4x32xf32>
    %621 = arith.addf %620, %619 : vector<4x32xf32>
    %622 = arith.divf %620, %621 : vector<4x32xf32>
    %623 = vector.extract_strided_slice %588 {offsets = [0, 32], sizes = [4, 32], strides = [1, 1]} : vector<4x96xf32> to vector<4x32xf32>
    %624 = vector.extract_strided_slice %582 {offsets = [0, 32], sizes = [4, 32], strides = [1, 1]} : vector<4x96xf32> to vector<4x32xf32>
    %625 = arith.addf %623, %624 : vector<4x32xf32>
    %626 = arith.negf %625 : vector<4x32xf32>
    %627 = math.exp %626 : vector<4x32xf32>
    %cst_147 = arith.constant 1.000000e+00 : f32
    %628 = vector.broadcast %cst_147 : f32 to vector<4x32xf32>
    %629 = arith.addf %628, %627 : vector<4x32xf32>
    %630 = arith.divf %628, %629 : vector<4x32xf32>
    %631 = vector.extract_strided_slice %588 {offsets = [0, 64], sizes = [4, 32], strides = [1, 1]} : vector<4x96xf32> to vector<4x32xf32>
    %632 = vector.extract_strided_slice %582 {offsets = [0, 64], sizes = [4, 32], strides = [1, 1]} : vector<4x96xf32> to vector<4x32xf32>
    %633 = arith.mulf %622, %632 : vector<4x32xf32>
    %634 = arith.addf %631, %633 : vector<4x32xf32>
    %635 = math.tanh %634 : vector<4x32xf32>
    %cst_148 = arith.constant 1.000000e+00 : f32
    %636 = vector.broadcast %cst_148 : f32 to vector<4x32xf32>
    %637 = arith.subf %636, %630 : vector<4x32xf32>
    %638 = arith.mulf %637, %635 : vector<4x32xf32>
    %639 = arith.mulf %630, %576 : vector<4x32xf32>
    %640 = arith.addf %638, %639 : vector<4x32xf32>
    %c6_i32 = arith.constant 6 : i32
    %641 = arith.addi %8, %c6_i32 : i32
    %642 = vector.broadcast %641 : i32 to vector<4x1xi32>
    %643 = arith.cmpi sgt, %7, %642 : vector<4x1xi32>
    %644 = arith.extui %643 : vector<4x1xi1> to vector<4x1xi32>
    %645 = arith.sitofp %644 : vector<4x1xi32> to vector<4x1xf32>
    %c9_i32 = arith.constant 9 : i32
    %646 = arith.addi %10, %c9_i32 : i32
    %647 = vector.broadcast %646 : i32 to vector<4x1xi32>
    %648 = arith.cmpi sgt, %7, %647 : vector<4x1xi32>
    %649 = arith.extui %648 : vector<4x1xi1> to vector<4x1xi32>
    %650 = arith.sitofp %649 : vector<4x1xi32> to vector<4x1xf32>
    %651 = vector.broadcast %645 : vector<4x1xf32> to vector<4x32xf32>
    %652 = arith.mulf %651, %614 : vector<4x32xf32>
    %653 = vector.broadcast %650 : vector<4x1xf32> to vector<4x32xf32>
    %654 = arith.mulf %653, %640 : vector<4x32xf32>
    %c0_149 = arith.constant 0 : index
    %c6_150 = arith.constant 6 : index
    %c0_151 = arith.constant 0 : index
    %655 = vector.load %arg13[%c0_149, %c6_150, %c0_151] : memref<4x16x32xf32, #tpu.memory_space<vmem>>, vector<4x1x32xf32>
    %656 = vector.shape_cast %655 : vector<4x1x32xf32> to vector<4x32xf32>
    %657 = vector.shape_cast %652 : vector<4x32xf32> to vector<4x1x32xf32>
    tpu.vector_store %arg13[%c0_149, %c6_150, %c0_151], %657 {strides = array<i32>} : memref<4x16x32xf32, #tpu.memory_space<vmem>>, vector<4x1x32xf32>,
    %c0_152 = arith.constant 0 : index
    %c9_153 = arith.constant 9 : index
    %c0_154 = arith.constant 0 : index
    %658 = vector.load %arg14[%c0_152, %c9_153, %c0_154] : memref<4x16x32xf32, #tpu.memory_space<vmem>>, vector<4x1x32xf32>
    %659 = vector.shape_cast %658 : vector<4x1x32xf32> to vector<4x32xf32>
    %660 = vector.shape_cast %654 : vector<4x32xf32> to vector<4x1x32xf32>
    tpu.vector_store %arg14[%c0_152, %c9_153, %c0_154], %660 {strides = array<i32>} : memref<4x16x32xf32, #tpu.memory_space<vmem>>, vector<4x1x32xf32>,
    %cst_155 = arith.constant 1.000000e+00 : f32
    %661 = vector.broadcast %cst_155 : f32 to vector<4x1xf32>
    %662 = arith.subf %661, %645 : vector<4x1xf32>
    %663 = vector.broadcast %662 : vector<4x1xf32> to vector<4x32xf32>
    %664 = arith.mulf %663, %571 : vector<4x32xf32>
    %665 = arith.addf %652, %664 : vector<4x32xf32>
    %cst_156 = arith.constant 1.000000e+00 : f32
    %666 = vector.broadcast %cst_156 : f32 to vector<4x1xf32>
    %667 = arith.subf %666, %650 : vector<4x1xf32>
    %668 = vector.broadcast %667 : vector<4x1xf32> to vector<4x32xf32>
    %669 = arith.mulf %668, %576 : vector<4x32xf32>
    %670 = arith.addf %654, %669 : vector<4x32xf32>
    %cst_157 = arith.constant dense<0.000000e+00> : vector<4x96xf32>
    %671 = tpu.matmul %665, %3, %cst_157 {dimension_numbers = #tpu.dot_dimension_numbers<[1], [0], [0], [1], [0, 0, 1, 1], [], []>} : vector<4x32xf32>, vector<32x96xf32>, vector<4x96xf32> -> vector<4x96xf32>
    %672 = vector.broadcast %5 : vector<1x96xf32> to vector<4x96xf32>
    %673 = arith.addf %671, %672 : vector<4x96xf32>
    %cst_158 = arith.constant dense<0.000000e+00> : vector<4x96xf32>
    %674 = tpu.matmul %670, %4, %cst_158 {dimension_numbers = #tpu.dot_dimension_numbers<[1], [0], [0], [1], [0, 0, 1, 1], [], []>} : vector<4x32xf32>, vector<32x96xf32>, vector<4x96xf32> -> vector<4x96xf32>
    %675 = vector.broadcast %6 : vector<1x96xf32> to vector<4x96xf32>
    %676 = arith.addf %674, %675 : vector<4x96xf32>
    %c7 = arith.constant 7 : index
    %c0_159 = arith.constant 0 : index
    %c0_160 = arith.constant 0 : index
    %677 = vector.load %arg2[%c7, %c0_159, %c0_160] : memref<16x4x96xbf16, #tpu.memory_space<vmem>>, vector<1x4x96xbf16>
    %678 = vector.shape_cast %677 : vector<1x4x96xbf16> to vector<4x96xbf16>
    %679 = arith.extf %678 : vector<4x96xbf16> to vector<4x96xf32>
    %c8 = arith.constant 8 : index
    %c0_161 = arith.constant 0 : index
    %c0_162 = arith.constant 0 : index
    %680 = vector.load %arg3[%c8, %c0_161, %c0_162] : memref<16x4x96xbf16, #tpu.memory_space<vmem>>, vector<1x4x96xbf16>
    %681 = vector.shape_cast %680 : vector<1x4x96xbf16> to vector<4x96xbf16>
    %682 = arith.extf %681 : vector<4x96xbf16> to vector<4x96xf32>
    %683 = vector.extract_strided_slice %679 {offsets = [0, 0], sizes = [4, 32], strides = [1, 1]} : vector<4x96xf32> to vector<4x32xf32>
    %684 = vector.extract_strided_slice %673 {offsets = [0, 0], sizes = [4, 32], strides = [1, 1]} : vector<4x96xf32> to vector<4x32xf32>
    %685 = arith.addf %683, %684 : vector<4x32xf32>
    %686 = arith.negf %685 : vector<4x32xf32>
    %687 = math.exp %686 : vector<4x32xf32>
    %cst_163 = arith.constant 1.000000e+00 : f32
    %688 = vector.broadcast %cst_163 : f32 to vector<4x32xf32>
    %689 = arith.addf %688, %687 : vector<4x32xf32>
    %690 = arith.divf %688, %689 : vector<4x32xf32>
    %691 = vector.extract_strided_slice %679 {offsets = [0, 32], sizes = [4, 32], strides = [1, 1]} : vector<4x96xf32> to vector<4x32xf32>
    %692 = vector.extract_strided_slice %673 {offsets = [0, 32], sizes = [4, 32], strides = [1, 1]} : vector<4x96xf32> to vector<4x32xf32>
    %693 = arith.addf %691, %692 : vector<4x32xf32>
    %694 = arith.negf %693 : vector<4x32xf32>
    %695 = math.exp %694 : vector<4x32xf32>
    %cst_164 = arith.constant 1.000000e+00 : f32
    %696 = vector.broadcast %cst_164 : f32 to vector<4x32xf32>
    %697 = arith.addf %696, %695 : vector<4x32xf32>
    %698 = arith.divf %696, %697 : vector<4x32xf32>
    %699 = vector.extract_strided_slice %679 {offsets = [0, 64], sizes = [4, 32], strides = [1, 1]} : vector<4x96xf32> to vector<4x32xf32>
    %700 = vector.extract_strided_slice %673 {offsets = [0, 64], sizes = [4, 32], strides = [1, 1]} : vector<4x96xf32> to vector<4x32xf32>
    %701 = arith.mulf %690, %700 : vector<4x32xf32>
    %702 = arith.addf %699, %701 : vector<4x32xf32>
    %703 = math.tanh %702 : vector<4x32xf32>
    %cst_165 = arith.constant 1.000000e+00 : f32
    %704 = vector.broadcast %cst_165 : f32 to vector<4x32xf32>
    %705 = arith.subf %704, %698 : vector<4x32xf32>
    %706 = arith.mulf %705, %703 : vector<4x32xf32>
    %707 = arith.mulf %698, %665 : vector<4x32xf32>
    %708 = arith.addf %706, %707 : vector<4x32xf32>
    %709 = vector.extract_strided_slice %682 {offsets = [0, 0], sizes = [4, 32], strides = [1, 1]} : vector<4x96xf32> to vector<4x32xf32>
    %710 = vector.extract_strided_slice %676 {offsets = [0, 0], sizes = [4, 32], strides = [1, 1]} : vector<4x96xf32> to vector<4x32xf32>
    %711 = arith.addf %709, %710 : vector<4x32xf32>
    %712 = arith.negf %711 : vector<4x32xf32>
    %713 = math.exp %712 : vector<4x32xf32>
    %cst_166 = arith.constant 1.000000e+00 : f32
    %714 = vector.broadcast %cst_166 : f32 to vector<4x32xf32>
    %715 = arith.addf %714, %713 : vector<4x32xf32>
    %716 = arith.divf %714, %715 : vector<4x32xf32>
    %717 = vector.extract_strided_slice %682 {offsets = [0, 32], sizes = [4, 32], strides = [1, 1]} : vector<4x96xf32> to vector<4x32xf32>
    %718 = vector.extract_strided_slice %676 {offsets = [0, 32], sizes = [4, 32], strides = [1, 1]} : vector<4x96xf32> to vector<4x32xf32>
    %719 = arith.addf %717, %718 : vector<4x32xf32>
    %720 = arith.negf %719 : vector<4x32xf32>
    %721 = math.exp %720 : vector<4x32xf32>
    %cst_167 = arith.constant 1.000000e+00 : f32
    %722 = vector.broadcast %cst_167 : f32 to vector<4x32xf32>
    %723 = arith.addf %722, %721 : vector<4x32xf32>
    %724 = arith.divf %722, %723 : vector<4x32xf32>
    %725 = vector.extract_strided_slice %682 {offsets = [0, 64], sizes = [4, 32], strides = [1, 1]} : vector<4x96xf32> to vector<4x32xf32>
    %726 = vector.extract_strided_slice %676 {offsets = [0, 64], sizes = [4, 32], strides = [1, 1]} : vector<4x96xf32> to vector<4x32xf32>
    %727 = arith.mulf %716, %726 : vector<4x32xf32>
    %728 = arith.addf %725, %727 : vector<4x32xf32>
    %729 = math.tanh %728 : vector<4x32xf32>
    %cst_168 = arith.constant 1.000000e+00 : f32
    %730 = vector.broadcast %cst_168 : f32 to vector<4x32xf32>
    %731 = arith.subf %730, %724 : vector<4x32xf32>
    %732 = arith.mulf %731, %729 : vector<4x32xf32>
    %733 = arith.mulf %724, %670 : vector<4x32xf32>
    %734 = arith.addf %732, %733 : vector<4x32xf32>
    %c7_i32 = arith.constant 7 : i32
    %735 = arith.addi %8, %c7_i32 : i32
    %736 = vector.broadcast %735 : i32 to vector<4x1xi32>
    %737 = arith.cmpi sgt, %7, %736 : vector<4x1xi32>
    %738 = arith.extui %737 : vector<4x1xi1> to vector<4x1xi32>
    %739 = arith.sitofp %738 : vector<4x1xi32> to vector<4x1xf32>
    %c8_i32 = arith.constant 8 : i32
    %740 = arith.addi %10, %c8_i32 : i32
    %741 = vector.broadcast %740 : i32 to vector<4x1xi32>
    %742 = arith.cmpi sgt, %7, %741 : vector<4x1xi32>
    %743 = arith.extui %742 : vector<4x1xi1> to vector<4x1xi32>
    %744 = arith.sitofp %743 : vector<4x1xi32> to vector<4x1xf32>
    %745 = vector.broadcast %739 : vector<4x1xf32> to vector<4x32xf32>
    %746 = arith.mulf %745, %708 : vector<4x32xf32>
    %747 = vector.broadcast %744 : vector<4x1xf32> to vector<4x32xf32>
    %748 = arith.mulf %747, %734 : vector<4x32xf32>
    %c0_169 = arith.constant 0 : index
    %c7_170 = arith.constant 7 : index
    %c0_171 = arith.constant 0 : index
    %749 = vector.load %arg13[%c0_169, %c7_170, %c0_171] : memref<4x16x32xf32, #tpu.memory_space<vmem>>, vector<4x1x32xf32>
    %750 = vector.shape_cast %749 : vector<4x1x32xf32> to vector<4x32xf32>
    %751 = vector.shape_cast %746 : vector<4x32xf32> to vector<4x1x32xf32>
    tpu.vector_store %arg13[%c0_169, %c7_170, %c0_171], %751 {strides = array<i32>} : memref<4x16x32xf32, #tpu.memory_space<vmem>>, vector<4x1x32xf32>,
    %c0_172 = arith.constant 0 : index
    %c8_173 = arith.constant 8 : index
    %c0_174 = arith.constant 0 : index
    %752 = vector.load %arg14[%c0_172, %c8_173, %c0_174] : memref<4x16x32xf32, #tpu.memory_space<vmem>>, vector<4x1x32xf32>
    %753 = vector.shape_cast %752 : vector<4x1x32xf32> to vector<4x32xf32>
    %754 = vector.shape_cast %748 : vector<4x32xf32> to vector<4x1x32xf32>
    tpu.vector_store %arg14[%c0_172, %c8_173, %c0_174], %754 {strides = array<i32>} : memref<4x16x32xf32, #tpu.memory_space<vmem>>, vector<4x1x32xf32>,
    %cst_175 = arith.constant 1.000000e+00 : f32
    %755 = vector.broadcast %cst_175 : f32 to vector<4x1xf32>
    %756 = arith.subf %755, %739 : vector<4x1xf32>
    %757 = vector.broadcast %756 : vector<4x1xf32> to vector<4x32xf32>
    %758 = arith.mulf %757, %665 : vector<4x32xf32>
    %759 = arith.addf %746, %758 : vector<4x32xf32>
    %cst_176 = arith.constant 1.000000e+00 : f32
    %760 = vector.broadcast %cst_176 : f32 to vector<4x1xf32>
    %761 = arith.subf %760, %744 : vector<4x1xf32>
    %762 = vector.broadcast %761 : vector<4x1xf32> to vector<4x32xf32>
    %763 = arith.mulf %762, %670 : vector<4x32xf32>
    %764 = arith.addf %748, %763 : vector<4x32xf32>
    %cst_177 = arith.constant dense<0.000000e+00> : vector<4x96xf32>
    %765 = tpu.matmul %759, %3, %cst_177 {dimension_numbers = #tpu.dot_dimension_numbers<[1], [0], [0], [1], [0, 0, 1, 1], [], []>} : vector<4x32xf32>, vector<32x96xf32>, vector<4x96xf32> -> vector<4x96xf32>
    %766 = vector.broadcast %5 : vector<1x96xf32> to vector<4x96xf32>
    %767 = arith.addf %765, %766 : vector<4x96xf32>
    %cst_178 = arith.constant dense<0.000000e+00> : vector<4x96xf32>
    %768 = tpu.matmul %764, %4, %cst_178 {dimension_numbers = #tpu.dot_dimension_numbers<[1], [0], [0], [1], [0, 0, 1, 1], [], []>} : vector<4x32xf32>, vector<32x96xf32>, vector<4x96xf32> -> vector<4x96xf32>
    %769 = vector.broadcast %6 : vector<1x96xf32> to vector<4x96xf32>
    %770 = arith.addf %768, %769 : vector<4x96xf32>
    %c8_179 = arith.constant 8 : index
    %c0_180 = arith.constant 0 : index
    %c0_181 = arith.constant 0 : index
    %771 = vector.load %arg2[%c8_179, %c0_180, %c0_181] : memref<16x4x96xbf16, #tpu.memory_space<vmem>>, vector<1x4x96xbf16>
    %772 = vector.shape_cast %771 : vector<1x4x96xbf16> to vector<4x96xbf16>
    %773 = arith.extf %772 : vector<4x96xbf16> to vector<4x96xf32>
    %c7_182 = arith.constant 7 : index
    %c0_183 = arith.constant 0 : index
    %c0_184 = arith.constant 0 : index
    %774 = vector.load %arg3[%c7_182, %c0_183, %c0_184] : memref<16x4x96xbf16, #tpu.memory_space<vmem>>, vector<1x4x96xbf16>
    %775 = vector.shape_cast %774 : vector<1x4x96xbf16> to vector<4x96xbf16>
    %776 = arith.extf %775 : vector<4x96xbf16> to vector<4x96xf32>
    %777 = vector.extract_strided_slice %773 {offsets = [0, 0], sizes = [4, 32], strides = [1, 1]} : vector<4x96xf32> to vector<4x32xf32>
    %778 = vector.extract_strided_slice %767 {offsets = [0, 0], sizes = [4, 32], strides = [1, 1]} : vector<4x96xf32> to vector<4x32xf32>
    %779 = arith.addf %777, %778 : vector<4x32xf32>
    %780 = arith.negf %779 : vector<4x32xf32>
    %781 = math.exp %780 : vector<4x32xf32>
    %cst_185 = arith.constant 1.000000e+00 : f32
    %782 = vector.broadcast %cst_185 : f32 to vector<4x32xf32>
    %783 = arith.addf %782, %781 : vector<4x32xf32>
    %784 = arith.divf %782, %783 : vector<4x32xf32>
    %785 = vector.extract_strided_slice %773 {offsets = [0, 32], sizes = [4, 32], strides = [1, 1]} : vector<4x96xf32> to vector<4x32xf32>
    %786 = vector.extract_strided_slice %767 {offsets = [0, 32], sizes = [4, 32], strides = [1, 1]} : vector<4x96xf32> to vector<4x32xf32>
    %787 = arith.addf %785, %786 : vector<4x32xf32>
    %788 = arith.negf %787 : vector<4x32xf32>
    %789 = math.exp %788 : vector<4x32xf32>
    %cst_186 = arith.constant 1.000000e+00 : f32
    %790 = vector.broadcast %cst_186 : f32 to vector<4x32xf32>
    %791 = arith.addf %790, %789 : vector<4x32xf32>
    %792 = arith.divf %790, %791 : vector<4x32xf32>
    %793 = vector.extract_strided_slice %773 {offsets = [0, 64], sizes = [4, 32], strides = [1, 1]} : vector<4x96xf32> to vector<4x32xf32>
    %794 = vector.extract_strided_slice %767 {offsets = [0, 64], sizes = [4, 32], strides = [1, 1]} : vector<4x96xf32> to vector<4x32xf32>
    %795 = arith.mulf %784, %794 : vector<4x32xf32>
    %796 = arith.addf %793, %795 : vector<4x32xf32>
    %797 = math.tanh %796 : vector<4x32xf32>
    %cst_187 = arith.constant 1.000000e+00 : f32
    %798 = vector.broadcast %cst_187 : f32 to vector<4x32xf32>
    %799 = arith.subf %798, %792 : vector<4x32xf32>
    %800 = arith.mulf %799, %797 : vector<4x32xf32>
    %801 = arith.mulf %792, %759 : vector<4x32xf32>
    %802 = arith.addf %800, %801 : vector<4x32xf32>
    %803 = vector.extract_strided_slice %776 {offsets = [0, 0], sizes = [4, 32], strides = [1, 1]} : vector<4x96xf32> to vector<4x32xf32>
    %804 = vector.extract_strided_slice %770 {offsets = [0, 0], sizes = [4, 32], strides = [1, 1]} : vector<4x96xf32> to vector<4x32xf32>
    %805 = arith.addf %803, %804 : vector<4x32xf32>
    %806 = arith.negf %805 : vector<4x32xf32>
    %807 = math.exp %806 : vector<4x32xf32>
    %cst_188 = arith.constant 1.000000e+00 : f32
    %808 = vector.broadcast %cst_188 : f32 to vector<4x32xf32>
    %809 = arith.addf %808, %807 : vector<4x32xf32>
    %810 = arith.divf %808, %809 : vector<4x32xf32>
    %811 = vector.extract_strided_slice %776 {offsets = [0, 32], sizes = [4, 32], strides = [1, 1]} : vector<4x96xf32> to vector<4x32xf32>
    %812 = vector.extract_strided_slice %770 {offsets = [0, 32], sizes = [4, 32], strides = [1, 1]} : vector<4x96xf32> to vector<4x32xf32>
    %813 = arith.addf %811, %812 : vector<4x32xf32>
    %814 = arith.negf %813 : vector<4x32xf32>
    %815 = math.exp %814 : vector<4x32xf32>
    %cst_189 = arith.constant 1.000000e+00 : f32
    %816 = vector.broadcast %cst_189 : f32 to vector<4x32xf32>
    %817 = arith.addf %816, %815 : vector<4x32xf32>
    %818 = arith.divf %816, %817 : vector<4x32xf32>
    %819 = vector.extract_strided_slice %776 {offsets = [0, 64], sizes = [4, 32], strides = [1, 1]} : vector<4x96xf32> to vector<4x32xf32>
    %820 = vector.extract_strided_slice %770 {offsets = [0, 64], sizes = [4, 32], strides = [1, 1]} : vector<4x96xf32> to vector<4x32xf32>
    %821 = arith.mulf %810, %820 : vector<4x32xf32>
    %822 = arith.addf %819, %821 : vector<4x32xf32>
    %823 = math.tanh %822 : vector<4x32xf32>
    %cst_190 = arith.constant 1.000000e+00 : f32
    %824 = vector.broadcast %cst_190 : f32 to vector<4x32xf32>
    %825 = arith.subf %824, %818 : vector<4x32xf32>
    %826 = arith.mulf %825, %823 : vector<4x32xf32>
    %827 = arith.mulf %818, %764 : vector<4x32xf32>
    %828 = arith.addf %826, %827 : vector<4x32xf32>
    %c8_i32_191 = arith.constant 8 : i32
    %829 = arith.addi %8, %c8_i32_191 : i32
    %830 = vector.broadcast %829 : i32 to vector<4x1xi32>
    %831 = arith.cmpi sgt, %7, %830 : vector<4x1xi32>
    %832 = arith.extui %831 : vector<4x1xi1> to vector<4x1xi32>
    %833 = arith.sitofp %832 : vector<4x1xi32> to vector<4x1xf32>
    %c7_i32_192 = arith.constant 7 : i32
    %834 = arith.addi %10, %c7_i32_192 : i32
    %835 = vector.broadcast %834 : i32 to vector<4x1xi32>
    %836 = arith.cmpi sgt, %7, %835 : vector<4x1xi32>
    %837 = arith.extui %836 : vector<4x1xi1> to vector<4x1xi32>
    %838 = arith.sitofp %837 : vector<4x1xi32> to vector<4x1xf32>
    %839 = vector.broadcast %833 : vector<4x1xf32> to vector<4x32xf32>
    %840 = arith.mulf %839, %802 : vector<4x32xf32>
    %841 = vector.broadcast %838 : vector<4x1xf32> to vector<4x32xf32>
    %842 = arith.mulf %841, %828 : vector<4x32xf32>
    %c0_193 = arith.constant 0 : index
    %c8_194 = arith.constant 8 : index
    %c0_195 = arith.constant 0 : index
    %843 = vector.load %arg13[%c0_193, %c8_194, %c0_195] : memref<4x16x32xf32, #tpu.memory_space<vmem>>, vector<4x1x32xf32>
    %844 = vector.shape_cast %843 : vector<4x1x32xf32> to vector<4x32xf32>
    %845 = vector.shape_cast %840 : vector<4x32xf32> to vector<4x1x32xf32>
    tpu.vector_store %arg13[%c0_193, %c8_194, %c0_195], %845 {strides = array<i32>} : memref<4x16x32xf32, #tpu.memory_space<vmem>>, vector<4x1x32xf32>,
    %c0_196 = arith.constant 0 : index
    %c7_197 = arith.constant 7 : index
    %c0_198 = arith.constant 0 : index
    %846 = vector.load %arg14[%c0_196, %c7_197, %c0_198] : memref<4x16x32xf32, #tpu.memory_space<vmem>>, vector<4x1x32xf32>
    %847 = vector.shape_cast %846 : vector<4x1x32xf32> to vector<4x32xf32>
    %848 = vector.shape_cast %842 : vector<4x32xf32> to vector<4x1x32xf32>
    tpu.vector_store %arg14[%c0_196, %c7_197, %c0_198], %848 {strides = array<i32>} : memref<4x16x32xf32, #tpu.memory_space<vmem>>, vector<4x1x32xf32>,
    %cst_199 = arith.constant 1.000000e+00 : f32
    %849 = vector.broadcast %cst_199 : f32 to vector<4x1xf32>
    %850 = arith.subf %849, %833 : vector<4x1xf32>
    %851 = vector.broadcast %850 : vector<4x1xf32> to vector<4x32xf32>
    %852 = arith.mulf %851, %759 : vector<4x32xf32>
    %853 = arith.addf %840, %852 : vector<4x32xf32>
    %cst_200 = arith.constant 1.000000e+00 : f32
    %854 = vector.broadcast %cst_200 : f32 to vector<4x1xf32>
    %855 = arith.subf %854, %838 : vector<4x1xf32>
    %856 = vector.broadcast %855 : vector<4x1xf32> to vector<4x32xf32>
    %857 = arith.mulf %856, %764 : vector<4x32xf32>
    %858 = arith.addf %842, %857 : vector<4x32xf32>
    %cst_201 = arith.constant dense<0.000000e+00> : vector<4x96xf32>
    %859 = tpu.matmul %853, %3, %cst_201 {dimension_numbers = #tpu.dot_dimension_numbers<[1], [0], [0], [1], [0, 0, 1, 1], [], []>} : vector<4x32xf32>, vector<32x96xf32>, vector<4x96xf32> -> vector<4x96xf32>
    %860 = vector.broadcast %5 : vector<1x96xf32> to vector<4x96xf32>
    %861 = arith.addf %859, %860 : vector<4x96xf32>
    %cst_202 = arith.constant dense<0.000000e+00> : vector<4x96xf32>
    %862 = tpu.matmul %858, %4, %cst_202 {dimension_numbers = #tpu.dot_dimension_numbers<[1], [0], [0], [1], [0, 0, 1, 1], [], []>} : vector<4x32xf32>, vector<32x96xf32>, vector<4x96xf32> -> vector<4x96xf32>
    %863 = vector.broadcast %6 : vector<1x96xf32> to vector<4x96xf32>
    %864 = arith.addf %862, %863 : vector<4x96xf32>
    %c9_203 = arith.constant 9 : index
    %c0_204 = arith.constant 0 : index
    %c0_205 = arith.constant 0 : index
    %865 = vector.load %arg2[%c9_203, %c0_204, %c0_205] : memref<16x4x96xbf16, #tpu.memory_space<vmem>>, vector<1x4x96xbf16>
    %866 = vector.shape_cast %865 : vector<1x4x96xbf16> to vector<4x96xbf16>
    %867 = arith.extf %866 : vector<4x96xbf16> to vector<4x96xf32>
    %c6_206 = arith.constant 6 : index
    %c0_207 = arith.constant 0 : index
    %c0_208 = arith.constant 0 : index
    %868 = vector.load %arg3[%c6_206, %c0_207, %c0_208] : memref<16x4x96xbf16, #tpu.memory_space<vmem>>, vector<1x4x96xbf16>
    %869 = vector.shape_cast %868 : vector<1x4x96xbf16> to vector<4x96xbf16>
    %870 = arith.extf %869 : vector<4x96xbf16> to vector<4x96xf32>
    %871 = vector.extract_strided_slice %867 {offsets = [0, 0], sizes = [4, 32], strides = [1, 1]} : vector<4x96xf32> to vector<4x32xf32>
    %872 = vector.extract_strided_slice %861 {offsets = [0, 0], sizes = [4, 32], strides = [1, 1]} : vector<4x96xf32> to vector<4x32xf32>
    %873 = arith.addf %871, %872 : vector<4x32xf32>
    %874 = arith.negf %873 : vector<4x32xf32>
    %875 = math.exp %874 : vector<4x32xf32>
    %cst_209 = arith.constant 1.000000e+00 : f32
    %876 = vector.broadcast %cst_209 : f32 to vector<4x32xf32>
    %877 = arith.addf %876, %875 : vector<4x32xf32>
    %878 = arith.divf %876, %877 : vector<4x32xf32>
    %879 = vector.extract_strided_slice %867 {offsets = [0, 32], sizes = [4, 32], strides = [1, 1]} : vector<4x96xf32> to vector<4x32xf32>
    %880 = vector.extract_strided_slice %861 {offsets = [0, 32], sizes = [4, 32], strides = [1, 1]} : vector<4x96xf32> to vector<4x32xf32>
    %881 = arith.addf %879, %880 : vector<4x32xf32>
    %882 = arith.negf %881 : vector<4x32xf32>
    %883 = math.exp %882 : vector<4x32xf32>
    %cst_210 = arith.constant 1.000000e+00 : f32
    %884 = vector.broadcast %cst_210 : f32 to vector<4x32xf32>
    %885 = arith.addf %884, %883 : vector<4x32xf32>
    %886 = arith.divf %884, %885 : vector<4x32xf32>
    %887 = vector.extract_strided_slice %867 {offsets = [0, 64], sizes = [4, 32], strides = [1, 1]} : vector<4x96xf32> to vector<4x32xf32>
    %888 = vector.extract_strided_slice %861 {offsets = [0, 64], sizes = [4, 32], strides = [1, 1]} : vector<4x96xf32> to vector<4x32xf32>
    %889 = arith.mulf %878, %888 : vector<4x32xf32>
    %890 = arith.addf %887, %889 : vector<4x32xf32>
    %891 = math.tanh %890 : vector<4x32xf32>
    %cst_211 = arith.constant 1.000000e+00 : f32
    %892 = vector.broadcast %cst_211 : f32 to vector<4x32xf32>
    %893 = arith.subf %892, %886 : vector<4x32xf32>
    %894 = arith.mulf %893, %891 : vector<4x32xf32>
    %895 = arith.mulf %886, %853 : vector<4x32xf32>
    %896 = arith.addf %894, %895 : vector<4x32xf32>
    %897 = vector.extract_strided_slice %870 {offsets = [0, 0], sizes = [4, 32], strides = [1, 1]} : vector<4x96xf32> to vector<4x32xf32>
    %898 = vector.extract_strided_slice %864 {offsets = [0, 0], sizes = [4, 32], strides = [1, 1]} : vector<4x96xf32> to vector<4x32xf32>
    %899 = arith.addf %897, %898 : vector<4x32xf32>
    %900 = arith.negf %899 : vector<4x32xf32>
    %901 = math.exp %900 : vector<4x32xf32>
    %cst_212 = arith.constant 1.000000e+00 : f32
    %902 = vector.broadcast %cst_212 : f32 to vector<4x32xf32>
    %903 = arith.addf %902, %901 : vector<4x32xf32>
    %904 = arith.divf %902, %903 : vector<4x32xf32>
    %905 = vector.extract_strided_slice %870 {offsets = [0, 32], sizes = [4, 32], strides = [1, 1]} : vector<4x96xf32> to vector<4x32xf32>
    %906 = vector.extract_strided_slice %864 {offsets = [0, 32], sizes = [4, 32], strides = [1, 1]} : vector<4x96xf32> to vector<4x32xf32>
    %907 = arith.addf %905, %906 : vector<4x32xf32>
    %908 = arith.negf %907 : vector<4x32xf32>
    %909 = math.exp %908 : vector<4x32xf32>
    %cst_213 = arith.constant 1.000000e+00 : f32
    %910 = vector.broadcast %cst_213 : f32 to vector<4x32xf32>
    %911 = arith.addf %910, %909 : vector<4x32xf32>
    %912 = arith.divf %910, %911 : vector<4x32xf32>
    %913 = vector.extract_strided_slice %870 {offsets = [0, 64], sizes = [4, 32], strides = [1, 1]} : vector<4x96xf32> to vector<4x32xf32>
    %914 = vector.extract_strided_slice %864 {offsets = [0, 64], sizes = [4, 32], strides = [1, 1]} : vector<4x96xf32> to vector<4x32xf32>
    %915 = arith.mulf %904, %914 : vector<4x32xf32>
    %916 = arith.addf %913, %915 : vector<4x32xf32>
    %917 = math.tanh %916 : vector<4x32xf32>
    %cst_214 = arith.constant 1.000000e+00 : f32
    %918 = vector.broadcast %cst_214 : f32 to vector<4x32xf32>
    %919 = arith.subf %918, %912 : vector<4x32xf32>
    %920 = arith.mulf %919, %917 : vector<4x32xf32>
    %921 = arith.mulf %912, %858 : vector<4x32xf32>
    %922 = arith.addf %920, %921 : vector<4x32xf32>
    %c9_i32_215 = arith.constant 9 : i32
    %923 = arith.addi %8, %c9_i32_215 : i32
    %924 = vector.broadcast %923 : i32 to vector<4x1xi32>
    %925 = arith.cmpi sgt, %7, %924 : vector<4x1xi32>
    %926 = arith.extui %925 : vector<4x1xi1> to vector<4x1xi32>
    %927 = arith.sitofp %926 : vector<4x1xi32> to vector<4x1xf32>
    %c6_i32_216 = arith.constant 6 : i32
    %928 = arith.addi %10, %c6_i32_216 : i32
    %929 = vector.broadcast %928 : i32 to vector<4x1xi32>
    %930 = arith.cmpi sgt, %7, %929 : vector<4x1xi32>
    %931 = arith.extui %930 : vector<4x1xi1> to vector<4x1xi32>
    %932 = arith.sitofp %931 : vector<4x1xi32> to vector<4x1xf32>
    %933 = vector.broadcast %927 : vector<4x1xf32> to vector<4x32xf32>
    %934 = arith.mulf %933, %896 : vector<4x32xf32>
    %935 = vector.broadcast %932 : vector<4x1xf32> to vector<4x32xf32>
    %936 = arith.mulf %935, %922 : vector<4x32xf32>
    %c0_217 = arith.constant 0 : index
    %c9_218 = arith.constant 9 : index
    %c0_219 = arith.constant 0 : index
    %937 = vector.load %arg13[%c0_217, %c9_218, %c0_219] : memref<4x16x32xf32, #tpu.memory_space<vmem>>, vector<4x1x32xf32>
    %938 = vector.shape_cast %937 : vector<4x1x32xf32> to vector<4x32xf32>
    %939 = vector.shape_cast %934 : vector<4x32xf32> to vector<4x1x32xf32>
    tpu.vector_store %arg13[%c0_217, %c9_218, %c0_219], %939 {strides = array<i32>} : memref<4x16x32xf32, #tpu.memory_space<vmem>>, vector<4x1x32xf32>,
    %c0_220 = arith.constant 0 : index
    %c6_221 = arith.constant 6 : index
    %c0_222 = arith.constant 0 : index
    %940 = vector.load %arg14[%c0_220, %c6_221, %c0_222] : memref<4x16x32xf32, #tpu.memory_space<vmem>>, vector<4x1x32xf32>
    %941 = vector.shape_cast %940 : vector<4x1x32xf32> to vector<4x32xf32>
    %942 = vector.shape_cast %936 : vector<4x32xf32> to vector<4x1x32xf32>
    tpu.vector_store %arg14[%c0_220, %c6_221, %c0_222], %942 {strides = array<i32>} : memref<4x16x32xf32, #tpu.memory_space<vmem>>, vector<4x1x32xf32>,
    %cst_223 = arith.constant 1.000000e+00 : f32
    %943 = vector.broadcast %cst_223 : f32 to vector<4x1xf32>
    %944 = arith.subf %943, %927 : vector<4x1xf32>
    %945 = vector.broadcast %944 : vector<4x1xf32> to vector<4x32xf32>
    %946 = arith.mulf %945, %853 : vector<4x32xf32>
    %947 = arith.addf %934, %946 : vector<4x32xf32>
    %cst_224 = arith.constant 1.000000e+00 : f32
    %948 = vector.broadcast %cst_224 : f32 to vector<4x1xf32>
    %949 = arith.subf %948, %932 : vector<4x1xf32>
    %950 = vector.broadcast %949 : vector<4x1xf32> to vector<4x32xf32>
    %951 = arith.mulf %950, %858 : vector<4x32xf32>
    %952 = arith.addf %936, %951 : vector<4x32xf32>
    %cst_225 = arith.constant dense<0.000000e+00> : vector<4x96xf32>
    %953 = tpu.matmul %947, %3, %cst_225 {dimension_numbers = #tpu.dot_dimension_numbers<[1], [0], [0], [1], [0, 0, 1, 1], [], []>} : vector<4x32xf32>, vector<32x96xf32>, vector<4x96xf32> -> vector<4x96xf32>
    %954 = vector.broadcast %5 : vector<1x96xf32> to vector<4x96xf32>
    %955 = arith.addf %953, %954 : vector<4x96xf32>
    %cst_226 = arith.constant dense<0.000000e+00> : vector<4x96xf32>
    %956 = tpu.matmul %952, %4, %cst_226 {dimension_numbers = #tpu.dot_dimension_numbers<[1], [0], [0], [1], [0, 0, 1, 1], [], []>} : vector<4x32xf32>, vector<32x96xf32>, vector<4x96xf32> -> vector<4x96xf32>
    %957 = vector.broadcast %6 : vector<1x96xf32> to vector<4x96xf32>
    %958 = arith.addf %956, %957 : vector<4x96xf32>
    %c10_227 = arith.constant 10 : index
    %c0_228 = arith.constant 0 : index
    %c0_229 = arith.constant 0 : index
    %959 = vector.load %arg2[%c10_227, %c0_228, %c0_229] : memref<16x4x96xbf16, #tpu.memory_space<vmem>>, vector<1x4x96xbf16>
    %960 = vector.shape_cast %959 : vector<1x4x96xbf16> to vector<4x96xbf16>
    %961 = arith.extf %960 : vector<4x96xbf16> to vector<4x96xf32>
    %c5_230 = arith.constant 5 : index
    %c0_231 = arith.constant 0 : index
    %c0_232 = arith.constant 0 : index
    %962 = vector.load %arg3[%c5_230, %c0_231, %c0_232] : memref<16x4x96xbf16, #tpu.memory_space<vmem>>, vector<1x4x96xbf16>
    %963 = vector.shape_cast %962 : vector<1x4x96xbf16> to vector<4x96xbf16>
    %964 = arith.extf %963 : vector<4x96xbf16> to vector<4x96xf32>
    %965 = vector.extract_strided_slice %961 {offsets = [0, 0], sizes = [4, 32], strides = [1, 1]} : vector<4x96xf32> to vector<4x32xf32>
    %966 = vector.extract_strided_slice %955 {offsets = [0, 0], sizes = [4, 32], strides = [1, 1]} : vector<4x96xf32> to vector<4x32xf32>
    %967 = arith.addf %965, %966 : vector<4x32xf32>
    %968 = arith.negf %967 : vector<4x32xf32>
    %969 = math.exp %968 : vector<4x32xf32>
    %cst_233 = arith.constant 1.000000e+00 : f32
    %970 = vector.broadcast %cst_233 : f32 to vector<4x32xf32>
    %971 = arith.addf %970, %969 : vector<4x32xf32>
    %972 = arith.divf %970, %971 : vector<4x32xf32>
    %973 = vector.extract_strided_slice %961 {offsets = [0, 32], sizes = [4, 32], strides = [1, 1]} : vector<4x96xf32> to vector<4x32xf32>
    %974 = vector.extract_strided_slice %955 {offsets = [0, 32], sizes = [4, 32], strides = [1, 1]} : vector<4x96xf32> to vector<4x32xf32>
    %975 = arith.addf %973, %974 : vector<4x32xf32>
    %976 = arith.negf %975 : vector<4x32xf32>
    %977 = math.exp %976 : vector<4x32xf32>
    %cst_234 = arith.constant 1.000000e+00 : f32
    %978 = vector.broadcast %cst_234 : f32 to vector<4x32xf32>
    %979 = arith.addf %978, %977 : vector<4x32xf32>
    %980 = arith.divf %978, %979 : vector<4x32xf32>
    %981 = vector.extract_strided_slice %961 {offsets = [0, 64], sizes = [4, 32], strides = [1, 1]} : vector<4x96xf32> to vector<4x32xf32>
    %982 = vector.extract_strided_slice %955 {offsets = [0, 64], sizes = [4, 32], strides = [1, 1]} : vector<4x96xf32> to vector<4x32xf32>
    %983 = arith.mulf %972, %982 : vector<4x32xf32>
    %984 = arith.addf %981, %983 : vector<4x32xf32>
    %985 = math.tanh %984 : vector<4x32xf32>
    %cst_235 = arith.constant 1.000000e+00 : f32
    %986 = vector.broadcast %cst_235 : f32 to vector<4x32xf32>
    %987 = arith.subf %986, %980 : vector<4x32xf32>
    %988 = arith.mulf %987, %985 : vector<4x32xf32>
    %989 = arith.mulf %980, %947 : vector<4x32xf32>
    %990 = arith.addf %988, %989 : vector<4x32xf32>
    %991 = vector.extract_strided_slice %964 {offsets = [0, 0], sizes = [4, 32], strides = [1, 1]} : vector<4x96xf32> to vector<4x32xf32>
    %992 = vector.extract_strided_slice %958 {offsets = [0, 0], sizes = [4, 32], strides = [1, 1]} : vector<4x96xf32> to vector<4x32xf32>
    %993 = arith.addf %991, %992 : vector<4x32xf32>
    %994 = arith.negf %993 : vector<4x32xf32>
    %995 = math.exp %994 : vector<4x32xf32>
    %cst_236 = arith.constant 1.000000e+00 : f32
    %996 = vector.broadcast %cst_236 : f32 to vector<4x32xf32>
    %997 = arith.addf %996, %995 : vector<4x32xf32>
    %998 = arith.divf %996, %997 : vector<4x32xf32>
    %999 = vector.extract_strided_slice %964 {offsets = [0, 32], sizes = [4, 32], strides = [1, 1]} : vector<4x96xf32> to vector<4x32xf32>
    %1000 = vector.extract_strided_slice %958 {offsets = [0, 32], sizes = [4, 32], strides = [1, 1]} : vector<4x96xf32> to vector<4x32xf32>
    %1001 = arith.addf %999, %1000 : vector<4x32xf32>
    %1002 = arith.negf %1001 : vector<4x32xf32>
    %1003 = math.exp %1002 : vector<4x32xf32>
    %cst_237 = arith.constant 1.000000e+00 : f32
    %1004 = vector.broadcast %cst_237 : f32 to vector<4x32xf32>
    %1005 = arith.addf %1004, %1003 : vector<4x32xf32>
    %1006 = arith.divf %1004, %1005 : vector<4x32xf32>
    %1007 = vector.extract_strided_slice %964 {offsets = [0, 64], sizes = [4, 32], strides = [1, 1]} : vector<4x96xf32> to vector<4x32xf32>
    %1008 = vector.extract_strided_slice %958 {offsets = [0, 64], sizes = [4, 32], strides = [1, 1]} : vector<4x96xf32> to vector<4x32xf32>
    %1009 = arith.mulf %998, %1008 : vector<4x32xf32>
    %1010 = arith.addf %1007, %1009 : vector<4x32xf32>
    %1011 = math.tanh %1010 : vector<4x32xf32>
    %cst_238 = arith.constant 1.000000e+00 : f32
    %1012 = vector.broadcast %cst_238 : f32 to vector<4x32xf32>
    %1013 = arith.subf %1012, %1006 : vector<4x32xf32>
    %1014 = arith.mulf %1013, %1011 : vector<4x32xf32>
    %1015 = arith.mulf %1006, %952 : vector<4x32xf32>
    %1016 = arith.addf %1014, %1015 : vector<4x32xf32>
    %c10_i32_239 = arith.constant 10 : i32
    %1017 = arith.addi %8, %c10_i32_239 : i32
    %1018 = vector.broadcast %1017 : i32 to vector<4x1xi32>
    %1019 = arith.cmpi sgt, %7, %1018 : vector<4x1xi32>
    %1020 = arith.extui %1019 : vector<4x1xi1> to vector<4x1xi32>
    %1021 = arith.sitofp %1020 : vector<4x1xi32> to vector<4x1xf32>
    %c5_i32_240 = arith.constant 5 : i32
    %1022 = arith.addi %10, %c5_i32_240 : i32
    %1023 = vector.broadcast %1022 : i32 to vector<4x1xi32>
    %1024 = arith.cmpi sgt, %7, %1023 : vector<4x1xi32>
    %1025 = arith.extui %1024 : vector<4x1xi1> to vector<4x1xi32>
    %1026 = arith.sitofp %1025 : vector<4x1xi32> to vector<4x1xf32>
    %1027 = vector.broadcast %1021 : vector<4x1xf32> to vector<4x32xf32>
    %1028 = arith.mulf %1027, %990 : vector<4x32xf32>
    %1029 = vector.broadcast %1026 : vector<4x1xf32> to vector<4x32xf32>
    %1030 = arith.mulf %1029, %1016 : vector<4x32xf32>
    %c0_241 = arith.constant 0 : index
    %c10_242 = arith.constant 10 : index
    %c0_243 = arith.constant 0 : index
    %1031 = vector.load %arg13[%c0_241, %c10_242, %c0_243] : memref<4x16x32xf32, #tpu.memory_space<vmem>>, vector<4x1x32xf32>
    %1032 = vector.shape_cast %1031 : vector<4x1x32xf32> to vector<4x32xf32>
    %1033 = vector.shape_cast %1028 : vector<4x32xf32> to vector<4x1x32xf32>
    tpu.vector_store %arg13[%c0_241, %c10_242, %c0_243], %1033 {strides = array<i32>} : memref<4x16x32xf32, #tpu.memory_space<vmem>>, vector<4x1x32xf32>,
    %c0_244 = arith.constant 0 : index
    %c5_245 = arith.constant 5 : index
    %c0_246 = arith.constant 0 : index
    %1034 = vector.load %arg14[%c0_244, %c5_245, %c0_246] : memref<4x16x32xf32, #tpu.memory_space<vmem>>, vector<4x1x32xf32>
    %1035 = vector.shape_cast %1034 : vector<4x1x32xf32> to vector<4x32xf32>
    %1036 = vector.shape_cast %1030 : vector<4x32xf32> to vector<4x1x32xf32>
    tpu.vector_store %arg14[%c0_244, %c5_245, %c0_246], %1036 {strides = array<i32>} : memref<4x16x32xf32, #tpu.memory_space<vmem>>, vector<4x1x32xf32>,
    %cst_247 = arith.constant 1.000000e+00 : f32
    %1037 = vector.broadcast %cst_247 : f32 to vector<4x1xf32>
    %1038 = arith.subf %1037, %1021 : vector<4x1xf32>
    %1039 = vector.broadcast %1038 : vector<4x1xf32> to vector<4x32xf32>
    %1040 = arith.mulf %1039, %947 : vector<4x32xf32>
    %1041 = arith.addf %1028, %1040 : vector<4x32xf32>
    %cst_248 = arith.constant 1.000000e+00 : f32
    %1042 = vector.broadcast %cst_248 : f32 to vector<4x1xf32>
    %1043 = arith.subf %1042, %1026 : vector<4x1xf32>
    %1044 = vector.broadcast %1043 : vector<4x1xf32> to vector<4x32xf32>
    %1045 = arith.mulf %1044, %952 : vector<4x32xf32>
    %1046 = arith.addf %1030, %1045 : vector<4x32xf32>
    %cst_249 = arith.constant dense<0.000000e+00> : vector<4x96xf32>
    %1047 = tpu.matmul %1041, %3, %cst_249 {dimension_numbers = #tpu.dot_dimension_numbers<[1], [0], [0], [1], [0, 0, 1, 1], [], []>} : vector<4x32xf32>, vector<32x96xf32>, vector<4x96xf32> -> vector<4x96xf32>
    %1048 = vector.broadcast %5 : vector<1x96xf32> to vector<4x96xf32>
    %1049 = arith.addf %1047, %1048 : vector<4x96xf32>
    %cst_250 = arith.constant dense<0.000000e+00> : vector<4x96xf32>
    %1050 = tpu.matmul %1046, %4, %cst_250 {dimension_numbers = #tpu.dot_dimension_numbers<[1], [0], [0], [1], [0, 0, 1, 1], [], []>} : vector<4x32xf32>, vector<32x96xf32>, vector<4x96xf32> -> vector<4x96xf32>
    %1051 = vector.broadcast %6 : vector<1x96xf32> to vector<4x96xf32>
    %1052 = arith.addf %1050, %1051 : vector<4x96xf32>
    %c11_251 = arith.constant 11 : index
    %c0_252 = arith.constant 0 : index
    %c0_253 = arith.constant 0 : index
    %1053 = vector.load %arg2[%c11_251, %c0_252, %c0_253] : memref<16x4x96xbf16, #tpu.memory_space<vmem>>, vector<1x4x96xbf16>
    %1054 = vector.shape_cast %1053 : vector<1x4x96xbf16> to vector<4x96xbf16>
    %1055 = arith.extf %1054 : vector<4x96xbf16> to vector<4x96xf32>
    %c4_254 = arith.constant 4 : index
    %c0_255 = arith.constant 0 : index
    %c0_256 = arith.constant 0 : index
    %1056 = vector.load %arg3[%c4_254, %c0_255, %c0_256] : memref<16x4x96xbf16, #tpu.memory_space<vmem>>, vector<1x4x96xbf16>
    %1057 = vector.shape_cast %1056 : vector<1x4x96xbf16> to vector<4x96xbf16>
    %1058 = arith.extf %1057 : vector<4x96xbf16> to vector<4x96xf32>
    %1059 = vector.extract_strided_slice %1055 {offsets = [0, 0], sizes = [4, 32], strides = [1, 1]} : vector<4x96xf32> to vector<4x32xf32>
    %1060 = vector.extract_strided_slice %1049 {offsets = [0, 0], sizes = [4, 32], strides = [1, 1]} : vector<4x96xf32> to vector<4x32xf32>
    %1061 = arith.addf %1059, %1060 : vector<4x32xf32>
    %1062 = arith.negf %1061 : vector<4x32xf32>
    %1063 = math.exp %1062 : vector<4x32xf32>
    %cst_257 = arith.constant 1.000000e+00 : f32
    %1064 = vector.broadcast %cst_257 : f32 to vector<4x32xf32>
    %1065 = arith.addf %1064, %1063 : vector<4x32xf32>
    %1066 = arith.divf %1064, %1065 : vector<4x32xf32>
    %1067 = vector.extract_strided_slice %1055 {offsets = [0, 32], sizes = [4, 32], strides = [1, 1]} : vector<4x96xf32> to vector<4x32xf32>
    %1068 = vector.extract_strided_slice %1049 {offsets = [0, 32], sizes = [4, 32], strides = [1, 1]} : vector<4x96xf32> to vector<4x32xf32>
    %1069 = arith.addf %1067, %1068 : vector<4x32xf32>
    %1070 = arith.negf %1069 : vector<4x32xf32>
    %1071 = math.exp %1070 : vector<4x32xf32>
    %cst_258 = arith.constant 1.000000e+00 : f32
    %1072 = vector.broadcast %cst_258 : f32 to vector<4x32xf32>
    %1073 = arith.addf %1072, %1071 : vector<4x32xf32>
    %1074 = arith.divf %1072, %1073 : vector<4x32xf32>
    %1075 = vector.extract_strided_slice %1055 {offsets = [0, 64], sizes = [4, 32], strides = [1, 1]} : vector<4x96xf32> to vector<4x32xf32>
    %1076 = vector.extract_strided_slice %1049 {offsets = [0, 64], sizes = [4, 32], strides = [1, 1]} : vector<4x96xf32> to vector<4x32xf32>
    %1077 = arith.mulf %1066, %1076 : vector<4x32xf32>
    %1078 = arith.addf %1075, %1077 : vector<4x32xf32>
    %1079 = math.tanh %1078 : vector<4x32xf32>
    %cst_259 = arith.constant 1.000000e+00 : f32
    %1080 = vector.broadcast %cst_259 : f32 to vector<4x32xf32>
    %1081 = arith.subf %1080, %1074 : vector<4x32xf32>
    %1082 = arith.mulf %1081, %1079 : vector<4x32xf32>
    %1083 = arith.mulf %1074, %1041 : vector<4x32xf32>
    %1084 = arith.addf %1082, %1083 : vector<4x32xf32>
    %1085 = vector.extract_strided_slice %1058 {offsets = [0, 0], sizes = [4, 32], strides = [1, 1]} : vector<4x96xf32> to vector<4x32xf32>
    %1086 = vector.extract_strided_slice %1052 {offsets = [0, 0], sizes = [4, 32], strides = [1, 1]} : vector<4x96xf32> to vector<4x32xf32>
    %1087 = arith.addf %1085, %1086 : vector<4x32xf32>
    %1088 = arith.negf %1087 : vector<4x32xf32>
    %1089 = math.exp %1088 : vector<4x32xf32>
    %cst_260 = arith.constant 1.000000e+00 : f32
    %1090 = vector.broadcast %cst_260 : f32 to vector<4x32xf32>
    %1091 = arith.addf %1090, %1089 : vector<4x32xf32>
    %1092 = arith.divf %1090, %1091 : vector<4x32xf32>
    %1093 = vector.extract_strided_slice %1058 {offsets = [0, 32], sizes = [4, 32], strides = [1, 1]} : vector<4x96xf32> to vector<4x32xf32>
    %1094 = vector.extract_strided_slice %1052 {offsets = [0, 32], sizes = [4, 32], strides = [1, 1]} : vector<4x96xf32> to vector<4x32xf32>
    %1095 = arith.addf %1093, %1094 : vector<4x32xf32>
    %1096 = arith.negf %1095 : vector<4x32xf32>
    %1097 = math.exp %1096 : vector<4x32xf32>
    %cst_261 = arith.constant 1.000000e+00 : f32
    %1098 = vector.broadcast %cst_261 : f32 to vector<4x32xf32>
    %1099 = arith.addf %1098, %1097 : vector<4x32xf32>
    %1100 = arith.divf %1098, %1099 : vector<4x32xf32>
    %1101 = vector.extract_strided_slice %1058 {offsets = [0, 64], sizes = [4, 32], strides = [1, 1]} : vector<4x96xf32> to vector<4x32xf32>
    %1102 = vector.extract_strided_slice %1052 {offsets = [0, 64], sizes = [4, 32], strides = [1, 1]} : vector<4x96xf32> to vector<4x32xf32>
    %1103 = arith.mulf %1092, %1102 : vector<4x32xf32>
    %1104 = arith.addf %1101, %1103 : vector<4x32xf32>
    %1105 = math.tanh %1104 : vector<4x32xf32>
    %cst_262 = arith.constant 1.000000e+00 : f32
    %1106 = vector.broadcast %cst_262 : f32 to vector<4x32xf32>
    %1107 = arith.subf %1106, %1100 : vector<4x32xf32>
    %1108 = arith.mulf %1107, %1105 : vector<4x32xf32>
    %1109 = arith.mulf %1100, %1046 : vector<4x32xf32>
    %1110 = arith.addf %1108, %1109 : vector<4x32xf32>
    %c11_i32_263 = arith.constant 11 : i32
    %1111 = arith.addi %8, %c11_i32_263 : i32
    %1112 = vector.broadcast %1111 : i32 to vector<4x1xi32>
    %1113 = arith.cmpi sgt, %7, %1112 : vector<4x1xi32>
    %1114 = arith.extui %1113 : vector<4x1xi1> to vector<4x1xi32>
    %1115 = arith.sitofp %1114 : vector<4x1xi32> to vector<4x1xf32>
    %c4_i32_264 = arith.constant 4 : i32
    %1116 = arith.addi %10, %c4_i32_264 : i32
    %1117 = vector.broadcast %1116 : i32 to vector<4x1xi32>
    %1118 = arith.cmpi sgt, %7, %1117 : vector<4x1xi32>
    %1119 = arith.extui %1118 : vector<4x1xi1> to vector<4x1xi32>
    %1120 = arith.sitofp %1119 : vector<4x1xi32> to vector<4x1xf32>
    %1121 = vector.broadcast %1115 : vector<4x1xf32> to vector<4x32xf32>
    %1122 = arith.mulf %1121, %1084 : vector<4x32xf32>
    %1123 = vector.broadcast %1120 : vector<4x1xf32> to vector<4x32xf32>
    %1124 = arith.mulf %1123, %1110 : vector<4x32xf32>
    %c0_265 = arith.constant 0 : index
    %c11_266 = arith.constant 11 : index
    %c0_267 = arith.constant 0 : index
    %1125 = vector.load %arg13[%c0_265, %c11_266, %c0_267] : memref<4x16x32xf32, #tpu.memory_space<vmem>>, vector<4x1x32xf32>
    %1126 = vector.shape_cast %1125 : vector<4x1x32xf32> to vector<4x32xf32>
    %1127 = vector.shape_cast %1122 : vector<4x32xf32> to vector<4x1x32xf32>
    tpu.vector_store %arg13[%c0_265, %c11_266, %c0_267], %1127 {strides = array<i32>} : memref<4x16x32xf32, #tpu.memory_space<vmem>>, vector<4x1x32xf32>,
    %c0_268 = arith.constant 0 : index
    %c4_269 = arith.constant 4 : index
    %c0_270 = arith.constant 0 : index
    %1128 = vector.load %arg14[%c0_268, %c4_269, %c0_270] : memref<4x16x32xf32, #tpu.memory_space<vmem>>, vector<4x1x32xf32>
    %1129 = vector.shape_cast %1128 : vector<4x1x32xf32> to vector<4x32xf32>
    %1130 = vector.shape_cast %1124 : vector<4x32xf32> to vector<4x1x32xf32>
    tpu.vector_store %arg14[%c0_268, %c4_269, %c0_270], %1130 {strides = array<i32>} : memref<4x16x32xf32, #tpu.memory_space<vmem>>, vector<4x1x32xf32>,
    %cst_271 = arith.constant 1.000000e+00 : f32
    %1131 = vector.broadcast %cst_271 : f32 to vector<4x1xf32>
    %1132 = arith.subf %1131, %1115 : vector<4x1xf32>
    %1133 = vector.broadcast %1132 : vector<4x1xf32> to vector<4x32xf32>
    %1134 = arith.mulf %1133, %1041 : vector<4x32xf32>
    %1135 = arith.addf %1122, %1134 : vector<4x32xf32>
    %cst_272 = arith.constant 1.000000e+00 : f32
    %1136 = vector.broadcast %cst_272 : f32 to vector<4x1xf32>
    %1137 = arith.subf %1136, %1120 : vector<4x1xf32>
    %1138 = vector.broadcast %1137 : vector<4x1xf32> to vector<4x32xf32>
    %1139 = arith.mulf %1138, %1046 : vector<4x32xf32>
    %1140 = arith.addf %1124, %1139 : vector<4x32xf32>
    %cst_273 = arith.constant dense<0.000000e+00> : vector<4x96xf32>
    %1141 = tpu.matmul %1135, %3, %cst_273 {dimension_numbers = #tpu.dot_dimension_numbers<[1], [0], [0], [1], [0, 0, 1, 1], [], []>} : vector<4x32xf32>, vector<32x96xf32>, vector<4x96xf32> -> vector<4x96xf32>
    %1142 = vector.broadcast %5 : vector<1x96xf32> to vector<4x96xf32>
    %1143 = arith.addf %1141, %1142 : vector<4x96xf32>
    %cst_274 = arith.constant dense<0.000000e+00> : vector<4x96xf32>
    %1144 = tpu.matmul %1140, %4, %cst_274 {dimension_numbers = #tpu.dot_dimension_numbers<[1], [0], [0], [1], [0, 0, 1, 1], [], []>} : vector<4x32xf32>, vector<32x96xf32>, vector<4x96xf32> -> vector<4x96xf32>
    %1145 = vector.broadcast %6 : vector<1x96xf32> to vector<4x96xf32>
    %1146 = arith.addf %1144, %1145 : vector<4x96xf32>
    %c12_275 = arith.constant 12 : index
    %c0_276 = arith.constant 0 : index
    %c0_277 = arith.constant 0 : index
    %1147 = vector.load %arg2[%c12_275, %c0_276, %c0_277] : memref<16x4x96xbf16, #tpu.memory_space<vmem>>, vector<1x4x96xbf16>
    %1148 = vector.shape_cast %1147 : vector<1x4x96xbf16> to vector<4x96xbf16>
    %1149 = arith.extf %1148 : vector<4x96xbf16> to vector<4x96xf32>
    %c3_278 = arith.constant 3 : index
    %c0_279 = arith.constant 0 : index
    %c0_280 = arith.constant 0 : index
    %1150 = vector.load %arg3[%c3_278, %c0_279, %c0_280] : memref<16x4x96xbf16, #tpu.memory_space<vmem>>, vector<1x4x96xbf16>
    %1151 = vector.shape_cast %1150 : vector<1x4x96xbf16> to vector<4x96xbf16>
    %1152 = arith.extf %1151 : vector<4x96xbf16> to vector<4x96xf32>
    %1153 = vector.extract_strided_slice %1149 {offsets = [0, 0], sizes = [4, 32], strides = [1, 1]} : vector<4x96xf32> to vector<4x32xf32>
    %1154 = vector.extract_strided_slice %1143 {offsets = [0, 0], sizes = [4, 32], strides = [1, 1]} : vector<4x96xf32> to vector<4x32xf32>
    %1155 = arith.addf %1153, %1154 : vector<4x32xf32>
    %1156 = arith.negf %1155 : vector<4x32xf32>
    %1157 = math.exp %1156 : vector<4x32xf32>
    %cst_281 = arith.constant 1.000000e+00 : f32
    %1158 = vector.broadcast %cst_281 : f32 to vector<4x32xf32>
    %1159 = arith.addf %1158, %1157 : vector<4x32xf32>
    %1160 = arith.divf %1158, %1159 : vector<4x32xf32>
    %1161 = vector.extract_strided_slice %1149 {offsets = [0, 32], sizes = [4, 32], strides = [1, 1]} : vector<4x96xf32> to vector<4x32xf32>
    %1162 = vector.extract_strided_slice %1143 {offsets = [0, 32], sizes = [4, 32], strides = [1, 1]} : vector<4x96xf32> to vector<4x32xf32>
    %1163 = arith.addf %1161, %1162 : vector<4x32xf32>
    %1164 = arith.negf %1163 : vector<4x32xf32>
    %1165 = math.exp %1164 : vector<4x32xf32>
    %cst_282 = arith.constant 1.000000e+00 : f32
    %1166 = vector.broadcast %cst_282 : f32 to vector<4x32xf32>
    %1167 = arith.addf %1166, %1165 : vector<4x32xf32>
    %1168 = arith.divf %1166, %1167 : vector<4x32xf32>
    %1169 = vector.extract_strided_slice %1149 {offsets = [0, 64], sizes = [4, 32], strides = [1, 1]} : vector<4x96xf32> to vector<4x32xf32>
    %1170 = vector.extract_strided_slice %1143 {offsets = [0, 64], sizes = [4, 32], strides = [1, 1]} : vector<4x96xf32> to vector<4x32xf32>
    %1171 = arith.mulf %1160, %1170 : vector<4x32xf32>
    %1172 = arith.addf %1169, %1171 : vector<4x32xf32>
    %1173 = math.tanh %1172 : vector<4x32xf32>
    %cst_283 = arith.constant 1.000000e+00 : f32
    %1174 = vector.broadcast %cst_283 : f32 to vector<4x32xf32>
    %1175 = arith.subf %1174, %1168 : vector<4x32xf32>
    %1176 = arith.mulf %1175, %1173 : vector<4x32xf32>
    %1177 = arith.mulf %1168, %1135 : vector<4x32xf32>
    %1178 = arith.addf %1176, %1177 : vector<4x32xf32>
    %1179 = vector.extract_strided_slice %1152 {offsets = [0, 0], sizes = [4, 32], strides = [1, 1]} : vector<4x96xf32> to vector<4x32xf32>
    %1180 = vector.extract_strided_slice %1146 {offsets = [0, 0], sizes = [4, 32], strides = [1, 1]} : vector<4x96xf32> to vector<4x32xf32>
    %1181 = arith.addf %1179, %1180 : vector<4x32xf32>
    %1182 = arith.negf %1181 : vector<4x32xf32>
    %1183 = math.exp %1182 : vector<4x32xf32>
    %cst_284 = arith.constant 1.000000e+00 : f32
    %1184 = vector.broadcast %cst_284 : f32 to vector<4x32xf32>
    %1185 = arith.addf %1184, %1183 : vector<4x32xf32>
    %1186 = arith.divf %1184, %1185 : vector<4x32xf32>
    %1187 = vector.extract_strided_slice %1152 {offsets = [0, 32], sizes = [4, 32], strides = [1, 1]} : vector<4x96xf32> to vector<4x32xf32>
    %1188 = vector.extract_strided_slice %1146 {offsets = [0, 32], sizes = [4, 32], strides = [1, 1]} : vector<4x96xf32> to vector<4x32xf32>
    %1189 = arith.addf %1187, %1188 : vector<4x32xf32>
    %1190 = arith.negf %1189 : vector<4x32xf32>
    %1191 = math.exp %1190 : vector<4x32xf32>
    %cst_285 = arith.constant 1.000000e+00 : f32
    %1192 = vector.broadcast %cst_285 : f32 to vector<4x32xf32>
    %1193 = arith.addf %1192, %1191 : vector<4x32xf32>
    %1194 = arith.divf %1192, %1193 : vector<4x32xf32>
    %1195 = vector.extract_strided_slice %1152 {offsets = [0, 64], sizes = [4, 32], strides = [1, 1]} : vector<4x96xf32> to vector<4x32xf32>
    %1196 = vector.extract_strided_slice %1146 {offsets = [0, 64], sizes = [4, 32], strides = [1, 1]} : vector<4x96xf32> to vector<4x32xf32>
    %1197 = arith.mulf %1186, %1196 : vector<4x32xf32>
    %1198 = arith.addf %1195, %1197 : vector<4x32xf32>
    %1199 = math.tanh %1198 : vector<4x32xf32>
    %cst_286 = arith.constant 1.000000e+00 : f32
    %1200 = vector.broadcast %cst_286 : f32 to vector<4x32xf32>
    %1201 = arith.subf %1200, %1194 : vector<4x32xf32>
    %1202 = arith.mulf %1201, %1199 : vector<4x32xf32>
    %1203 = arith.mulf %1194, %1140 : vector<4x32xf32>
    %1204 = arith.addf %1202, %1203 : vector<4x32xf32>
    %c12_i32_287 = arith.constant 12 : i32
    %1205 = arith.addi %8, %c12_i32_287 : i32
    %1206 = vector.broadcast %1205 : i32 to vector<4x1xi32>
    %1207 = arith.cmpi sgt, %7, %1206 : vector<4x1xi32>
    %1208 = arith.extui %1207 : vector<4x1xi1> to vector<4x1xi32>
    %1209 = arith.sitofp %1208 : vector<4x1xi32> to vector<4x1xf32>
    %c3_i32_288 = arith.constant 3 : i32
    %1210 = arith.addi %10, %c3_i32_288 : i32
    %1211 = vector.broadcast %1210 : i32 to vector<4x1xi32>
    %1212 = arith.cmpi sgt, %7, %1211 : vector<4x1xi32>
    %1213 = arith.extui %1212 : vector<4x1xi1> to vector<4x1xi32>
    %1214 = arith.sitofp %1213 : vector<4x1xi32> to vector<4x1xf32>
    %1215 = vector.broadcast %1209 : vector<4x1xf32> to vector<4x32xf32>
    %1216 = arith.mulf %1215, %1178 : vector<4x32xf32>
    %1217 = vector.broadcast %1214 : vector<4x1xf32> to vector<4x32xf32>
    %1218 = arith.mulf %1217, %1204 : vector<4x32xf32>
    %c0_289 = arith.constant 0 : index
    %c12_290 = arith.constant 12 : index
    %c0_291 = arith.constant 0 : index
    %1219 = vector.load %arg13[%c0_289, %c12_290, %c0_291] : memref<4x16x32xf32, #tpu.memory_space<vmem>>, vector<4x1x32xf32>
    %1220 = vector.shape_cast %1219 : vector<4x1x32xf32> to vector<4x32xf32>
    %1221 = vector.shape_cast %1216 : vector<4x32xf32> to vector<4x1x32xf32>
    tpu.vector_store %arg13[%c0_289, %c12_290, %c0_291], %1221 {strides = array<i32>} : memref<4x16x32xf32, #tpu.memory_space<vmem>>, vector<4x1x32xf32>,
    %c0_292 = arith.constant 0 : index
    %c3_293 = arith.constant 3 : index
    %c0_294 = arith.constant 0 : index
    %1222 = vector.load %arg14[%c0_292, %c3_293, %c0_294] : memref<4x16x32xf32, #tpu.memory_space<vmem>>, vector<4x1x32xf32>
    %1223 = vector.shape_cast %1222 : vector<4x1x32xf32> to vector<4x32xf32>
    %1224 = vector.shape_cast %1218 : vector<4x32xf32> to vector<4x1x32xf32>
    tpu.vector_store %arg14[%c0_292, %c3_293, %c0_294], %1224 {strides = array<i32>} : memref<4x16x32xf32, #tpu.memory_space<vmem>>, vector<4x1x32xf32>,
    %cst_295 = arith.constant 1.000000e+00 : f32
    %1225 = vector.broadcast %cst_295 : f32 to vector<4x1xf32>
    %1226 = arith.subf %1225, %1209 : vector<4x1xf32>
    %1227 = vector.broadcast %1226 : vector<4x1xf32> to vector<4x32xf32>
    %1228 = arith.mulf %1227, %1135 : vector<4x32xf32>
    %1229 = arith.addf %1216, %1228 : vector<4x32xf32>
    %cst_296 = arith.constant 1.000000e+00 : f32
    %1230 = vector.broadcast %cst_296 : f32 to vector<4x1xf32>
    %1231 = arith.subf %1230, %1214 : vector<4x1xf32>
    %1232 = vector.broadcast %1231 : vector<4x1xf32> to vector<4x32xf32>
    %1233 = arith.mulf %1232, %1140 : vector<4x32xf32>
    %1234 = arith.addf %1218, %1233 : vector<4x32xf32>
    %cst_297 = arith.constant dense<0.000000e+00> : vector<4x96xf32>
    %1235 = tpu.matmul %1229, %3, %cst_297 {dimension_numbers = #tpu.dot_dimension_numbers<[1], [0], [0], [1], [0, 0, 1, 1], [], []>} : vector<4x32xf32>, vector<32x96xf32>, vector<4x96xf32> -> vector<4x96xf32>
    %1236 = vector.broadcast %5 : vector<1x96xf32> to vector<4x96xf32>
    %1237 = arith.addf %1235, %1236 : vector<4x96xf32>
    %cst_298 = arith.constant dense<0.000000e+00> : vector<4x96xf32>
    %1238 = tpu.matmul %1234, %4, %cst_298 {dimension_numbers = #tpu.dot_dimension_numbers<[1], [0], [0], [1], [0, 0, 1, 1], [], []>} : vector<4x32xf32>, vector<32x96xf32>, vector<4x96xf32> -> vector<4x96xf32>
    %1239 = vector.broadcast %6 : vector<1x96xf32> to vector<4x96xf32>
    %1240 = arith.addf %1238, %1239 : vector<4x96xf32>
    %c13_299 = arith.constant 13 : index
    %c0_300 = arith.constant 0 : index
    %c0_301 = arith.constant 0 : index
    %1241 = vector.load %arg2[%c13_299, %c0_300, %c0_301] : memref<16x4x96xbf16, #tpu.memory_space<vmem>>, vector<1x4x96xbf16>
    %1242 = vector.shape_cast %1241 : vector<1x4x96xbf16> to vector<4x96xbf16>
    %1243 = arith.extf %1242 : vector<4x96xbf16> to vector<4x96xf32>
    %c2_302 = arith.constant 2 : index
    %c0_303 = arith.constant 0 : index
    %c0_304 = arith.constant 0 : index
    %1244 = vector.load %arg3[%c2_302, %c0_303, %c0_304] : memref<16x4x96xbf16, #tpu.memory_space<vmem>>, vector<1x4x96xbf16>
    %1245 = vector.shape_cast %1244 : vector<1x4x96xbf16> to vector<4x96xbf16>
    %1246 = arith.extf %1245 : vector<4x96xbf16> to vector<4x96xf32>
    %1247 = vector.extract_strided_slice %1243 {offsets = [0, 0], sizes = [4, 32], strides = [1, 1]} : vector<4x96xf32> to vector<4x32xf32>
    %1248 = vector.extract_strided_slice %1237 {offsets = [0, 0], sizes = [4, 32], strides = [1, 1]} : vector<4x96xf32> to vector<4x32xf32>
    %1249 = arith.addf %1247, %1248 : vector<4x32xf32>
    %1250 = arith.negf %1249 : vector<4x32xf32>
    %1251 = math.exp %1250 : vector<4x32xf32>
    %cst_305 = arith.constant 1.000000e+00 : f32
    %1252 = vector.broadcast %cst_305 : f32 to vector<4x32xf32>
    %1253 = arith.addf %1252, %1251 : vector<4x32xf32>
    %1254 = arith.divf %1252, %1253 : vector<4x32xf32>
    %1255 = vector.extract_strided_slice %1243 {offsets = [0, 32], sizes = [4, 32], strides = [1, 1]} : vector<4x96xf32> to vector<4x32xf32>
    %1256 = vector.extract_strided_slice %1237 {offsets = [0, 32], sizes = [4, 32], strides = [1, 1]} : vector<4x96xf32> to vector<4x32xf32>
    %1257 = arith.addf %1255, %1256 : vector<4x32xf32>
    %1258 = arith.negf %1257 : vector<4x32xf32>
    %1259 = math.exp %1258 : vector<4x32xf32>
    %cst_306 = arith.constant 1.000000e+00 : f32
    %1260 = vector.broadcast %cst_306 : f32 to vector<4x32xf32>
    %1261 = arith.addf %1260, %1259 : vector<4x32xf32>
    %1262 = arith.divf %1260, %1261 : vector<4x32xf32>
    %1263 = vector.extract_strided_slice %1243 {offsets = [0, 64], sizes = [4, 32], strides = [1, 1]} : vector<4x96xf32> to vector<4x32xf32>
    %1264 = vector.extract_strided_slice %1237 {offsets = [0, 64], sizes = [4, 32], strides = [1, 1]} : vector<4x96xf32> to vector<4x32xf32>
    %1265 = arith.mulf %1254, %1264 : vector<4x32xf32>
    %1266 = arith.addf %1263, %1265 : vector<4x32xf32>
    %1267 = math.tanh %1266 : vector<4x32xf32>
    %cst_307 = arith.constant 1.000000e+00 : f32
    %1268 = vector.broadcast %cst_307 : f32 to vector<4x32xf32>
    %1269 = arith.subf %1268, %1262 : vector<4x32xf32>
    %1270 = arith.mulf %1269, %1267 : vector<4x32xf32>
    %1271 = arith.mulf %1262, %1229 : vector<4x32xf32>
    %1272 = arith.addf %1270, %1271 : vector<4x32xf32>
    %1273 = vector.extract_strided_slice %1246 {offsets = [0, 0], sizes = [4, 32], strides = [1, 1]} : vector<4x96xf32> to vector<4x32xf32>
    %1274 = vector.extract_strided_slice %1240 {offsets = [0, 0], sizes = [4, 32], strides = [1, 1]} : vector<4x96xf32> to vector<4x32xf32>
    %1275 = arith.addf %1273, %1274 : vector<4x32xf32>
    %1276 = arith.negf %1275 : vector<4x32xf32>
    %1277 = math.exp %1276 : vector<4x32xf32>
    %cst_308 = arith.constant 1.000000e+00 : f32
    %1278 = vector.broadcast %cst_308 : f32 to vector<4x32xf32>
    %1279 = arith.addf %1278, %1277 : vector<4x32xf32>
    %1280 = arith.divf %1278, %1279 : vector<4x32xf32>
    %1281 = vector.extract_strided_slice %1246 {offsets = [0, 32], sizes = [4, 32], strides = [1, 1]} : vector<4x96xf32> to vector<4x32xf32>
    %1282 = vector.extract_strided_slice %1240 {offsets = [0, 32], sizes = [4, 32], strides = [1, 1]} : vector<4x96xf32> to vector<4x32xf32>
    %1283 = arith.addf %1281, %1282 : vector<4x32xf32>
    %1284 = arith.negf %1283 : vector<4x32xf32>
    %1285 = math.exp %1284 : vector<4x32xf32>
    %cst_309 = arith.constant 1.000000e+00 : f32
    %1286 = vector.broadcast %cst_309 : f32 to vector<4x32xf32>
    %1287 = arith.addf %1286, %1285 : vector<4x32xf32>
    %1288 = arith.divf %1286, %1287 : vector<4x32xf32>
    %1289 = vector.extract_strided_slice %1246 {offsets = [0, 64], sizes = [4, 32], strides = [1, 1]} : vector<4x96xf32> to vector<4x32xf32>
    %1290 = vector.extract_strided_slice %1240 {offsets = [0, 64], sizes = [4, 32], strides = [1, 1]} : vector<4x96xf32> to vector<4x32xf32>
    %1291 = arith.mulf %1280, %1290 : vector<4x32xf32>
    %1292 = arith.addf %1289, %1291 : vector<4x32xf32>
    %1293 = math.tanh %1292 : vector<4x32xf32>
    %cst_310 = arith.constant 1.000000e+00 : f32
    %1294 = vector.broadcast %cst_310 : f32 to vector<4x32xf32>
    %1295 = arith.subf %1294, %1288 : vector<4x32xf32>
    %1296 = arith.mulf %1295, %1293 : vector<4x32xf32>
    %1297 = arith.mulf %1288, %1234 : vector<4x32xf32>
    %1298 = arith.addf %1296, %1297 : vector<4x32xf32>
    %c13_i32_311 = arith.constant 13 : i32
    %1299 = arith.addi %8, %c13_i32_311 : i32
    %1300 = vector.broadcast %1299 : i32 to vector<4x1xi32>
    %1301 = arith.cmpi sgt, %7, %1300 : vector<4x1xi32>
    %1302 = arith.extui %1301 : vector<4x1xi1> to vector<4x1xi32>
    %1303 = arith.sitofp %1302 : vector<4x1xi32> to vector<4x1xf32>
    %c2_i32_312 = arith.constant 2 : i32
    %1304 = arith.addi %10, %c2_i32_312 : i32
    %1305 = vector.broadcast %1304 : i32 to vector<4x1xi32>
    %1306 = arith.cmpi sgt, %7, %1305 : vector<4x1xi32>
    %1307 = arith.extui %1306 : vector<4x1xi1> to vector<4x1xi32>
    %1308 = arith.sitofp %1307 : vector<4x1xi32> to vector<4x1xf32>
    %1309 = vector.broadcast %1303 : vector<4x1xf32> to vector<4x32xf32>
    %1310 = arith.mulf %1309, %1272 : vector<4x32xf32>
    %1311 = vector.broadcast %1308 : vector<4x1xf32> to vector<4x32xf32>
    %1312 = arith.mulf %1311, %1298 : vector<4x32xf32>
    %c0_313 = arith.constant 0 : index
    %c13_314 = arith.constant 13 : index
    %c0_315 = arith.constant 0 : index
    %1313 = vector.load %arg13[%c0_313, %c13_314, %c0_315] : memref<4x16x32xf32, #tpu.memory_space<vmem>>, vector<4x1x32xf32>
    %1314 = vector.shape_cast %1313 : vector<4x1x32xf32> to vector<4x32xf32>
    %1315 = vector.shape_cast %1310 : vector<4x32xf32> to vector<4x1x32xf32>
    tpu.vector_store %arg13[%c0_313, %c13_314, %c0_315], %1315 {strides = array<i32>} : memref<4x16x32xf32, #tpu.memory_space<vmem>>, vector<4x1x32xf32>,
    %c0_316 = arith.constant 0 : index
    %c2_317 = arith.constant 2 : index
    %c0_318 = arith.constant 0 : index
    %1316 = vector.load %arg14[%c0_316, %c2_317, %c0_318] : memref<4x16x32xf32, #tpu.memory_space<vmem>>, vector<4x1x32xf32>
    %1317 = vector.shape_cast %1316 : vector<4x1x32xf32> to vector<4x32xf32>
    %1318 = vector.shape_cast %1312 : vector<4x32xf32> to vector<4x1x32xf32>
    tpu.vector_store %arg14[%c0_316, %c2_317, %c0_318], %1318 {strides = array<i32>} : memref<4x16x32xf32, #tpu.memory_space<vmem>>, vector<4x1x32xf32>,
    %cst_319 = arith.constant 1.000000e+00 : f32
    %1319 = vector.broadcast %cst_319 : f32 to vector<4x1xf32>
    %1320 = arith.subf %1319, %1303 : vector<4x1xf32>
    %1321 = vector.broadcast %1320 : vector<4x1xf32> to vector<4x32xf32>
    %1322 = arith.mulf %1321, %1229 : vector<4x32xf32>
    %1323 = arith.addf %1310, %1322 : vector<4x32xf32>
    %cst_320 = arith.constant 1.000000e+00 : f32
    %1324 = vector.broadcast %cst_320 : f32 to vector<4x1xf32>
    %1325 = arith.subf %1324, %1308 : vector<4x1xf32>
    %1326 = vector.broadcast %1325 : vector<4x1xf32> to vector<4x32xf32>
    %1327 = arith.mulf %1326, %1234 : vector<4x32xf32>
    %1328 = arith.addf %1312, %1327 : vector<4x32xf32>
    %cst_321 = arith.constant dense<0.000000e+00> : vector<4x96xf32>
    %1329 = tpu.matmul %1323, %3, %cst_321 {dimension_numbers = #tpu.dot_dimension_numbers<[1], [0], [0], [1], [0, 0, 1, 1], [], []>} : vector<4x32xf32>, vector<32x96xf32>, vector<4x96xf32> -> vector<4x96xf32>
    %1330 = vector.broadcast %5 : vector<1x96xf32> to vector<4x96xf32>
    %1331 = arith.addf %1329, %1330 : vector<4x96xf32>
    %cst_322 = arith.constant dense<0.000000e+00> : vector<4x96xf32>
    %1332 = tpu.matmul %1328, %4, %cst_322 {dimension_numbers = #tpu.dot_dimension_numbers<[1], [0], [0], [1], [0, 0, 1, 1], [], []>} : vector<4x32xf32>, vector<32x96xf32>, vector<4x96xf32> -> vector<4x96xf32>
    %1333 = vector.broadcast %6 : vector<1x96xf32> to vector<4x96xf32>
    %1334 = arith.addf %1332, %1333 : vector<4x96xf32>
    %c14_323 = arith.constant 14 : index
    %c0_324 = arith.constant 0 : index
    %c0_325 = arith.constant 0 : index
    %1335 = vector.load %arg2[%c14_323, %c0_324, %c0_325] : memref<16x4x96xbf16, #tpu.memory_space<vmem>>, vector<1x4x96xbf16>
    %1336 = vector.shape_cast %1335 : vector<1x4x96xbf16> to vector<4x96xbf16>
    %1337 = arith.extf %1336 : vector<4x96xbf16> to vector<4x96xf32>
    %c1_326 = arith.constant 1 : index
    %c0_327 = arith.constant 0 : index
    %c0_328 = arith.constant 0 : index
    %1338 = vector.load %arg3[%c1_326, %c0_327, %c0_328] : memref<16x4x96xbf16, #tpu.memory_space<vmem>>, vector<1x4x96xbf16>
    %1339 = vector.shape_cast %1338 : vector<1x4x96xbf16> to vector<4x96xbf16>
    %1340 = arith.extf %1339 : vector<4x96xbf16> to vector<4x96xf32>
    %1341 = vector.extract_strided_slice %1337 {offsets = [0, 0], sizes = [4, 32], strides = [1, 1]} : vector<4x96xf32> to vector<4x32xf32>
    %1342 = vector.extract_strided_slice %1331 {offsets = [0, 0], sizes = [4, 32], strides = [1, 1]} : vector<4x96xf32> to vector<4x32xf32>
    %1343 = arith.addf %1341, %1342 : vector<4x32xf32>
    %1344 = arith.negf %1343 : vector<4x32xf32>
    %1345 = math.exp %1344 : vector<4x32xf32>
    %cst_329 = arith.constant 1.000000e+00 : f32
    %1346 = vector.broadcast %cst_329 : f32 to vector<4x32xf32>
    %1347 = arith.addf %1346, %1345 : vector<4x32xf32>
    %1348 = arith.divf %1346, %1347 : vector<4x32xf32>
    %1349 = vector.extract_strided_slice %1337 {offsets = [0, 32], sizes = [4, 32], strides = [1, 1]} : vector<4x96xf32> to vector<4x32xf32>
    %1350 = vector.extract_strided_slice %1331 {offsets = [0, 32], sizes = [4, 32], strides = [1, 1]} : vector<4x96xf32> to vector<4x32xf32>
    %1351 = arith.addf %1349, %1350 : vector<4x32xf32>
    %1352 = arith.negf %1351 : vector<4x32xf32>
    %1353 = math.exp %1352 : vector<4x32xf32>
    %cst_330 = arith.constant 1.000000e+00 : f32
    %1354 = vector.broadcast %cst_330 : f32 to vector<4x32xf32>
    %1355 = arith.addf %1354, %1353 : vector<4x32xf32>
    %1356 = arith.divf %1354, %1355 : vector<4x32xf32>
    %1357 = vector.extract_strided_slice %1337 {offsets = [0, 64], sizes = [4, 32], strides = [1, 1]} : vector<4x96xf32> to vector<4x32xf32>
    %1358 = vector.extract_strided_slice %1331 {offsets = [0, 64], sizes = [4, 32], strides = [1, 1]} : vector<4x96xf32> to vector<4x32xf32>
    %1359 = arith.mulf %1348, %1358 : vector<4x32xf32>
    %1360 = arith.addf %1357, %1359 : vector<4x32xf32>
    %1361 = math.tanh %1360 : vector<4x32xf32>
    %cst_331 = arith.constant 1.000000e+00 : f32
    %1362 = vector.broadcast %cst_331 : f32 to vector<4x32xf32>
    %1363 = arith.subf %1362, %1356 : vector<4x32xf32>
    %1364 = arith.mulf %1363, %1361 : vector<4x32xf32>
    %1365 = arith.mulf %1356, %1323 : vector<4x32xf32>
    %1366 = arith.addf %1364, %1365 : vector<4x32xf32>
    %1367 = vector.extract_strided_slice %1340 {offsets = [0, 0], sizes = [4, 32], strides = [1, 1]} : vector<4x96xf32> to vector<4x32xf32>
    %1368 = vector.extract_strided_slice %1334 {offsets = [0, 0], sizes = [4, 32], strides = [1, 1]} : vector<4x96xf32> to vector<4x32xf32>
    %1369 = arith.addf %1367, %1368 : vector<4x32xf32>
    %1370 = arith.negf %1369 : vector<4x32xf32>
    %1371 = math.exp %1370 : vector<4x32xf32>
    %cst_332 = arith.constant 1.000000e+00 : f32
    %1372 = vector.broadcast %cst_332 : f32 to vector<4x32xf32>
    %1373 = arith.addf %1372, %1371 : vector<4x32xf32>
    %1374 = arith.divf %1372, %1373 : vector<4x32xf32>
    %1375 = vector.extract_strided_slice %1340 {offsets = [0, 32], sizes = [4, 32], strides = [1, 1]} : vector<4x96xf32> to vector<4x32xf32>
    %1376 = vector.extract_strided_slice %1334 {offsets = [0, 32], sizes = [4, 32], strides = [1, 1]} : vector<4x96xf32> to vector<4x32xf32>
    %1377 = arith.addf %1375, %1376 : vector<4x32xf32>
    %1378 = arith.negf %1377 : vector<4x32xf32>
    %1379 = math.exp %1378 : vector<4x32xf32>
    %cst_333 = arith.constant 1.000000e+00 : f32
    %1380 = vector.broadcast %cst_333 : f32 to vector<4x32xf32>
    %1381 = arith.addf %1380, %1379 : vector<4x32xf32>
    %1382 = arith.divf %1380, %1381 : vector<4x32xf32>
    %1383 = vector.extract_strided_slice %1340 {offsets = [0, 64], sizes = [4, 32], strides = [1, 1]} : vector<4x96xf32> to vector<4x32xf32>
    %1384 = vector.extract_strided_slice %1334 {offsets = [0, 64], sizes = [4, 32], strides = [1, 1]} : vector<4x96xf32> to vector<4x32xf32>
    %1385 = arith.mulf %1374, %1384 : vector<4x32xf32>
    %1386 = arith.addf %1383, %1385 : vector<4x32xf32>
    %1387 = math.tanh %1386 : vector<4x32xf32>
    %cst_334 = arith.constant 1.000000e+00 : f32
    %1388 = vector.broadcast %cst_334 : f32 to vector<4x32xf32>
    %1389 = arith.subf %1388, %1382 : vector<4x32xf32>
    %1390 = arith.mulf %1389, %1387 : vector<4x32xf32>
    %1391 = arith.mulf %1382, %1328 : vector<4x32xf32>
    %1392 = arith.addf %1390, %1391 : vector<4x32xf32>
    %c14_i32_335 = arith.constant 14 : i32
    %1393 = arith.addi %8, %c14_i32_335 : i32
    %1394 = vector.broadcast %1393 : i32 to vector<4x1xi32>
    %1395 = arith.cmpi sgt, %7, %1394 : vector<4x1xi32>
    %1396 = arith.extui %1395 : vector<4x1xi1> to vector<4x1xi32>
    %1397 = arith.sitofp %1396 : vector<4x1xi32> to vector<4x1xf32>
    %c1_i32_336 = arith.constant 1 : i32
    %1398 = arith.addi %10, %c1_i32_336 : i32
    %1399 = vector.broadcast %1398 : i32 to vector<4x1xi32>
    %1400 = arith.cmpi sgt, %7, %1399 : vector<4x1xi32>
    %1401 = arith.extui %1400 : vector<4x1xi1> to vector<4x1xi32>
    %1402 = arith.sitofp %1401 : vector<4x1xi32> to vector<4x1xf32>
    %1403 = vector.broadcast %1397 : vector<4x1xf32> to vector<4x32xf32>
    %1404 = arith.mulf %1403, %1366 : vector<4x32xf32>
    %1405 = vector.broadcast %1402 : vector<4x1xf32> to vector<4x32xf32>
    %1406 = arith.mulf %1405, %1392 : vector<4x32xf32>
    %c0_337 = arith.constant 0 : index
    %c14_338 = arith.constant 14 : index
    %c0_339 = arith.constant 0 : index
    %1407 = vector.load %arg13[%c0_337, %c14_338, %c0_339] : memref<4x16x32xf32, #tpu.memory_space<vmem>>, vector<4x1x32xf32>
    %1408 = vector.shape_cast %1407 : vector<4x1x32xf32> to vector<4x32xf32>
    %1409 = vector.shape_cast %1404 : vector<4x32xf32> to vector<4x1x32xf32>
    tpu.vector_store %arg13[%c0_337, %c14_338, %c0_339], %1409 {strides = array<i32>} : memref<4x16x32xf32, #tpu.memory_space<vmem>>, vector<4x1x32xf32>,
    %c0_340 = arith.constant 0 : index
    %c1_341 = arith.constant 1 : index
    %c0_342 = arith.constant 0 : index
    %1410 = vector.load %arg14[%c0_340, %c1_341, %c0_342] : memref<4x16x32xf32, #tpu.memory_space<vmem>>, vector<4x1x32xf32>
    %1411 = vector.shape_cast %1410 : vector<4x1x32xf32> to vector<4x32xf32>
    %1412 = vector.shape_cast %1406 : vector<4x32xf32> to vector<4x1x32xf32>
    tpu.vector_store %arg14[%c0_340, %c1_341, %c0_342], %1412 {strides = array<i32>} : memref<4x16x32xf32, #tpu.memory_space<vmem>>, vector<4x1x32xf32>,
    %cst_343 = arith.constant 1.000000e+00 : f32
    %1413 = vector.broadcast %cst_343 : f32 to vector<4x1xf32>
    %1414 = arith.subf %1413, %1397 : vector<4x1xf32>
    %1415 = vector.broadcast %1414 : vector<4x1xf32> to vector<4x32xf32>
    %1416 = arith.mulf %1415, %1323 : vector<4x32xf32>
    %1417 = arith.addf %1404, %1416 : vector<4x32xf32>
    %cst_344 = arith.constant 1.000000e+00 : f32
    %1418 = vector.broadcast %cst_344 : f32 to vector<4x1xf32>
    %1419 = arith.subf %1418, %1402 : vector<4x1xf32>
    %1420 = vector.broadcast %1419 : vector<4x1xf32> to vector<4x32xf32>
    %1421 = arith.mulf %1420, %1328 : vector<4x32xf32>
    %1422 = arith.addf %1406, %1421 : vector<4x32xf32>
    %cst_345 = arith.constant dense<0.000000e+00> : vector<4x96xf32>
    %1423 = tpu.matmul %1417, %3, %cst_345 {dimension_numbers = #tpu.dot_dimension_numbers<[1], [0], [0], [1], [0, 0, 1, 1], [], []>} : vector<4x32xf32>, vector<32x96xf32>, vector<4x96xf32> -> vector<4x96xf32>
    %1424 = vector.broadcast %5 : vector<1x96xf32> to vector<4x96xf32>
    %1425 = arith.addf %1423, %1424 : vector<4x96xf32>
    %cst_346 = arith.constant dense<0.000000e+00> : vector<4x96xf32>
    %1426 = tpu.matmul %1422, %4, %cst_346 {dimension_numbers = #tpu.dot_dimension_numbers<[1], [0], [0], [1], [0, 0, 1, 1], [], []>} : vector<4x32xf32>, vector<32x96xf32>, vector<4x96xf32> -> vector<4x96xf32>
    %1427 = vector.broadcast %6 : vector<1x96xf32> to vector<4x96xf32>
    %1428 = arith.addf %1426, %1427 : vector<4x96xf32>
    %c15_347 = arith.constant 15 : index
    %c0_348 = arith.constant 0 : index
    %c0_349 = arith.constant 0 : index
    %1429 = vector.load %arg2[%c15_347, %c0_348, %c0_349] : memref<16x4x96xbf16, #tpu.memory_space<vmem>>, vector<1x4x96xbf16>
    %1430 = vector.shape_cast %1429 : vector<1x4x96xbf16> to vector<4x96xbf16>
    %1431 = arith.extf %1430 : vector<4x96xbf16> to vector<4x96xf32>
    %c0_350 = arith.constant 0 : index
    %c0_351 = arith.constant 0 : index
    %c0_352 = arith.constant 0 : index
    %1432 = vector.load %arg3[%c0_350, %c0_351, %c0_352] : memref<16x4x96xbf16, #tpu.memory_space<vmem>>, vector<1x4x96xbf16>
    %1433 = vector.shape_cast %1432 : vector<1x4x96xbf16> to vector<4x96xbf16>
    %1434 = arith.extf %1433 : vector<4x96xbf16> to vector<4x96xf32>
    %1435 = vector.extract_strided_slice %1431 {offsets = [0, 0], sizes = [4, 32], strides = [1, 1]} : vector<4x96xf32> to vector<4x32xf32>
    %1436 = vector.extract_strided_slice %1425 {offsets = [0, 0], sizes = [4, 32], strides = [1, 1]} : vector<4x96xf32> to vector<4x32xf32>
    %1437 = arith.addf %1435, %1436 : vector<4x32xf32>
    %1438 = arith.negf %1437 : vector<4x32xf32>
    %1439 = math.exp %1438 : vector<4x32xf32>
    %cst_353 = arith.constant 1.000000e+00 : f32
    %1440 = vector.broadcast %cst_353 : f32 to vector<4x32xf32>
    %1441 = arith.addf %1440, %1439 : vector<4x32xf32>
    %1442 = arith.divf %1440, %1441 : vector<4x32xf32>
    %1443 = vector.extract_strided_slice %1431 {offsets = [0, 32], sizes = [4, 32], strides = [1, 1]} : vector<4x96xf32> to vector<4x32xf32>
    %1444 = vector.extract_strided_slice %1425 {offsets = [0, 32], sizes = [4, 32], strides = [1, 1]} : vector<4x96xf32> to vector<4x32xf32>
    %1445 = arith.addf %1443, %1444 : vector<4x32xf32>
    %1446 = arith.negf %1445 : vector<4x32xf32>
    %1447 = math.exp %1446 : vector<4x32xf32>
    %cst_354 = arith.constant 1.000000e+00 : f32
    %1448 = vector.broadcast %cst_354 : f32 to vector<4x32xf32>
    %1449 = arith.addf %1448, %1447 : vector<4x32xf32>
    %1450 = arith.divf %1448, %1449 : vector<4x32xf32>
    %1451 = vector.extract_strided_slice %1431 {offsets = [0, 64], sizes = [4, 32], strides = [1, 1]} : vector<4x96xf32> to vector<4x32xf32>
    %1452 = vector.extract_strided_slice %1425 {offsets = [0, 64], sizes = [4, 32], strides = [1, 1]} : vector<4x96xf32> to vector<4x32xf32>
    %1453 = arith.mulf %1442, %1452 : vector<4x32xf32>
    %1454 = arith.addf %1451, %1453 : vector<4x32xf32>
    %1455 = math.tanh %1454 : vector<4x32xf32>
    %cst_355 = arith.constant 1.000000e+00 : f32
    %1456 = vector.broadcast %cst_355 : f32 to vector<4x32xf32>
    %1457 = arith.subf %1456, %1450 : vector<4x32xf32>
    %1458 = arith.mulf %1457, %1455 : vector<4x32xf32>
    %1459 = arith.mulf %1450, %1417 : vector<4x32xf32>
    %1460 = arith.addf %1458, %1459 : vector<4x32xf32>
    %1461 = vector.extract_strided_slice %1434 {offsets = [0, 0], sizes = [4, 32], strides = [1, 1]} : vector<4x96xf32> to vector<4x32xf32>
    %1462 = vector.extract_strided_slice %1428 {offsets = [0, 0], sizes = [4, 32], strides = [1, 1]} : vector<4x96xf32> to vector<4x32xf32>
    %1463 = arith.addf %1461, %1462 : vector<4x32xf32>
    %1464 = arith.negf %1463 : vector<4x32xf32>
    %1465 = math.exp %1464 : vector<4x32xf32>
    %cst_356 = arith.constant 1.000000e+00 : f32
    %1466 = vector.broadcast %cst_356 : f32 to vector<4x32xf32>
    %1467 = arith.addf %1466, %1465 : vector<4x32xf32>
    %1468 = arith.divf %1466, %1467 : vector<4x32xf32>
    %1469 = vector.extract_strided_slice %1434 {offsets = [0, 32], sizes = [4, 32], strides = [1, 1]} : vector<4x96xf32> to vector<4x32xf32>
    %1470 = vector.extract_strided_slice %1428 {offsets = [0, 32], sizes = [4, 32], strides = [1, 1]} : vector<4x96xf32> to vector<4x32xf32>
    %1471 = arith.addf %1469, %1470 : vector<4x32xf32>
    %1472 = arith.negf %1471 : vector<4x32xf32>
    %1473 = math.exp %1472 : vector<4x32xf32>
    %cst_357 = arith.constant 1.000000e+00 : f32
    %1474 = vector.broadcast %cst_357 : f32 to vector<4x32xf32>
    %1475 = arith.addf %1474, %1473 : vector<4x32xf32>
    %1476 = arith.divf %1474, %1475 : vector<4x32xf32>
    %1477 = vector.extract_strided_slice %1434 {offsets = [0, 64], sizes = [4, 32], strides = [1, 1]} : vector<4x96xf32> to vector<4x32xf32>
    %1478 = vector.extract_strided_slice %1428 {offsets = [0, 64], sizes = [4, 32], strides = [1, 1]} : vector<4x96xf32> to vector<4x32xf32>
    %1479 = arith.mulf %1468, %1478 : vector<4x32xf32>
    %1480 = arith.addf %1477, %1479 : vector<4x32xf32>
    %1481 = math.tanh %1480 : vector<4x32xf32>
    %cst_358 = arith.constant 1.000000e+00 : f32
    %1482 = vector.broadcast %cst_358 : f32 to vector<4x32xf32>
    %1483 = arith.subf %1482, %1476 : vector<4x32xf32>
    %1484 = arith.mulf %1483, %1481 : vector<4x32xf32>
    %1485 = arith.mulf %1476, %1422 : vector<4x32xf32>
    %1486 = arith.addf %1484, %1485 : vector<4x32xf32>
    %c15_i32_359 = arith.constant 15 : i32
    %1487 = arith.addi %8, %c15_i32_359 : i32
    %1488 = vector.broadcast %1487 : i32 to vector<4x1xi32>
    %1489 = arith.cmpi sgt, %7, %1488 : vector<4x1xi32>
    %1490 = arith.extui %1489 : vector<4x1xi1> to vector<4x1xi32>
    %1491 = arith.sitofp %1490 : vector<4x1xi32> to vector<4x1xf32>
    %c0_i32_360 = arith.constant 0 : i32
    %1492 = arith.addi %10, %c0_i32_360 : i32
    %1493 = vector.broadcast %1492 : i32 to vector<4x1xi32>
    %1494 = arith.cmpi sgt, %7, %1493 : vector<4x1xi32>
    %1495 = arith.extui %1494 : vector<4x1xi1> to vector<4x1xi32>
    %1496 = arith.sitofp %1495 : vector<4x1xi32> to vector<4x1xf32>
    %1497 = vector.broadcast %1491 : vector<4x1xf32> to vector<4x32xf32>
    %1498 = arith.mulf %1497, %1460 : vector<4x32xf32>
    %1499 = vector.broadcast %1496 : vector<4x1xf32> to vector<4x32xf32>
    %1500 = arith.mulf %1499, %1486 : vector<4x32xf32>
    %c0_361 = arith.constant 0 : index
    %c15_362 = arith.constant 15 : index
    %c0_363 = arith.constant 0 : index
    %1501 = vector.load %arg13[%c0_361, %c15_362, %c0_363] : memref<4x16x32xf32, #tpu.memory_space<vmem>>, vector<4x1x32xf32>
    %1502 = vector.shape_cast %1501 : vector<4x1x32xf32> to vector<4x32xf32>
    %1503 = vector.shape_cast %1498 : vector<4x32xf32> to vector<4x1x32xf32>
    tpu.vector_store %arg13[%c0_361, %c15_362, %c0_363], %1503 {strides = array<i32>} : memref<4x16x32xf32, #tpu.memory_space<vmem>>, vector<4x1x32xf32>,
    %c0_364 = arith.constant 0 : index
    %c0_365 = arith.constant 0 : index
    %c0_366 = arith.constant 0 : index
    %1504 = vector.load %arg14[%c0_364, %c0_365, %c0_366] : memref<4x16x32xf32, #tpu.memory_space<vmem>>, vector<4x1x32xf32>
    %1505 = vector.shape_cast %1504 : vector<4x1x32xf32> to vector<4x32xf32>
    %1506 = vector.shape_cast %1500 : vector<4x32xf32> to vector<4x1x32xf32>
    tpu.vector_store %arg14[%c0_364, %c0_365, %c0_366], %1506 {strides = array<i32>} : memref<4x16x32xf32, #tpu.memory_space<vmem>>, vector<4x1x32xf32>,
    %cst_367 = arith.constant 1.000000e+00 : f32
    %1507 = vector.broadcast %cst_367 : f32 to vector<4x1xf32>
    %1508 = arith.subf %1507, %1491 : vector<4x1xf32>
    %1509 = vector.broadcast %1508 : vector<4x1xf32> to vector<4x32xf32>
    %1510 = arith.mulf %1509, %1417 : vector<4x32xf32>
    %1511 = arith.addf %1498, %1510 : vector<4x32xf32>
    %cst_368 = arith.constant 1.000000e+00 : f32
    %1512 = vector.broadcast %cst_368 : f32 to vector<4x1xf32>
    %1513 = arith.subf %1512, %1496 : vector<4x1xf32>
    %1514 = vector.broadcast %1513 : vector<4x1xf32> to vector<4x32xf32>
    %1515 = arith.mulf %1514, %1422 : vector<4x32xf32>
    %1516 = arith.addf %1500, %1515 : vector<4x32xf32>
    %c0_369 = arith.constant 0 : index
    %c0_370 = arith.constant 0 : index
    %1517 = vector.load %arg11[%c0_369, %c0_370] : memref<4x32xf32, #tpu.memory_space<vmem>>, vector<4x32xf32>
    tpu.vector_store %arg11[%c0_369, %c0_370], %1511 {strides = array<i32>} : memref<4x32xf32, #tpu.memory_space<vmem>>, vector<4x32xf32>,
    %c0_371 = arith.constant 0 : index
    %c0_372 = arith.constant 0 : index
    %1518 = vector.load %arg12[%c0_371, %c0_372] : memref<4x32xf32, #tpu.memory_space<vmem>>, vector<4x32xf32>
    tpu.vector_store %arg12[%c0_371, %c0_372], %1516 {strides = array<i32>} : memref<4x32xf32, #tpu.memory_space<vmem>>, vector<4x32xf32>,
    %c0_373 = arith.constant 0 : index
    %c0_374 = arith.constant 0 : index
    %c0_375 = arith.constant 0 : index
    %1519 = vector.load %arg13[%c0_373, %c0_374, %c0_375] : memref<4x16x32xf32, #tpu.memory_space<vmem>>, vector<4x16x32xf32>
    %1520 = arith.truncf %1519 : vector<4x16x32xf32> to vector<4x16x32xbf16>
    %c0_376 = arith.constant 0 : index
    %c0_377 = arith.constant 0 : index
    %c0_378 = arith.constant 0 : index
    %1521 = vector.load %arg9[%c0_376, %c0_377, %c0_378] : memref<4x16x32xbf16, #tpu.memory_space<vmem>>, vector<4x16x32xbf16>
    tpu.vector_store %arg9[%c0_376, %c0_377, %c0_378], %1520 {strides = array<i32>} : memref<4x16x32xbf16, #tpu.memory_space<vmem>>, vector<4x16x32xbf16>,
    %c0_379 = arith.constant 0 : index
    %c0_380 = arith.constant 0 : index
    %c0_381 = arith.constant 0 : index
    %1522 = vector.load %arg14[%c0_379, %c0_380, %c0_381] : memref<4x16x32xf32, #tpu.memory_space<vmem>>, vector<4x16x32xf32>
    %1523 = arith.truncf %1522 : vector<4x16x32xf32> to vector<4x16x32xbf16>
    %c0_382 = arith.constant 0 : index
    %c0_383 = arith.constant 0 : index
    %c0_384 = arith.constant 0 : index
    %1524 = vector.load %arg10[%c0_382, %c0_383, %c0_384] : memref<4x16x32xbf16, #tpu.memory_space<vmem>>, vector<4x16x32xbf16>
    tpu.vector_store %arg10[%c0_382, %c0_383, %c0_384], %1523 {strides = array<i32>} : memref<4x16x32xbf16, #tpu.memory_space<vmem>>, vector<4x16x32xbf16>,
    return
  }
  func.func @transform_0(%arg0: i32, %arg1: i32) -> (i32, i32, i32) {
    %c0_i32 = arith.constant 0 : i32
    %c0_i32_0 = arith.constant 0 : i32
    return %arg1, %arg0, %c0_i32 : i32, i32, i32
  }
  func.func @transform_1(%arg0: i32, %arg1: i32) -> (i32, i32, i32) {
    %c0_i32 = arith.constant 0 : i32
    %0 = arith.subi %c0_i32, %arg1 : i32
    %c0_i32_0 = arith.constant 0 : i32
    %c0_i32_1 = arith.constant 0 : i32
    return %0, %arg0, %c0_i32_0 : i32, i32, i32
  }
  func.func @transform_2(%arg0: i32, %arg1: i32) -> (i32, i32) {
    %c0_i32 = arith.constant 0 : i32
    %c0_i32_0 = arith.constant 0 : i32
    return %arg0, %c0_i32 : i32, i32
  }
  func.func @transform_3(%arg0: i32, %arg1: i32) -> (i32, i32) {
    %c0_i32 = arith.constant 0 : i32
    %c0_i32_0 = arith.constant 0 : i32
    %c0_i32_1 = arith.constant 0 : i32
    return %c0_i32, %c0_i32_0 : i32, i32
  }
  func.func @transform_4(%arg0: i32, %arg1: i32) -> (i32, i32) {
    %c0_i32 = arith.constant 0 : i32
    %c0_i32_0 = arith.constant 0 : i32
    %c0_i32_1 = arith.constant 0 : i32
    return %c0_i32, %c0_i32_0 : i32, i32
  }
  func.func @transform_5(%arg0: i32, %arg1: i32) -> (i32, i32) {
    %c0_i32 = arith.constant 0 : i32
    %c0_i32_0 = arith.constant 0 : i32
    %c0_i32_1 = arith.constant 0 : i32
    return %c0_i32, %c0_i32_0 : i32, i32
  }
  func.func @transform_6(%arg0: i32, %arg1: i32) -> (i32, i32) {
    %c0_i32 = arith.constant 0 : i32
    %c0_i32_0 = arith.constant 0 : i32
    %c0_i32_1 = arith.constant 0 : i32
    return %c0_i32, %c0_i32_0 : i32, i32
  }
  func.func @transform_7(%arg0: i32, %arg1: i32) -> (i32, i32, i32) {
    %c0_i32 = arith.constant 0 : i32
    %c0_i32_0 = arith.constant 0 : i32
    return %arg0, %arg1, %c0_i32 : i32, i32, i32
  }
  func.func @transform_8(%arg0: i32, %arg1: i32) -> (i32, i32, i32) {
    %c0_i32 = arith.constant 0 : i32
    %0 = arith.subi %c0_i32, %arg1 : i32
    %c0_i32_0 = arith.constant 0 : i32
    %c0_i32_1 = arith.constant 0 : i32
    return %arg0, %0, %c0_i32_0 : i32, i32, i32
  }
}

</mosaic_0001>

<llo_original>
// kernel: tpu_custom_call.1
$region0: #{tpu_custom_call.1}
  #allocation0 [shape = 'u32[]', space=smem, size = 0x4, offset = 0x4, fixed_abs, tag = 'smem constant byte address 0x4 - core index']
  #allocation1 [shape = 'u32[72,128]{1,0:T(1,128)}', space=vmem, size = 0x9000, scoped, tag = 'internal scratch']
  #allocation2 [shape = 'f32[4,32]{1,0:T(4,128)}', space=vmem, size = 0x800, scoped, tag = 'scratch operand']
  #allocation3 [shape = 'f32[4,32]{1,0:T(4,128)}', space=vmem, size = 0x800, scoped, tag = 'scratch operand']
  #allocation4 [shape = 'f32[4,16,32]{2,1,0:T(8,128)}', space=vmem, size = 0x8000, scoped, tag = 'scratch operand']
  #allocation5 [shape = 'f32[4,16,32]{2,1,0:T(8,128)}', space=vmem, size = 0x8000, scoped, tag = 'scratch operand']
  %s0 = inlined_call_operand.hbm [shape: bf16[16,4,96], index: 0, kind: input, shape index: {}]
  %s1 = inlined_call_operand.hbm [shape: bf16[16,4,96], index: 1, kind: input, shape index: {}]
  %s2 = inlined_call_operand.vmem [shape: s32[4,1], index: 2, kind: input, shape index: {}]
  %s3 = inlined_call_operand.hbm [shape: f32[32,96], index: 3, kind: input, shape index: {}]
  %s4 = inlined_call_operand.hbm [shape: f32[32,96], index: 4, kind: input, shape index: {}]
  %s5 = inlined_call_operand.vmem [shape: f32[1,96], index: 5, kind: input, shape index: {}]
  %s6 = inlined_call_operand.vmem [shape: f32[1,96], index: 6, kind: input, shape index: {}]
  %s7 = inlined_call_operand.hbm [shape: bf16[4,16,32], index: 7, kind: output, shape index: {0}]
  %s8 = inlined_call_operand.hbm [shape: bf16[4,16,32], index: 8, kind: output, shape index: {1}]
  %9 = xla_tuple %s7, %s8
  %s10 = sld [smem:[#allocation0]]
  $region66: #{tpu_custom_call.1} parent=0
    _
  %s12 = ssub.s32 1, %s10
  %s13 = scalar_select 0, %s12, %s10
  $region1: #{tpu_custom_call.1} parent=0
    #allocation6 [shape = 'u8[16384]{0}', space=vmem, size = 0x4000, scoped, tag = 'input window, operand 0, single buffered']
    #allocation7 [shape = 's32[1]{0}', space=sflag, size = 0x4, scoped, tag = 'scoped memory for tpu_custom_call.1']
    #allocation8 [shape = 's32[1]{0}', space=sflag, size = 0x4, scoped, tag = 'scoped memory for tpu_custom_call.1']
    #allocation9 [shape = 'u8[16384]{0}', space=vmem, size = 0x4000, scoped, tag = 'input window, operand 1, single buffered']
    #allocation10 [shape = 's32[1]{0}', space=sflag, size = 0x4, scoped, tag = 'scoped memory for tpu_custom_call.1']
    #allocation11 [shape = 'u8[16384]{0}', space=vmem, size = 0x4000, scoped, tag = 'input window, operand 3, single buffered']
    #allocation12 [shape = 'u8[16384]{0}', space=vmem, size = 0x4000, scoped, tag = 'input window, operand 4, single buffered']
    #allocation13 [shape = 's32[1]{0}', space=sflag, size = 0x4, scoped, tag = 'scoped memory for tpu_custom_call.1']
    #allocation14 [shape = 'u8[16384]{0}', space=vmem, size = 0x4000, scoped, tag = 'output window, operand 0, single buffered']
    #allocation15 [shape = 'u8[16384]{0}', space=vmem, size = 0x4000, scoped, tag = 'output window, operand 1, single buffered']
    #allocation16 [shape = 's32[1]{0}', space=sflag, size = 0x4, scoped, tag = 'scoped memory for tpu_custom_call.1']
    %14 = vsyncpa [#allocation7], 0
    %15 = vsyncpa [#allocation10], 0
    %16 = vsyncpa [#allocation13], 0
    %17 = vsyncpa [#allocation8], 0
    %18 = vsyncpa [#allocation16], 0
    // Predicated region
    $region2: #{tpu_custom_call.1} parent=1 // pred_check
      _
    $region3: #{tpu_custom_call.1} parent=1 // pred_check_branch
      %20 = sbr.rel (0) target = $region5
    $region4: #{tpu_custom_call.1} parent=1 // pred_region
      %22 = vsyncadd [#allocation7], 0
      %s23 = sshll.u32 %s0, 4
      %s24 = int_to_ptr.hbm [resolvable:$true] %s23
      %s25 = sshll.u32 [#allocation6], 4
      %s26 = int_to_ptr.vmem [resolvable:$true] %s25
      %31 = dma.hbm_to_vmem [thread:$0]  %s24, 512, %s26, [#allocation7], 32, 32, 2
    $region5: #{tpu_custom_call.1} parent=1 // pred_fallthru
      _
    // Predicated region
    $region6: #{tpu_custom_call.1} parent=1 // pred_check
      _
    $region7: #{tpu_custom_call.1} parent=1 // pred_check_branch
      %33 = sbr.rel (0) target = $region9
    $region8: #{tpu_custom_call.1} parent=1 // pred_region
      %s34 = ssub.s32 0, 0
      %s35 = smul.u32 16, %s34
      %37 = vsyncadd [#allocation10], 0
      %s38 = smul.addr %s35, 2
      %s39 = scalar_lea.hbm %s1, %s38
      %s40 = sshll.u32 %s39, 4
      %s41 = int_to_ptr.hbm [resolvable:$true] %s40
      %s42 = sshll.u32 [#allocation9], 4
      %s43 = int_to_ptr.vmem [resolvable:$true] %s42
      %48 = dma.hbm_to_vmem [thread:$0]  %s41, 512, %s43, [#allocation10], 32, 32, 2
    $region9: #{tpu_custom_call.1} parent=1 // pred_fallthru
      _
    // Predicated region
    $region10: #{tpu_custom_call.1} parent=1 // pred_check
      _
    $region11: #{tpu_custom_call.1} parent=1 // pred_check_branch
      %50 = sbr.rel (0) target = $region13
    $region12: #{tpu_custom_call.1} parent=1 // pred_region
      _
    $region13: #{tpu_custom_call.1} parent=1 // pred_fallthru
      _
    // Predicated region
    $region14: #{tpu_custom_call.1} parent=1 // pred_check
      _
    $region15: #{tpu_custom_call.1} parent=1 // pred_check_branch
      %52 = sbr.rel (0) target = $region17
    $region16: #{tpu_custom_call.1} parent=1 // pred_region
      %54 = vsyncadd [#allocation10], 0
      %s55 = sshll.u32 %s3, 4
      %s56 = int_to_ptr.hbm [resolvable:$true] %s55
      %s57 = sshll.u32 [#allocation11], 4
      %s58 = int_to_ptr.vmem [resolvable:$true] %s57
      %63 = dma.hbm_to_vmem [thread:$0]  %s56, 512, %s58, [#allocation10], 128, 128, 8
    $region17: #{tpu_custom_call.1} parent=1 // pred_fallthru
      _
    // Predicated region
    $region18: #{tpu_custom_call.1} parent=1 // pred_check
      _
    $region19: #{tpu_custom_call.1} parent=1 // pred_check_branch
      %65 = sbr.rel (0) target = $region21
    $region20: #{tpu_custom_call.1} parent=1 // pred_region
      %67 = vsyncadd [#allocation13], 0
      %s68 = sshll.u32 %s4, 4
      %s69 = int_to_ptr.hbm [resolvable:$true] %s68
      %s70 = sshll.u32 [#allocation12], 4
      %s71 = int_to_ptr.vmem [resolvable:$true] %s70
      %76 = dma.hbm_to_vmem [thread:$0]  %s69, 512, %s71, [#allocation13], 128, 128, 8
    $region21: #{tpu_custom_call.1} parent=1 // pred_fallthru
      _
    // Predicated region
    $region22: #{tpu_custom_call.1} parent=1 // pred_check
      _
    $region23: #{tpu_custom_call.1} parent=1 // pred_check_branch
      %78 = sbr.rel (0) target = $region25
    $region24: #{tpu_custom_call.1} parent=1 // pred_region
      _
    $region25: #{tpu_custom_call.1} parent=1 // pred_fallthru
      _
    // Predicated region
    $region26: #{tpu_custom_call.1} parent=1 // pred_check
      _
    $region27: #{tpu_custom_call.1} parent=1 // pred_check_branch
      %80 = sbr.rel (0) target = $region29
    $region28: #{tpu_custom_call.1} parent=1 // pred_region
      _
    $region29: #{tpu_custom_call.1} parent=1 // pred_fallthru
      _
    // Predicated region
    $region30: #{tpu_custom_call.1} parent=1 // pred_check
      _
    $region31: #{tpu_custom_call.1} parent=1 // pred_check_branch
      %82 = sbr.rel (0) target = $region33
    $region32: #{tpu_custom_call.1} parent=1 // pred_region
      %84 = dma.done [#allocation7], 512
    $region33: #{tpu_custom_call.1} parent=1 // pred_fallthru
      _
    // Predicated region
    $region34: #{tpu_custom_call.1} parent=1 // pred_check
      _
    $region35: #{tpu_custom_call.1} parent=1 // pred_check_branch
      %86 = sbr.rel (0) target = $region37
    $region36: #{tpu_custom_call.1} parent=1 // pred_region
      %88 = dma.done [#allocation10], 512
    $region37: #{tpu_custom_call.1} parent=1 // pred_fallthru
      _
    // Predicated region
    $region38: #{tpu_custom_call.1} parent=1 // pred_check
      _
    $region39: #{tpu_custom_call.1} parent=1 // pred_check_branch
      %90 = sbr.rel (0) target = $region41
    $region40: #{tpu_custom_call.1} parent=1 // pred_region
      %92 = dma.done [#allocation10], 512
    $region41: #{tpu_custom_call.1} parent=1 // pred_fallthru
      _
    // Predicated region
    $region42: #{tpu_custom_call.1} parent=1 // pred_check
      _
    $region43: #{tpu_custom_call.1} parent=1 // pred_check_branch
      %94 = sbr.rel (0) target = $region45
    $region44: #{tpu_custom_call.1} parent=1 // pred_region
      %96 = dma.done [#allocation13], 512
    $region45: #{tpu_custom_call.1} parent=1 // pred_fallthru
      _
    %s97 = ssub.s32 0, 0
    %s98 = smul.u32 16, %s97
    %s99 = ssub.s32 0, 0
    %s100 = smul.u32 2, %s99
    %p101 = scmp.eq.s32.totalorder 0, 0
    // Predicated region
    $region46: #{tpu_custom_call.1} parent=1 // pred_check
      %p102 = pneg %p101
    $region47: #{tpu_custom_call.1} parent=1 // pred_check_branch
      %104 = sbr.rel (%p102) target = $region49
    $region48: #{tpu_custom_call.1} parent=1 // pred_region
      %vm105 = vcmask 257024
      %106 = vst.msk [vmem:[#allocation2] sm:$0xf] %vm105, 0.0
      %107 = vst.msk [vmem:[#allocation3] sm:$0xf] %vm105, 0.0
    $region49: #{tpu_custom_call.1} parent=1 // pred_fallthru
      _
    %v108 = vld [vmem:[#allocation11] sm:$0xff]
    %v109 = vld [vmem:[#allocation11 + $0x8] sm:$0xff]
    %v110 = vld [vmem:[#allocation11 + $0x10] sm:$0xff]
    %v111 = vld [vmem:[#allocation11 + $0x18] sm:$0xff]
    %v112 = vld [vmem:[#allocation12] sm:$0xff]
    %v113 = vld [vmem:[#allocation12 + $0x8] sm:$0xff]
    %v114 = vld [vmem:[#allocation12 + $0x10] sm:$0xff]
    %v115 = vld [vmem:[#allocation12 + $0x18] sm:$0xff]
    %v116 = vld [vmem:[%s5] sm:$0x1]
    %v117 = vld [vmem:[%s6] sm:$0x1]
    %v118 = vld [vmem:[%s2] sm:$0xf]
    %s119 = smul.u32 0, 16
    %s120 = ssub.s32 0, 0
    %s121 = smul.u32 %s120, 16
    %v122 = vld [vmem:[#allocation2] sm:$0xf]
    %v123 = vld [vmem:[#allocation3] sm:$0xf]
    %v125 = vperm.slane %v116, 0
    %vm127 = vcmask 261120
    %v129 = vsel %vm127, %v122, 0
    %131 = vmatpush.msra.mxu0 0.0
    %132 = vmatpush.msra.mxu0 0.0
    %133 = vmatpush.msra.mxu0 0.0
    %134 = vmatpush.msra.mxu0 0.0
    %135 = vmatpush.msra.mxu0 0.0
    %136 = vmatpush.msra.mxu0 0.0
    %137 = vmatpush.msra.mxu0 0.0
    %138 = vmatpush.msra.mxu0 0.0
    %139 = vmatpush.msra.mxu0 0.0
    %140 = vmatpush.msra.mxu0 0.0
    %141 = vmatpush.msra.mxu0 0.0
    %142 = vmatpush.msra.mxu0 0.0
    %143 = vmatpush.msra.mxu0 %v111
    %144 = vmatpush.msra.mxu0 %v110
    %145 = vmatpush.msra.mxu0 %v109
    %146 = vmatpush.msra.mxu0 %v108
    %147 = vmatmul.f32.gmra.mxu0 %v129
    %v148 = vpop.f32.mrf.mxu0
    %v149 = vadd.f32 %v125, %v148
    %150 = vdwg.mxu0
    %v152 = vperm.slane %v117, 0
    %v155 = vsel %vm127, %v123, 0
    %157 = vmatpush.msra.mxu0 0.0
    %158 = vmatpush.msra.mxu0 0.0
    %159 = vmatpush.msra.mxu0 0.0
    %160 = vmatpush.msra.mxu0 0.0
    %161 = vmatpush.msra.mxu0 0.0
    %162 = vmatpush.msra.mxu0 0.0
    %163 = vmatpush.msra.mxu0 0.0
    %164 = vmatpush.msra.mxu0 0.0
    %165 = vmatpush.msra.mxu0 0.0
    %166 = vmatpush.msra.mxu0 0.0
    %167 = vmatpush.msra.mxu0 0.0
    %168 = vmatpush.msra.mxu0 0.0
    %169 = vmatpush.msra.mxu0 %v115
    %170 = vmatpush.msra.mxu0 %v114
    %171 = vmatpush.msra.mxu0 %v113
    %172 = vmatpush.msra.mxu0 %v112
    %173 = vmatmul.f32.gmra.mxu0 %v155
    %v174 = vpop.f32.mrf.mxu0
    %v175 = vadd.f32 %v152, %v174
    %176 = vdwg.mxu0
    %v177 = vld [vmem:[#allocation6] sm:$0x3]
    %v178 = vunpack.c.l.bf16 %v177
    %s179 = scalar_lea.vmem [#allocation9], 30
    %v180 = vld [vmem:[%s179] sm:$0x3]
    %v181 = vunpack.c.l.bf16 %v180
    %v182 = vadd.f32 %v178, %v149
    %v183 = vxor.u32 %v182, 2147483648
    %v184 = vmul.f32 %v183, 1.442695
    %v185 = vpow.pop %v184
    %v186 = vadd.f32 %v185, 1.0
    %v187 = vrcp.pop %v186
    %v188 = vmul.f32 %v186, %v187
    %v189 = vsub.f32 1.0, %v188
    %v190 = vmul.f32 %v187, %v189
    %v191 = vadd.f32 %v187, %v190
    %vm192 = vweird.f32 %v186
    %vm193 = vweird.f32 %v187
    %vm194 = vmor %vm192, %vm193
    %v195 = vsel %vm194, %v187, %v191
    %v196 = vand.u32 2147483647, %v186
    %vm197 = vcmp.eq.f32.partialorder %v196, 8.507059e+37
    %v198 = vand.u32 %v186, 2147483648
    %v199 = vor.u32 1.1754944e-38, %v198
    %v200 = vsel %vm197, %v199, %v195
    %v201 = vmul.f32 1.0, %v200
    %203 = vrot.lane.b32.xlu0 %v149, 64
    %v204 = vpop.permute.xlu0 %203
    %v206 = vmul.f32 %v201, %v204
    %208 = vrot.lane.b32.xlu0 %v206, 64
    %v209 = vpop.permute.xlu0 %208
    %v211 = vadd.f32 %v178, %v209
    %v212 = vtanh.pop %v211
    %v213 = vsub.f32 1.0, %v201
    %215 = vrot.lane.b32.xlu0 %v212, 96
    %v216 = vpop.permute.xlu0 %215
    %v218 = vmul.f32 %v213, %v216
    %219 = vrot.lane.b32.xlu0 %v122, 32
    %v220 = vpop.permute.xlu0 %219
    %v222 = vmul.f32 %v201, %v220
    %v223 = vadd.f32 %v218, %v222
    %v224 = vadd.f32 %v181, %v175
    %v225 = vxor.u32 %v224, 2147483648
    %v226 = vmul.f32 %v225, 1.442695
    %v227 = vpow.pop %v226
    %v228 = vadd.f32 %v227, 1.0
    %v229 = vrcp.pop %v228
    %v230 = vmul.f32 %v228, %v229
    %v231 = vsub.f32 1.0, %v230
    %v232 = vmul.f32 %v229, %v231
    %v233 = vadd.f32 %v229, %v232
    %vm234 = vweird.f32 %v228
    %vm235 = vweird.f32 %v229
    %vm236 = vmor %vm234, %vm235
    %v237 = vsel %vm236, %v229, %v233
    %v238 = vand.u32 2147483647, %v228
    %vm239 = vcmp.eq.f32.partialorder %v238, 8.507059e+37
    %v240 = vand.u32 %v228, 2147483648
    %v241 = vor.u32 1.1754944e-38, %v240
    %v242 = vsel %vm239, %v241, %v237
    %v243 = vmul.f32 1.0, %v242
    %245 = vrot.lane.b32.xlu0 %v175, 64
    %v246 = vpop.permute.xlu0 %245
    %v248 = vmul.f32 %v243, %v246
    %250 = vrot.lane.b32.xlu0 %v248, 64
    %v251 = vpop.permute.xlu0 %250
    %v253 = vadd.f32 %v181, %v251
    %v254 = vtanh.pop %v253
    %v255 = vsub.f32 1.0, %v243
    %257 = vrot.lane.b32.xlu0 %v254, 96
    %v258 = vpop.permute.xlu0 %257
    %v260 = vmul.f32 %v255, %v258
    %261 = vrot.lane.b32.xlu0 %v123, 32
    %v262 = vpop.permute.xlu0 %261
    %v264 = vmul.f32 %v243, %v262
    %v265 = vadd.f32 %v260, %v264
    %v266 = vstv %s119
    %vm267 = vcmp.gt.s32.totalorder %v118, %v266
    %v268 = vsel %vm267, 1, 0
    %v269 = vcvt.s32.f32 %v268
    %s270 = sadd.s32 %s121, 15
    %v271 = vstv %s270
    %vm272 = vcmp.gt.s32.totalorder %v118, %v271
    %v273 = vsel %vm272, 1, 0
    %v274 = vcvt.s32.f32 %v273
    %276 = vset.pattern.permute.xlu0 0
    %277 = vperm.xlu0 %276, %v269
    %v278 = vpop.permute.xlu0 %277
    %281 = vst [vmem:[#allocation1] ss:$2 sm:$0xff] %v223
    %v282 = vld.sshfl [vmem:[#allocation1] sm:$0xff pattern:$0x75316420]
    %283 = vrot.lane.b32.xlu0 %v282, 96
    %v284 = vpop.permute.xlu0 %283
    %v286 = vmul.f32 %v278, %v284
    %288 = vset.pattern.permute.xlu0 0
    %289 = vperm.xlu0 %288, %v274
    %v290 = vpop.permute.xlu0 %289
    %293 = vst [vmem:[#allocation1] ss:$2 sm:$0xff] %v265
    %v294 = vld.sshfl [vmem:[#allocation1] sm:$0xff pattern:$0x75316420]
    %295 = vrot.lane.b32.xlu0 %v294, 96
    %v296 = vpop.permute.xlu0 %295
    %v298 = vmul.f32 %v290, %v296
    %v300 = vrot.slane %v286, 1
    %v301 = vrot.slane %v286, 2
    %v302 = vrot.slane %v286, 3
    %vm306 = vcmask 253952
    %307 = vst.msk [vmem:[#allocation4] sm:$0x1] %vm306, %v286
    %308 = vst.msk [vmem:[#allocation4 + $0x10] sm:$0x1] %vm306, %v300
    %309 = vst.msk [vmem:[#allocation4 + $0x20] sm:$0x1] %vm306, %v301
    %310 = vst.msk [vmem:[#allocation4 + $0x30] sm:$0x1] %vm306, %v302
    %v312 = vrot.slane %v298, 1
    %v313 = vrot.slane %v298, 2
    %v314 = vrot.slane %v298, 3
    %318 = vst.msk [vmem:[#allocation5 + $0xf] sm:$0x1] %vm306, %v298
    %319 = vst.msk [vmem:[#allocation5 + $0x1f] sm:$0x1] %vm306, %v312
    %320 = vst.msk [vmem:[#allocation5 + $0x2f] sm:$0x1] %vm306, %v313
    %321 = vst.msk [vmem:[#allocation5 + $0x3f] sm:$0x1] %vm306, %v314
    %v322 = vsub.f32 1.0, %v269
    %324 = vset.pattern.permute.xlu0 0
    %325 = vperm.xlu0 %324, %v322
    %v326 = vpop.permute.xlu0 %325
    %v328 = vmul.f32 %v326, %v122
    %v329 = vadd.f32 %v286, %v328
    %v330 = vsub.f32 1.0, %v274
    %332 = vset.pattern.permute.xlu0 0
    %333 = vperm.xlu0 %332, %v330
    %v334 = vpop.permute.xlu0 %333
    %v336 = vmul.f32 %v334, %v123
    %v337 = vadd.f32 %v298, %v336
    %v339 = vsel %vm127, %v329, 0
    %341 = vmatpush.msra.mxu0 0.0
    %342 = vmatpush.msra.mxu0 0.0
    %343 = vmatpush.msra.mxu0 0.0
    %344 = vmatpush.msra.mxu0 0.0
    %345 = vmatpush.msra.mxu0 0.0
    %346 = vmatpush.msra.mxu0 0.0
    %347 = vmatpush.msra.mxu0 0.0
    %348 = vmatpush.msra.mxu0 0.0
    %349 = vmatpush.msra.mxu0 0.0
    %350 = vmatpush.msra.mxu0 0.0
    %351 = vmatpush.msra.mxu0 0.0
    %352 = vmatpush.msra.mxu0 0.0
    %353 = vmatpush.msra.mxu0 %v111
    %354 = vmatpush.msra.mxu0 %v110
    %355 = vmatpush.msra.mxu0 %v109
    %356 = vmatpush.msra.mxu0 %v108
    %357 = vmatmul.f32.gmra.mxu0 %v339
    %v358 = vpop.f32.mrf.mxu0
    %v359 = vadd.f32 %v125, %v358
    %360 = vdwg.mxu0
    %v362 = vsel %vm127, %v337, 0
    %364 = vmatpush.msra.mxu0 0.0
    %365 = vmatpush.msra.mxu0 0.0
    %366 = vmatpush.msra.mxu0 0.0
    %367 = vmatpush.msra.mxu0 0.0
    %368 = vmatpush.msra.mxu0 0.0
    %369 = vmatpush.msra.mxu0 0.0
    %370 = vmatpush.msra.mxu0 0.0
    %371 = vmatpush.msra.mxu0 0.0
    %372 = vmatpush.msra.mxu0 0.0
    %373 = vmatpush.msra.mxu0 0.0
    %374 = vmatpush.msra.mxu0 0.0
    %375 = vmatpush.msra.mxu0 0.0
    %376 = vmatpush.msra.mxu0 %v115
    %377 = vmatpush.msra.mxu0 %v114
    %378 = vmatpush.msra.mxu0 %v113
    %379 = vmatpush.msra.mxu0 %v112
    %380 = vmatmul.f32.gmra.mxu0 %v362
    %v381 = vpop.f32.mrf.mxu0
    %v382 = vadd.f32 %v152, %v381
    %383 = vdwg.mxu0
    %s384 = scalar_lea.vmem [#allocation6], 2
    %v385 = vld [vmem:[%s384] sm:$0x3]
    %v386 = vunpack.c.l.bf16 %v385
    %s387 = scalar_lea.vmem [#allocation9], 28
    %v388 = vld [vmem:[%s387] sm:$0x3]
    %v389 = vunpack.c.l.bf16 %v388
    %v390 = vadd.f32 %v386, %v359
    %v391 = vxor.u32 %v390, 2147483648
    %v392 = vmul.f32 %v391, 1.442695
    %v393 = vpow.pop %v392
    %v394 = vadd.f32 %v393, 1.0
    %v395 = vrcp.pop %v394
    %v396 = vmul.f32 %v394, %v395
    %v397 = vsub.f32 1.0, %v396
    %v398 = vmul.f32 %v395, %v397
    %v399 = vadd.f32 %v395, %v398
    %vm400 = vweird.f32 %v394
    %vm401 = vweird.f32 %v395
    %vm402 = vmor %vm400, %vm401
    %v403 = vsel %vm402, %v395, %v399
    %v404 = vand.u32 2147483647, %v394
    %vm405 = vcmp.eq.f32.partialorder %v404, 8.507059e+37
    %v406 = vand.u32 %v394, 2147483648
    %v407 = vor.u32 1.1754944e-38, %v406
    %v408 = vsel %vm405, %v407, %v403
    %v409 = vmul.f32 1.0, %v408
    %411 = vrot.lane.b32.xlu0 %v359, 64
    %v412 = vpop.permute.xlu0 %411
    %v414 = vmul.f32 %v409, %v412
    %416 = vrot.lane.b32.xlu0 %v414, 64
    %v417 = vpop.permute.xlu0 %416
    %v419 = vadd.f32 %v386, %v417
    %v420 = vtanh.pop %v419
    %v421 = vsub.f32 1.0, %v409
    %423 = vrot.lane.b32.xlu0 %v420, 96
    %v424 = vpop.permute.xlu0 %423
    %v426 = vmul.f32 %v421, %v424
    %427 = vrot.lane.b32.xlu0 %v329, 32
    %v428 = vpop.permute.xlu0 %427
    %v430 = vmul.f32 %v409, %v428
    %v431 = vadd.f32 %v426, %v430
    %v432 = vadd.f32 %v389, %v382
    %v433 = vxor.u32 %v432, 2147483648
    %v434 = vmul.f32 %v433, 1.442695
    %v435 = vpow.pop %v434
    %v436 = vadd.f32 %v435, 1.0
    %v437 = vrcp.pop %v436
    %v438 = vmul.f32 %v436, %v437
    %v439 = vsub.f32 1.0, %v438
    %v440 = vmul.f32 %v437, %v439
    %v441 = vadd.f32 %v437, %v440
    %vm442 = vweird.f32 %v436
    %vm443 = vweird.f32 %v437
    %vm444 = vmor %vm442, %vm443
    %v445 = vsel %vm444, %v437, %v441
    %v446 = vand.u32 2147483647, %v436
    %vm447 = vcmp.eq.f32.partialorder %v446, 8.507059e+37
    %v448 = vand.u32 %v436, 2147483648
    %v449 = vor.u32 1.1754944e-38, %v448
    %v450 = vsel %vm447, %v449, %v445
    %v451 = vmul.f32 1.0, %v450
    %453 = vrot.lane.b32.xlu0 %v382, 64
    %v454 = vpop.permute.xlu0 %453
    %v456 = vmul.f32 %v451, %v454
    %458 = vrot.lane.b32.xlu0 %v456, 64
    %v459 = vpop.permute.xlu0 %458
    %v461 = vadd.f32 %v389, %v459
    %v462 = vtanh.pop %v461
    %v463 = vsub.f32 1.0, %v451
    %465 = vrot.lane.b32.xlu0 %v462, 96
    %v466 = vpop.permute.xlu0 %465
    %v468 = vmul.f32 %v463, %v466
    %469 = vrot.lane.b32.xlu0 %v337, 32
    %v470 = vpop.permute.xlu0 %469
    %v472 = vmul.f32 %v451, %v470
    %v473 = vadd.f32 %v468, %v472
    %s474 = sadd.s32 %s119, 1
    %v475 = vstv %s474
    %vm476 = vcmp.gt.s32.totalorder %v118, %v475
    %v477 = vsel %vm476, 1, 0
    %v478 = vcvt.s32.f32 %v477
    %s479 = sadd.s32 %s121, 14
    %v480 = vstv %s479
    %vm481 = vcmp.gt.s32.totalorder %v118, %v480
    %v482 = vsel %vm481, 1, 0
    %v483 = vcvt.s32.f32 %v482
    %485 = vset.pattern.permute.xlu0 0
    %486 = vperm.xlu0 %485, %v478
    %v487 = vpop.permute.xlu0 %486
    %490 = vst [vmem:[#allocation1] ss:$2 sm:$0xff] %v431
    %v491 = vld.sshfl [vmem:[#allocation1] sm:$0xff pattern:$0x75316420]
    %492 = vrot.lane.b32.xlu0 %v491, 96
    %v493 = vpop.permute.xlu0 %492
    %v495 = vmul.f32 %v487, %v493
    %497 = vset.pattern.permute.xlu0 0
    %498 = vperm.xlu0 %497, %v483
    %v499 = vpop.permute.xlu0 %498
    %502 = vst [vmem:[#allocation1] ss:$2 sm:$0xff] %v473
    %v503 = vld.sshfl [vmem:[#allocation1] sm:$0xff pattern:$0x75316420]
    %504 = vrot.lane.b32.xlu0 %v503, 96
    %v505 = vpop.permute.xlu0 %504
    %v507 = vmul.f32 %v499, %v505
    %v509 = vrot.slane %v495, 1
    %v510 = vrot.slane %v495, 2
    %v511 = vrot.slane %v495, 3
    %515 = vst.msk [vmem:[#allocation4 + $0x1] sm:$0x1] %vm306, %v495
    %516 = vst.msk [vmem:[#allocation4 + $0x11] sm:$0x1] %vm306, %v509
    %517 = vst.msk [vmem:[#allocation4 + $0x21] sm:$0x1] %vm306, %v510
    %518 = vst.msk [vmem:[#allocation4 + $0x31] sm:$0x1] %vm306, %v511
    %v520 = vrot.slane %v507, 1
    %v521 = vrot.slane %v507, 2
    %v522 = vrot.slane %v507, 3
    %526 = vst.msk [vmem:[#allocation5 + $0xe] sm:$0x1] %vm306, %v507
    %527 = vst.msk [vmem:[#allocation5 + $0x1e] sm:$0x1] %vm306, %v520
    %528 = vst.msk [vmem:[#allocation5 + $0x2e] sm:$0x1] %vm306, %v521
    %529 = vst.msk [vmem:[#allocation5 + $0x3e] sm:$0x1] %vm306, %v522
    %v530 = vsub.f32 1.0, %v478
    %532 = vset.pattern.permute.xlu0 0
    %533 = vperm.xlu0 %532, %v530
    %v534 = vpop.permute.xlu0 %533
    %v536 = vmul.f32 %v534, %v329
    %v537 = vadd.f32 %v495, %v536
    %v538 = vsub.f32 1.0, %v483
    %540 = vset.pattern.permute.xlu0 0
    %541 = vperm.xlu0 %540, %v538
    %v542 = vpop.permute.xlu0 %541
    %v544 = vmul.f32 %v542, %v337
    %v545 = vadd.f32 %v507, %v544
    %v547 = vsel %vm127, %v537, 0
    %549 = vmatpush.msra.mxu0 0.0
    %550 = vmatpush.msra.mxu0 0.0
    %551 = vmatpush.msra.mxu0 0.0
    %552 = vmatpush.msra.mxu0 0.0
    %553 = vmatpush.msra.mxu0 0.0
    %554 = vmatpush.msra.mxu0 0.0
    %555 = vmatpush.msra.mxu0 0.0
    %556 = vmatpush.msra.mxu0 0.0
    %557 = vmatpush.msra.mxu0 0.0
    %558 = vmatpush.msra.mxu0 0.0
    %559 = vmatpush.msra.mxu0 0.0
    %560 = vmatpush.msra.mxu0 0.0
    %561 = vmatpush.msra.mxu0 %v111
    %562 = vmatpush.msra.mxu0 %v110
    %563 = vmatpush.msra.mxu0 %v109
    %564 = vmatpush.msra.mxu0 %v108
    %565 = vmatmul.f32.gmra.mxu0 %v547
    %v566 = vpop.f32.mrf.mxu0
    %v567 = vadd.f32 %v125, %v566
    %568 = vdwg.mxu0
    %v570 = vsel %vm127, %v545, 0
    %572 = vmatpush.msra.mxu0 0.0
    %573 = vmatpush.msra.mxu0 0.0
    %574 = vmatpush.msra.mxu0 0.0
    %575 = vmatpush.msra.mxu0 0.0
    %576 = vmatpush.msra.mxu0 0.0
    %577 = vmatpush.msra.mxu0 0.0
    %578 = vmatpush.msra.mxu0 0.0
    %579 = vmatpush.msra.mxu0 0.0
    %580 = vmatpush.msra.mxu0 0.0
    %581 = vmatpush.msra.mxu0 0.0
    %582 = vmatpush.msra.mxu0 0.0
    %583 = vmatpush.msra.mxu0 0.0
    %584 = vmatpush.msra.mxu0 %v115
    %585 = vmatpush.msra.mxu0 %v114
    %586 = vmatpush.msra.mxu0 %v113
    %587 = vmatpush.msra.mxu0 %v112
    %588 = vmatmul.f32.gmra.mxu0 %v570
    %v589 = vpop.f32.mrf.mxu0
    %v590 = vadd.f32 %v152, %v589
    %591 = vdwg.mxu0
    %s592 = scalar_lea.vmem [#allocation6], 4
    %v593 = vld [vmem:[%s592] sm:$0x3]
    %v594 = vunpack.c.l.bf16 %v593
    %s595 = scalar_lea.vmem [#allocation9], 26
    %v596 = vld [vmem:[%s595] sm:$0x3]
    %v597 = vunpack.c.l.bf16 %v596
    %v598 = vadd.f32 %v594, %v567
    %v599 = vxor.u32 %v598, 2147483648
    %v600 = vmul.f32 %v599, 1.442695
    %v601 = vpow.pop %v600
    %v602 = vadd.f32 %v601, 1.0
    %v603 = vrcp.pop %v602
    %v604 = vmul.f32 %v602, %v603
    %v605 = vsub.f32 1.0, %v604
    %v606 = vmul.f32 %v603, %v605
    %v607 = vadd.f32 %v603, %v606
    %vm608 = vweird.f32 %v602
    %vm609 = vweird.f32 %v603
    %vm610 = vmor %vm608, %vm609
    %v611 = vsel %vm610, %v603, %v607
    %v612 = vand.u32 2147483647, %v602
    %vm613 = vcmp.eq.f32.partialorder %v612, 8.507059e+37
    %v614 = vand.u32 %v602, 2147483648
    %v615 = vor.u32 1.1754944e-38, %v614
    %v616 = vsel %vm613, %v615, %v611
    %v617 = vmul.f32 1.0, %v616
    %619 = vrot.lane.b32.xlu0 %v567, 64
    %v620 = vpop.permute.xlu0 %619
    %v622 = vmul.f32 %v617, %v620
    %624 = vrot.lane.b32.xlu0 %v622, 64
    %v625 = vpop.permute.xlu0 %624
    %v627 = vadd.f32 %v594, %v625
    %v628 = vtanh.pop %v627
    %v629 = vsub.f32 1.0, %v617
    %631 = vrot.lane.b32.xlu0 %v628, 96
    %v632 = vpop.permute.xlu0 %631
    %v634 = vmul.f32 %v629, %v632
    %635 = vrot.lane.b32.xlu0 %v537, 32
    %v636 = vpop.permute.xlu0 %635
    %v638 = vmul.f32 %v617, %v636
    %v639 = vadd.f32 %v634, %v638
    %v640 = vadd.f32 %v597, %v590
    %v641 = vxor.u32 %v640, 2147483648
    %v642 = vmul.f32 %v641, 1.442695
    %v643 = vpow.pop %v642
    %v644 = vadd.f32 %v643, 1.0
    %v645 = vrcp.pop %v644
    %v646 = vmul.f32 %v644, %v645
    %v647 = vsub.f32 1.0, %v646
    %v648 = vmul.f32 %v645, %v647
    %v649 = vadd.f32 %v645, %v648
    %vm650 = vweird.f32 %v644
    %vm651 = vweird.f32 %v645
    %vm652 = vmor %vm650, %vm651
    %v653 = vsel %vm652, %v645, %v649
    %v654 = vand.u32 2147483647, %v644
    %vm655 = vcmp.eq.f32.partialorder %v654, 8.507059e+37
    %v656 = vand.u32 %v644, 2147483648
    %v657 = vor.u32 1.1754944e-38, %v656
    %v658 = vsel %vm655, %v657, %v653
    %v659 = vmul.f32 1.0, %v658
    %661 = vrot.lane.b32.xlu0 %v590, 64
    %v662 = vpop.permute.xlu0 %661
    %v664 = vmul.f32 %v659, %v662
    %666 = vrot.lane.b32.xlu0 %v664, 64
    %v667 = vpop.permute.xlu0 %666
    %v669 = vadd.f32 %v597, %v667
    %v670 = vtanh.pop %v669
    %v671 = vsub.f32 1.0, %v659
    %673 = vrot.lane.b32.xlu0 %v670, 96
    %v674 = vpop.permute.xlu0 %673
    %v676 = vmul.f32 %v671, %v674
    %677 = vrot.lane.b32.xlu0 %v545, 32
    %v678 = vpop.permute.xlu0 %677
    %v680 = vmul.f32 %v659, %v678
    %v681 = vadd.f32 %v676, %v680
    %s682 = sadd.s32 %s119, 2
    %v683 = vstv %s682
    %vm684 = vcmp.gt.s32.totalorder %v118, %v683
    %v685 = vsel %vm684, 1, 0
    %v686 = vcvt.s32.f32 %v685
    %s687 = sadd.s32 %s121, 13
    %v688 = vstv %s687
    %vm689 = vcmp.gt.s32.totalorder %v118, %v688
    %v690 = vsel %vm689, 1, 0
    %v691 = vcvt.s32.f32 %v690
    %693 = vset.pattern.permute.xlu0 0
    %694 = vperm.xlu0 %693, %v686
    %v695 = vpop.permute.xlu0 %694
    %698 = vst [vmem:[#allocation1] ss:$2 sm:$0xff] %v639
    %v699 = vld.sshfl [vmem:[#allocation1] sm:$0xff pattern:$0x75316420]
    %700 = vrot.lane.b32.xlu0 %v699, 96
    %v701 = vpop.permute.xlu0 %700
    %v703 = vmul.f32 %v695, %v701
    %705 = vset.pattern.permute.xlu0 0
    %706 = vperm.xlu0 %705, %v691
    %v707 = vpop.permute.xlu0 %706
    %710 = vst [vmem:[#allocation1] ss:$2 sm:$0xff] %v681
    %v711 = vld.sshfl [vmem:[#allocation1] sm:$0xff pattern:$0x75316420]
    %712 = vrot.lane.b32.xlu0 %v711, 96
    %v713 = vpop.permute.xlu0 %712
    %v715 = vmul.f32 %v707, %v713
    %v717 = vrot.slane %v703, 1
    %v718 = vrot.slane %v703, 2
    %v719 = vrot.slane %v703, 3
    %723 = vst.msk [vmem:[#allocation4 + $0x2] sm:$0x1] %vm306, %v703
    %724 = vst.msk [vmem:[#allocation4 + $0x12] sm:$0x1] %vm306, %v717
    %725 = vst.msk [vmem:[#allocation4 + $0x22] sm:$0x1] %vm306, %v718
    %726 = vst.msk [vmem:[#allocation4 + $0x32] sm:$0x1] %vm306, %v719
    %v728 = vrot.slane %v715, 1
    %v729 = vrot.slane %v715, 2
    %v730 = vrot.slane %v715, 3
    %734 = vst.msk [vmem:[#allocation5 + $0xd] sm:$0x1] %vm306, %v715
    %735 = vst.msk [vmem:[#allocation5 + $0x1d] sm:$0x1] %vm306, %v728
    %736 = vst.msk [vmem:[#allocation5 + $0x2d] sm:$0x1] %vm306, %v729
    %737 = vst.msk [vmem:[#allocation5 + $0x3d] sm:$0x1] %vm306, %v730
    %v738 = vsub.f32 1.0, %v686
    %740 = vset.pattern.permute.xlu0 0
    %741 = vperm.xlu0 %740, %v738
    %v742 = vpop.permute.xlu0 %741
    %v744 = vmul.f32 %v742, %v537
    %v745 = vadd.f32 %v703, %v744
    %v746 = vsub.f32 1.0, %v691
    %748 = vset.pattern.permute.xlu0 0
    %749 = vperm.xlu0 %748, %v746
    %v750 = vpop.permute.xlu0 %749
    %v752 = vmul.f32 %v750, %v545
    %v753 = vadd.f32 %v715, %v752
    %v755 = vsel %vm127, %v745, 0
    %757 = vmatpush.msra.mxu0 0.0
    %758 = vmatpush.msra.mxu0 0.0
    %759 = vmatpush.msra.mxu0 0.0
    %760 = vmatpush.msra.mxu0 0.0
    %761 = vmatpush.msra.mxu0 0.0
    %762 = vmatpush.msra.mxu0 0.0
    %763 = vmatpush.msra.mxu0 0.0
    %764 = vmatpush.msra.mxu0 0.0
    %765 = vmatpush.msra.mxu0 0.0
    %766 = vmatpush.msra.mxu0 0.0
    %767 = vmatpush.msra.mxu0 0.0
    %768 = vmatpush.msra.mxu0 0.0
    %769 = vmatpush.msra.mxu0 %v111
    %770 = vmatpush.msra.mxu0 %v110
    %771 = vmatpush.msra.mxu0 %v109
    %772 = vmatpush.msra.mxu0 %v108
    %773 = vmatmul.f32.gmra.mxu0 %v755
    %v774 = vpop.f32.mrf.mxu0
    %v775 = vadd.f32 %v125, %v774
    %776 = vdwg.mxu0
    %v778 = vsel %vm127, %v753, 0
    %780 = vmatpush.msra.mxu0 0.0
    %781 = vmatpush.msra.mxu0 0.0
    %782 = vmatpush.msra.mxu0 0.0
    %783 = vmatpush.msra.mxu0 0.0
    %784 = vmatpush.msra.mxu0 0.0
    %785 = vmatpush.msra.mxu0 0.0
    %786 = vmatpush.msra.mxu0 0.0
    %787 = vmatpush.msra.mxu0 0.0
    %788 = vmatpush.msra.mxu0 0.0
    %789 = vmatpush.msra.mxu0 0.0
    %790 = vmatpush.msra.mxu0 0.0
    %791 = vmatpush.msra.mxu0 0.0
    %792 = vmatpush.msra.mxu0 %v115
    %793 = vmatpush.msra.mxu0 %v114
    %794 = vmatpush.msra.mxu0 %v113
    %795 = vmatpush.msra.mxu0 %v112
    %796 = vmatmul.f32.gmra.mxu0 %v778
    %v797 = vpop.f32.mrf.mxu0
    %v798 = vadd.f32 %v152, %v797
    %799 = vdwg.mxu0
    %s800 = scalar_lea.vmem [#allocation6], 6
    %v801 = vld [vmem:[%s800] sm:$0x3]
    %v802 = vunpack.c.l.bf16 %v801
    %s803 = scalar_lea.vmem [#allocation9], 24
    %v804 = vld [vmem:[%s803] sm:$0x3]
    %v805 = vunpack.c.l.bf16 %v804
    %v806 = vadd.f32 %v802, %v775
    %v807 = vxor.u32 %v806, 2147483648
    %v808 = vmul.f32 %v807, 1.442695
    %v809 = vpow.pop %v808
    %v810 = vadd.f32 %v809, 1.0
    %v811 = vrcp.pop %v810
    %v812 = vmul.f32 %v810, %v811
    %v813 = vsub.f32 1.0, %v812
    %v814 = vmul.f32 %v811, %v813
    %v815 = vadd.f32 %v811, %v814
    %vm816 = vweird.f32 %v810
    %vm817 = vweird.f32 %v811
    %vm818 = vmor %vm816, %vm817
    %v819 = vsel %vm818, %v811, %v815
    %v820 = vand.u32 2147483647, %v810
    %vm821 = vcmp.eq.f32.partialorder %v820, 8.507059e+37
    %v822 = vand.u32 %v810, 2147483648
    %v823 = vor.u32 1.1754944e-38, %v822
    %v824 = vsel %vm821, %v823, %v819
    %v825 = vmul.f32 1.0, %v824
    %827 = vrot.lane.b32.xlu0 %v775, 64
    %v828 = vpop.permute.xlu0 %827
    %v830 = vmul.f32 %v825, %v828
    %832 = vrot.lane.b32.xlu0 %v830, 64
    %v833 = vpop.permute.xlu0 %832
    %v835 = vadd.f32 %v802, %v833
    %v836 = vtanh.pop %v835
    %v837 = vsub.f32 1.0, %v825
    %839 = vrot.lane.b32.xlu0 %v836, 96
    %v840 = vpop.permute.xlu0 %839
    %v842 = vmul.f32 %v837, %v840
    %843 = vrot.lane.b32.xlu0 %v745, 32
    %v844 = vpop.permute.xlu0 %843
    %v846 = vmul.f32 %v825, %v844
    %v847 = vadd.f32 %v842, %v846
    %v848 = vadd.f32 %v805, %v798
    %v849 = vxor.u32 %v848, 2147483648
    %v850 = vmul.f32 %v849, 1.442695
    %v851 = vpow.pop %v850
    %v852 = vadd.f32 %v851, 1.0
    %v853 = vrcp.pop %v852
    %v854 = vmul.f32 %v852, %v853
    %v855 = vsub.f32 1.0, %v854
    %v856 = vmul.f32 %v853, %v855
    %v857 = vadd.f32 %v853, %v856
    %vm858 = vweird.f32 %v852
    %vm859 = vweird.f32 %v853
    %vm860 = vmor %vm858, %vm859
    %v861 = vsel %vm860, %v853, %v857
    %v862 = vand.u32 2147483647, %v852
    %vm863 = vcmp.eq.f32.partialorder %v862, 8.507059e+37
    %v864 = vand.u32 %v852, 2147483648
    %v865 = vor.u32 1.1754944e-38, %v864
    %v866 = vsel %vm863, %v865, %v861
    %v867 = vmul.f32 1.0, %v866
    %869 = vrot.lane.b32.xlu0 %v798, 64
    %v870 = vpop.permute.xlu0 %869
    %v872 = vmul.f32 %v867, %v870
    %874 = vrot.lane.b32.xlu0 %v872, 64
    %v875 = vpop.permute.xlu0 %874
    %v877 = vadd.f32 %v805, %v875
    %v878 = vtanh.pop %v877
    %v879 = vsub.f32 1.0, %v867
    %881 = vrot.lane.b32.xlu0 %v878, 96
    %v882 = vpop.permute.xlu0 %881
    %v884 = vmul.f32 %v879, %v882
    %885 = vrot.lane.b32.xlu0 %v753, 32
    %v886 = vpop.permute.xlu0 %885
    %v888 = vmul.f32 %v867, %v886
    %v889 = vadd.f32 %v884, %v888
    %s890 = sadd.s32 %s119, 3
    %v891 = vstv %s890
    %vm892 = vcmp.gt.s32.totalorder %v118, %v891
    %v893 = vsel %vm892, 1, 0
    %v894 = vcvt.s32.f32 %v893
    %s895 = sadd.s32 %s121, 12
    %v896 = vstv %s895
    %vm897 = vcmp.gt.s32.totalorder %v118, %v896
    %v898 = vsel %vm897, 1, 0
    %v899 = vcvt.s32.f32 %v898
    %901 = vset.pattern.permute.xlu0 0
    %902 = vperm.xlu0 %901, %v894
    %v903 = vpop.permute.xlu0 %902
    %906 = vst [vmem:[#allocation1] ss:$2 sm:$0xff] %v847
    %v907 = vld.sshfl [vmem:[#allocation1] sm:$0xff pattern:$0x75316420]
    %908 = vrot.lane.b32.xlu0 %v907, 96
    %v909 = vpop.permute.xlu0 %908
    %v911 = vmul.f32 %v903, %v909
    %913 = vset.pattern.permute.xlu0 0
    %914 = vperm.xlu0 %913, %v899
    %v915 = vpop.permute.xlu0 %914
    %918 = vst [vmem:[#allocation1] ss:$2 sm:$0xff] %v889
    %v919 = vld.sshfl [vmem:[#allocation1] sm:$0xff pattern:$0x75316420]
    %920 = vrot.lane.b32.xlu0 %v919, 96
    %v921 = vpop.permute.xlu0 %920
    %v923 = vmul.f32 %v915, %v921
    %v925 = vrot.slane %v911, 1
    %v926 = vrot.slane %v911, 2
    %v927 = vrot.slane %v911, 3
    %931 = vst.msk [vmem:[#allocation4 + $0x3] sm:$0x1] %vm306, %v911
    %932 = vst.msk [vmem:[#allocation4 + $0x13] sm:$0x1] %vm306, %v925
    %933 = vst.msk [vmem:[#allocation4 + $0x23] sm:$0x1] %vm306, %v926
    %934 = vst.msk [vmem:[#allocation4 + $0x33] sm:$0x1] %vm306, %v927
    %v936 = vrot.slane %v923, 1
    %v937 = vrot.slane %v923, 2
    %v938 = vrot.slane %v923, 3
    %942 = vst.msk [vmem:[#allocation5 + $0xc] sm:$0x1] %vm306, %v923
    %943 = vst.msk [vmem:[#allocation5 + $0x1c] sm:$0x1] %vm306, %v936
    %944 = vst.msk [vmem:[#allocation5 + $0x2c] sm:$0x1] %vm306, %v937
    %945 = vst.msk [vmem:[#allocation5 + $0x3c] sm:$0x1] %vm306, %v938
    %v946 = vsub.f32 1.0, %v894
    %948 = vset.pattern.permute.xlu0 0
    %949 = vperm.xlu0 %948, %v946
    %v950 = vpop.permute.xlu0 %949
    %v952 = vmul.f32 %v950, %v745
    %v953 = vadd.f32 %v911, %v952
    %v954 = vsub.f32 1.0, %v899
    %956 = vset.pattern.permute.xlu0 0
    %957 = vperm.xlu0 %956, %v954
    %v958 = vpop.permute.xlu0 %957
    %v960 = vmul.f32 %v958, %v753
    %v961 = vadd.f32 %v923, %v960
    %v963 = vsel %vm127, %v953, 0
    %965 = vmatpush.msra.mxu0 0.0
    %966 = vmatpush.msra.mxu0 0.0
    %967 = vmatpush.msra.mxu0 0.0
    %968 = vmatpush.msra.mxu0 0.0
    %969 = vmatpush.msra.mxu0 0.0
    %970 = vmatpush.msra.mxu0 0.0
    %971 = vmatpush.msra.mxu0 0.0
    %972 = vmatpush.msra.mxu0 0.0
    %973 = vmatpush.msra.mxu0 0.0
    %974 = vmatpush.msra.mxu0 0.0
    %975 = vmatpush.msra.mxu0 0.0
    %976 = vmatpush.msra.mxu0 0.0
    %977 = vmatpush.msra.mxu0 %v111
    %978 = vmatpush.msra.mxu0 %v110
    %979 = vmatpush.msra.mxu0 %v109
    %980 = vmatpush.msra.mxu0 %v108
    %981 = vmatmul.f32.gmra.mxu0 %v963
    %v982 = vpop.f32.mrf.mxu0
    %v983 = vadd.f32 %v125, %v982
    %984 = vdwg.mxu0
    %v986 = vsel %vm127, %v961, 0
    %988 = vmatpush.msra.mxu0 0.0
    %989 = vmatpush.msra.mxu0 0.0
    %990 = vmatpush.msra.mxu0 0.0
    %991 = vmatpush.msra.mxu0 0.0
    %992 = vmatpush.msra.mxu0 0.0
    %993 = vmatpush.msra.mxu0 0.0
    %994 = vmatpush.msra.mxu0 0.0
    %995 = vmatpush.msra.mxu0 0.0
    %996 = vmatpush.msra.mxu0 0.0
    %997 = vmatpush.msra.mxu0 0.0
    %998 = vmatpush.msra.mxu0 0.0
    %999 = vmatpush.msra.mxu0 0.0
    %1000 = vmatpush.msra.mxu0 %v115
    %1001 = vmatpush.msra.mxu0 %v114
    %1002 = vmatpush.msra.mxu0 %v113
    %1003 = vmatpush.msra.mxu0 %v112
    %1004 = vmatmul.f32.gmra.mxu0 %v986
    %v1005 = vpop.f32.mrf.mxu0
    %v1006 = vadd.f32 %v152, %v1005
    %1007 = vdwg.mxu0
    %s1008 = scalar_lea.vmem [#allocation6], 8
    %v1009 = vld [vmem:[%s1008] sm:$0x3]
    %v1010 = vunpack.c.l.bf16 %v1009
    %s1011 = scalar_lea.vmem [#allocation9], 22
    %v1012 = vld [vmem:[%s1011] sm:$0x3]
    %v1013 = vunpack.c.l.bf16 %v1012
    %v1014 = vadd.f32 %v1010, %v983
    %v1015 = vxor.u32 %v1014, 2147483648
    %v1016 = vmul.f32 %v1015, 1.442695
    %v1017 = vpow.pop %v1016
    %v1018 = vadd.f32 %v1017, 1.0
    %v1019 = vrcp.pop %v1018
    %v1020 = vmul.f32 %v1018, %v1019
    %v1021 = vsub.f32 1.0, %v1020
    %v1022 = vmul.f32 %v1019, %v1021
    %v1023 = vadd.f32 %v1019, %v1022
    %vm1024 = vweird.f32 %v1018
    %vm1025 = vweird.f32 %v1019
    %vm1026 = vmor %vm1024, %vm1025
    %v1027 = vsel %vm1026, %v1019, %v1023
    %v1028 = vand.u32 2147483647, %v1018
    %vm1029 = vcmp.eq.f32.partialorder %v1028, 8.507059e+37
    %v1030 = vand.u32 %v1018, 2147483648
    %v1031 = vor.u32 1.1754944e-38, %v1030
    %v1032 = vsel %vm1029, %v1031, %v1027
    %v1033 = vmul.f32 1.0, %v1032
    %1035 = vrot.lane.b32.xlu0 %v983, 64
    %v1036 = vpop.permute.xlu0 %1035
    %v1038 = vmul.f32 %v1033, %v1036
    %1040 = vrot.lane.b32.xlu0 %v1038, 64
    %v1041 = vpop.permute.xlu0 %1040
    %v1043 = vadd.f32 %v1010, %v1041
    %v1044 = vtanh.pop %v1043
    %v1045 = vsub.f32 1.0, %v1033
    %1047 = vrot.lane.b32.xlu0 %v1044, 96
    %v1048 = vpop.permute.xlu0 %1047
    %v1050 = vmul.f32 %v1045, %v1048
    %1051 = vrot.lane.b32.xlu0 %v953, 32
    %v1052 = vpop.permute.xlu0 %1051
    %v1054 = vmul.f32 %v1033, %v1052
    %v1055 = vadd.f32 %v1050, %v1054
    %v1056 = vadd.f32 %v1013, %v1006
    %v1057 = vxor.u32 %v1056, 2147483648
    %v1058 = vmul.f32 %v1057, 1.442695
    %v1059 = vpow.pop %v1058
    %v1060 = vadd.f32 %v1059, 1.0
    %v1061 = vrcp.pop %v1060
    %v1062 = vmul.f32 %v1060, %v1061
    %v1063 = vsub.f32 1.0, %v1062
    %v1064 = vmul.f32 %v1061, %v1063
    %v1065 = vadd.f32 %v1061, %v1064
    %vm1066 = vweird.f32 %v1060
    %vm1067 = vweird.f32 %v1061
    %vm1068 = vmor %vm1066, %vm1067
    %v1069 = vsel %vm1068, %v1061, %v1065
    %v1070 = vand.u32 2147483647, %v1060
    %vm1071 = vcmp.eq.f32.partialorder %v1070, 8.507059e+37
    %v1072 = vand.u32 %v1060, 2147483648
    %v1073 = vor.u32 1.1754944e-38, %v1072
    %v1074 = vsel %vm1071, %v1073, %v1069
    %v1075 = vmul.f32 1.0, %v1074
    %1077 = vrot.lane.b32.xlu0 %v1006, 64
    %v1078 = vpop.permute.xlu0 %1077
    %v1080 = vmul.f32 %v1075, %v1078
    %1082 = vrot.lane.b32.xlu0 %v1080, 64
    %v1083 = vpop.permute.xlu0 %1082
    %v1085 = vadd.f32 %v1013, %v1083
    %v1086 = vtanh.pop %v1085
    %v1087 = vsub.f32 1.0, %v1075
    %1089 = vrot.lane.b32.xlu0 %v1086, 96
    %v1090 = vpop.permute.xlu0 %1089
    %v1092 = vmul.f32 %v1087, %v1090
    %1093 = vrot.lane.b32.xlu0 %v961, 32
    %v1094 = vpop.permute.xlu0 %1093
    %v1096 = vmul.f32 %v1075, %v1094
    %v1097 = vadd.f32 %v1092, %v1096
    %s1098 = sadd.s32 %s119, 4
    %v1099 = vstv %s1098
    %vm1100 = vcmp.gt.s32.totalorder %v118, %v1099
    %v1101 = vsel %vm1100, 1, 0
    %v1102 = vcvt.s32.f32 %v1101
    %s1103 = sadd.s32 %s121, 11
    %v1104 = vstv %s1103
    %vm1105 = vcmp.gt.s32.totalorder %v118, %v1104
    %v1106 = vsel %vm1105, 1, 0
    %v1107 = vcvt.s32.f32 %v1106
    %1109 = vset.pattern.permute.xlu0 0
    %1110 = vperm.xlu0 %1109, %v1102
    %v1111 = vpop.permute.xlu0 %1110
    %1114 = vst [vmem:[#allocation1] ss:$2 sm:$0xff] %v1055
    %v1115 = vld.sshfl [vmem:[#allocation1] sm:$0xff pattern:$0x75316420]
    %1116 = vrot.lane.b32.xlu0 %v1115, 96
    %v1117 = vpop.permute.xlu0 %1116
    %v1119 = vmul.f32 %v1111, %v1117
    %1121 = vset.pattern.permute.xlu0 0
    %1122 = vperm.xlu0 %1121, %v1107
    %v1123 = vpop.permute.xlu0 %1122
    %1126 = vst [vmem:[#allocation1] ss:$2 sm:$0xff] %v1097
    %v1127 = vld.sshfl [vmem:[#allocation1] sm:$0xff pattern:$0x75316420]
    %1128 = vrot.lane.b32.xlu0 %v1127, 96
    %v1129 = vpop.permute.xlu0 %1128
    %v1131 = vmul.f32 %v1123, %v1129
    %v1133 = vrot.slane %v1119, 1
    %v1134 = vrot.slane %v1119, 2
    %v1135 = vrot.slane %v1119, 3
    %1139 = vst.msk [vmem:[#allocation4 + $0x4] sm:$0x1] %vm306, %v1119
    %1140 = vst.msk [vmem:[#allocation4 + $0x14] sm:$0x1] %vm306, %v1133
    %1141 = vst.msk [vmem:[#allocation4 + $0x24] sm:$0x1] %vm306, %v1134
    %1142 = vst.msk [vmem:[#allocation4 + $0x34] sm:$0x1] %vm306, %v1135
    %v1144 = vrot.slane %v1131, 1
    %v1145 = vrot.slane %v1131, 2
    %v1146 = vrot.slane %v1131, 3
    %1150 = vst.msk [vmem:[#allocation5 + $0xb] sm:$0x1] %vm306, %v1131
    %1151 = vst.msk [vmem:[#allocation5 + $0x1b] sm:$0x1] %vm306, %v1144
    %1152 = vst.msk [vmem:[#allocation5 + $0x2b] sm:$0x1] %vm306, %v1145
    %1153 = vst.msk [vmem:[#allocation5 + $0x3b] sm:$0x1] %vm306, %v1146
    %v1154 = vsub.f32 1.0, %v1102
    %1156 = vset.pattern.permute.xlu0 0
    %1157 = vperm.xlu0 %1156, %v1154
    %v1158 = vpop.permute.xlu0 %1157
    %v1160 = vmul.f32 %v1158, %v953
    %v1161 = vadd.f32 %v1119, %v1160
    %v1162 = vsub.f32 1.0, %v1107
    %1164 = vset.pattern.permute.xlu0 0
    %1165 = vperm.xlu0 %1164, %v1162
    %v1166 = vpop.permute.xlu0 %1165
    %v1168 = vmul.f32 %v1166, %v961
    %v1169 = vadd.f32 %v1131, %v1168
    %v1171 = vsel %vm127, %v1161, 0
    %1173 = vmatpush.msra.mxu0 0.0
    %1174 = vmatpush.msra.mxu0 0.0
    %1175 = vmatpush.msra.mxu0 0.0
    %1176 = vmatpush.msra.mxu0 0.0
    %1177 = vmatpush.msra.mxu0 0.0
    %1178 = vmatpush.msra.mxu0 0.0
    %1179 = vmatpush.msra.mxu0 0.0
    %1180 = vmatpush.msra.mxu0 0.0
    %1181 = vmatpush.msra.mxu0 0.0
    %1182 = vmatpush.msra.mxu0 0.0
    %1183 = vmatpush.msra.mxu0 0.0
    %1184 = vmatpush.msra.mxu0 0.0
    %1185 = vmatpush.msra.mxu0 %v111
    %1186 = vmatpush.msra.mxu0 %v110
    %1187 = vmatpush.msra.mxu0 %v109
    %1188 = vmatpush.msra.mxu0 %v108
    %1189 = vmatmul.f32.gmra.mxu0 %v1171
    %v1190 = vpop.f32.mrf.mxu0
    %v1191 = vadd.f32 %v125, %v1190
    %1192 = vdwg.mxu0
    %v1194 = vsel %vm127, %v1169, 0
    %1196 = vmatpush.msra.mxu0 0.0
    %1197 = vmatpush.msra.mxu0 0.0
    %1198 = vmatpush.msra.mxu0 0.0
    %1199 = vmatpush.msra.mxu0 0.0
    %1200 = vmatpush.msra.mxu0 0.0
    %1201 = vmatpush.msra.mxu0 0.0
    %1202 = vmatpush.msra.mxu0 0.0
    %1203 = vmatpush.msra.mxu0 0.0
    %1204 = vmatpush.msra.mxu0 0.0
    %1205 = vmatpush.msra.mxu0 0.0
    %1206 = vmatpush.msra.mxu0 0.0
    %1207 = vmatpush.msra.mxu0 0.0
    %1208 = vmatpush.msra.mxu0 %v115
    %1209 = vmatpush.msra.mxu0 %v114
    %1210 = vmatpush.msra.mxu0 %v113
    %1211 = vmatpush.msra.mxu0 %v112
    %1212 = vmatmul.f32.gmra.mxu0 %v1194
    %v1213 = vpop.f32.mrf.mxu0
    %v1214 = vadd.f32 %v152, %v1213
    %1215 = vdwg.mxu0
    %s1216 = scalar_lea.vmem [#allocation6], 10
    %v1217 = vld [vmem:[%s1216] sm:$0x3]
    %v1218 = vunpack.c.l.bf16 %v1217
    %s1219 = scalar_lea.vmem [#allocation9], 20
    %v1220 = vld [vmem:[%s1219] sm:$0x3]
    %v1221 = vunpack.c.l.bf16 %v1220
    %v1222 = vadd.f32 %v1218, %v1191
    %v1223 = vxor.u32 %v1222, 2147483648
    %v1224 = vmul.f32 %v1223, 1.442695
    %v1225 = vpow.pop %v1224
    %v1226 = vadd.f32 %v1225, 1.0
    %v1227 = vrcp.pop %v1226
    %v1228 = vmul.f32 %v1226, %v1227
    %v1229 = vsub.f32 1.0, %v1228
    %v1230 = vmul.f32 %v1227, %v1229
    %v1231 = vadd.f32 %v1227, %v1230
    %vm1232 = vweird.f32 %v1226
    %vm1233 = vweird.f32 %v1227
    %vm1234 = vmor %vm1232, %vm1233
    %v1235 = vsel %vm1234, %v1227, %v1231
    %v1236 = vand.u32 2147483647, %v1226
    %vm1237 = vcmp.eq.f32.partialorder %v1236, 8.507059e+37
    %v1238 = vand.u32 %v1226, 2147483648
    %v1239 = vor.u32 1.1754944e-38, %v1238
    %v1240 = vsel %vm1237, %v1239, %v1235
    %v1241 = vmul.f32 1.0, %v1240
    %1243 = vrot.lane.b32.xlu0 %v1191, 64
    %v1244 = vpop.permute.xlu0 %1243
    %v1246 = vmul.f32 %v1241, %v1244
    %1248 = vrot.lane.b32.xlu0 %v1246, 64
    %v1249 = vpop.permute.xlu0 %1248
    %v1251 = vadd.f32 %v1218, %v1249
    %v1252 = vtanh.pop %v1251
    %v1253 = vsub.f32 1.0, %v1241
    %1255 = vrot.lane.b32.xlu0 %v1252, 96
    %v1256 = vpop.permute.xlu0 %1255
    %v1258 = vmul.f32 %v1253, %v1256
    %1259 = vrot.lane.b32.xlu0 %v1161, 32
    %v1260 = vpop.permute.xlu0 %1259
    %v1262 = vmul.f32 %v1241, %v1260
    %v1263 = vadd.f32 %v1258, %v1262
    %v1264 = vadd.f32 %v1221, %v1214
    %v1265 = vxor.u32 %v1264, 2147483648
    %v1266 = vmul.f32 %v1265, 1.442695
    %v1267 = vpow.pop %v1266
    %v1268 = vadd.f32 %v1267, 1.0
    %v1269 = vrcp.pop %v1268
    %v1270 = vmul.f32 %v1268, %v1269
    %v1271 = vsub.f32 1.0, %v1270
    %v1272 = vmul.f32 %v1269, %v1271
    %v1273 = vadd.f32 %v1269, %v1272
    %vm1274 = vweird.f32 %v1268
    %vm1275 = vweird.f32 %v1269
    %vm1276 = vmor %vm1274, %vm1275
    %v1277 = vsel %vm1276, %v1269, %v1273
    %v1278 = vand.u32 2147483647, %v1268
    %vm1279 = vcmp.eq.f32.partialorder %v1278, 8.507059e+37
    %v1280 = vand.u32 %v1268, 2147483648
    %v1281 = vor.u32 1.1754944e-38, %v1280
    %v1282 = vsel %vm1279, %v1281, %v1277
    %v1283 = vmul.f32 1.0, %v1282
    %1285 = vrot.lane.b32.xlu0 %v1214, 64
    %v1286 = vpop.permute.xlu0 %1285
    %v1288 = vmul.f32 %v1283, %v1286
    %1290 = vrot.lane.b32.xlu0 %v1288, 64
    %v1291 = vpop.permute.xlu0 %1290
    %v1293 = vadd.f32 %v1221, %v1291
    %v1294 = vtanh.pop %v1293
    %v1295 = vsub.f32 1.0, %v1283
    %1297 = vrot.lane.b32.xlu0 %v1294, 96
    %v1298 = vpop.permute.xlu0 %1297
    %v1300 = vmul.f32 %v1295, %v1298
    %1301 = vrot.lane.b32.xlu0 %v1169, 32
    %v1302 = vpop.permute.xlu0 %1301
    %v1304 = vmul.f32 %v1283, %v1302
    %v1305 = vadd.f32 %v1300, %v1304
    %s1306 = sadd.s32 %s119, 5
    %v1307 = vstv %s1306
    %vm1308 = vcmp.gt.s32.totalorder %v118, %v1307
    %v1309 = vsel %vm1308, 1, 0
    %v1310 = vcvt.s32.f32 %v1309
    %s1311 = sadd.s32 %s121, 10
    %v1312 = vstv %s1311
    %vm1313 = vcmp.gt.s32.totalorder %v118, %v1312
    %v1314 = vsel %vm1313, 1, 0
    %v1315 = vcvt.s32.f32 %v1314
    %1317 = vset.pattern.permute.xlu0 0
    %1318 = vperm.xlu0 %1317, %v1310
    %v1319 = vpop.permute.xlu0 %1318
    %1322 = vst [vmem:[#allocation1] ss:$2 sm:$0xff] %v1263
    %v1323 = vld.sshfl [vmem:[#allocation1] sm:$0xff pattern:$0x75316420]
    %1324 = vrot.lane.b32.xlu0 %v1323, 96
    %v1325 = vpop.permute.xlu0 %1324
    %v1327 = vmul.f32 %v1319, %v1325
    %1329 = vset.pattern.permute.xlu0 0
    %1330 = vperm.xlu0 %1329, %v1315
    %v1331 = vpop.permute.xlu0 %1330
    %1334 = vst [vmem:[#allocation1] ss:$2 sm:$0xff] %v1305
    %v1335 = vld.sshfl [vmem:[#allocation1] sm:$0xff pattern:$0x75316420]
    %1336 = vrot.lane.b32.xlu0 %v1335, 96
    %v1337 = vpop.permute.xlu0 %1336
    %v1339 = vmul.f32 %v1331, %v1337
    %v1341 = vrot.slane %v1327, 1
    %v1342 = vrot.slane %v1327, 2
    %v1343 = vrot.slane %v1327, 3
    %1347 = vst.msk [vmem:[#allocation4 + $0x5] sm:$0x1] %vm306, %v1327
    %1348 = vst.msk [vmem:[#allocation4 + $0x15] sm:$0x1] %vm306, %v1341
    %1349 = vst.msk [vmem:[#allocation4 + $0x25] sm:$0x1] %vm306, %v1342
    %1350 = vst.msk [vmem:[#allocation4 + $0x35] sm:$0x1] %vm306, %v1343
    %v1352 = vrot.slane %v1339, 1
    %v1353 = vrot.slane %v1339, 2
    %v1354 = vrot.slane %v1339, 3
    %1358 = vst.msk [vmem:[#allocation5 + $0xa] sm:$0x1] %vm306, %v1339
    %1359 = vst.msk [vmem:[#allocation5 + $0x1a] sm:$0x1] %vm306, %v1352
    %1360 = vst.msk [vmem:[#allocation5 + $0x2a] sm:$0x1] %vm306, %v1353
    %1361 = vst.msk [vmem:[#allocation5 + $0x3a] sm:$0x1] %vm306, %v1354
    %v1362 = vsub.f32 1.0, %v1310
    %1364 = vset.pattern.permute.xlu0 0
    %1365 = vperm.xlu0 %1364, %v1362
    %v1366 = vpop.permute.xlu0 %1365
    %v1368 = vmul.f32 %v1366, %v1161
    %v1369 = vadd.f32 %v1327, %v1368
    %v1370 = vsub.f32 1.0, %v1315
    %1372 = vset.pattern.permute.xlu0 0
    %1373 = vperm.xlu0 %1372, %v1370
    %v1374 = vpop.permute.xlu0 %1373
    %v1376 = vmul.f32 %v1374, %v1169
    %v1377 = vadd.f32 %v1339, %v1376
    %v1379 = vsel %vm127, %v1369, 0
    %1381 = vmatpush.msra.mxu0 0.0
    %1382 = vmatpush.msra.mxu0 0.0
    %1383 = vmatpush.msra.mxu0 0.0
    %1384 = vmatpush.msra.mxu0 0.0
    %1385 = vmatpush.msra.mxu0 0.0
    %1386 = vmatpush.msra.mxu0 0.0
    %1387 = vmatpush.msra.mxu0 0.0
    %1388 = vmatpush.msra.mxu0 0.0
    %1389 = vmatpush.msra.mxu0 0.0
    %1390 = vmatpush.msra.mxu0 0.0
    %1391 = vmatpush.msra.mxu0 0.0
    %1392 = vmatpush.msra.mxu0 0.0
    %1393 = vmatpush.msra.mxu0 %v111
    %1394 = vmatpush.msra.mxu0 %v110
    %1395 = vmatpush.msra.mxu0 %v109
    %1396 = vmatpush.msra.mxu0 %v108
    %1397 = vmatmul.f32.gmra.mxu0 %v1379
    %v1398 = vpop.f32.mrf.mxu0
    %v1399 = vadd.f32 %v125, %v1398
    %1400 = vdwg.mxu0
    %v1402 = vsel %vm127, %v1377, 0
    %1404 = vmatpush.msra.mxu0 0.0
    %1405 = vmatpush.msra.mxu0 0.0
    %1406 = vmatpush.msra.mxu0 0.0
    %1407 = vmatpush.msra.mxu0 0.0
    %1408 = vmatpush.msra.mxu0 0.0
    %1409 = vmatpush.msra.mxu0 0.0
    %1410 = vmatpush.msra.mxu0 0.0
    %1411 = vmatpush.msra.mxu0 0.0
    %1412 = vmatpush.msra.mxu0 0.0
    %1413 = vmatpush.msra.mxu0 0.0
    %1414 = vmatpush.msra.mxu0 0.0
    %1415 = vmatpush.msra.mxu0 0.0
    %1416 = vmatpush.msra.mxu0 %v115
    %1417 = vmatpush.msra.mxu0 %v114
    %1418 = vmatpush.msra.mxu0 %v113
    %1419 = vmatpush.msra.mxu0 %v112
    %1420 = vmatmul.f32.gmra.mxu0 %v1402
    %v1421 = vpop.f32.mrf.mxu0
    %v1422 = vadd.f32 %v152, %v1421
    %1423 = vdwg.mxu0
    %s1424 = scalar_lea.vmem [#allocation6], 12
    %v1425 = vld [vmem:[%s1424] sm:$0x3]
    %v1426 = vunpack.c.l.bf16 %v1425
    %s1427 = scalar_lea.vmem [#allocation9], 18
    %v1428 = vld [vmem:[%s1427] sm:$0x3]
    %v1429 = vunpack.c.l.bf16 %v1428
    %v1430 = vadd.f32 %v1426, %v1399
    %v1431 = vxor.u32 %v1430, 2147483648
    %v1432 = vmul.f32 %v1431, 1.442695
    %v1433 = vpow.pop %v1432
    %v1434 = vadd.f32 %v1433, 1.0
    %v1435 = vrcp.pop %v1434
    %v1436 = vmul.f32 %v1434, %v1435
    %v1437 = vsub.f32 1.0, %v1436
    %v1438 = vmul.f32 %v1435, %v1437
    %v1439 = vadd.f32 %v1435, %v1438
    %vm1440 = vweird.f32 %v1434
    %vm1441 = vweird.f32 %v1435
    %vm1442 = vmor %vm1440, %vm1441
    %v1443 = vsel %vm1442, %v1435, %v1439
    %v1444 = vand.u32 2147483647, %v1434
    %vm1445 = vcmp.eq.f32.partialorder %v1444, 8.507059e+37
    %v1446 = vand.u32 %v1434, 2147483648
    %v1447 = vor.u32 1.1754944e-38, %v1446
    %v1448 = vsel %vm1445, %v1447, %v1443
    %v1449 = vmul.f32 1.0, %v1448
    %1451 = vrot.lane.b32.xlu0 %v1399, 64
    %v1452 = vpop.permute.xlu0 %1451
    %v1454 = vmul.f32 %v1449, %v1452
    %1456 = vrot.lane.b32.xlu0 %v1454, 64
    %v1457 = vpop.permute.xlu0 %1456
    %v1459 = vadd.f32 %v1426, %v1457
    %v1460 = vtanh.pop %v1459
    %v1461 = vsub.f32 1.0, %v1449
    %1463 = vrot.lane.b32.xlu0 %v1460, 96
    %v1464 = vpop.permute.xlu0 %1463
    %v1466 = vmul.f32 %v1461, %v1464
    %1467 = vrot.lane.b32.xlu0 %v1369, 32
    %v1468 = vpop.permute.xlu0 %1467
    %v1470 = vmul.f32 %v1449, %v1468
    %v1471 = vadd.f32 %v1466, %v1470
    %v1472 = vadd.f32 %v1429, %v1422
    %v1473 = vxor.u32 %v1472, 2147483648
    %v1474 = vmul.f32 %v1473, 1.442695
    %v1475 = vpow.pop %v1474
    %v1476 = vadd.f32 %v1475, 1.0
    %v1477 = vrcp.pop %v1476
    %v1478 = vmul.f32 %v1476, %v1477
    %v1479 = vsub.f32 1.0, %v1478
    %v1480 = vmul.f32 %v1477, %v1479
    %v1481 = vadd.f32 %v1477, %v1480
    %vm1482 = vweird.f32 %v1476
    %vm1483 = vweird.f32 %v1477
    %vm1484 = vmor %vm1482, %vm1483
    %v1485 = vsel %vm1484, %v1477, %v1481
    %v1486 = vand.u32 2147483647, %v1476
    %vm1487 = vcmp.eq.f32.partialorder %v1486, 8.507059e+37
    %v1488 = vand.u32 %v1476, 2147483648
    %v1489 = vor.u32 1.1754944e-38, %v1488
    %v1490 = vsel %vm1487, %v1489, %v1485
    %v1491 = vmul.f32 1.0, %v1490
    %1493 = vrot.lane.b32.xlu0 %v1422, 64
    %v1494 = vpop.permute.xlu0 %1493
    %v1496 = vmul.f32 %v1491, %v1494
    %1498 = vrot.lane.b32.xlu0 %v1496, 64
    %v1499 = vpop.permute.xlu0 %1498
    %v1501 = vadd.f32 %v1429, %v1499
    %v1502 = vtanh.pop %v1501
    %v1503 = vsub.f32 1.0, %v1491
    %1505 = vrot.lane.b32.xlu0 %v1502, 96
    %v1506 = vpop.permute.xlu0 %1505
    %v1508 = vmul.f32 %v1503, %v1506
    %1509 = vrot.lane.b32.xlu0 %v1377, 32
    %v1510 = vpop.permute.xlu0 %1509
    %v1512 = vmul.f32 %v1491, %v1510
    %v1513 = vadd.f32 %v1508, %v1512
    %s1514 = sadd.s32 %s119, 6
    %v1515 = vstv %s1514
    %vm1516 = vcmp.gt.s32.totalorder %v118, %v1515
    %v1517 = vsel %vm1516, 1, 0
    %v1518 = vcvt.s32.f32 %v1517
    %s1519 = sadd.s32 %s121, 9
    %v1520 = vstv %s1519
    %vm1521 = vcmp.gt.s32.totalorder %v118, %v1520
    %v1522 = vsel %vm1521, 1, 0
    %v1523 = vcvt.s32.f32 %v1522
    %1525 = vset.pattern.permute.xlu0 0
    %1526 = vperm.xlu0 %1525, %v1518
    %v1527 = vpop.permute.xlu0 %1526
    %1530 = vst [vmem:[#allocation1] ss:$2 sm:$0xff] %v1471
    %v1531 = vld.sshfl [vmem:[#allocation1] sm:$0xff pattern:$0x75316420]
    %1532 = vrot.lane.b32.xlu0 %v1531, 96
    %v1533 = vpop.permute.xlu0 %1532
    %v1535 = vmul.f32 %v1527, %v1533
    %1537 = vset.pattern.permute.xlu0 0
    %1538 = vperm.xlu0 %1537, %v1523
    %v1539 = vpop.permute.xlu0 %1538
    %1542 = vst [vmem:[#allocation1] ss:$2 sm:$0xff] %v1513
    %v1543 = vld.sshfl [vmem:[#allocation1] sm:$0xff pattern:$0x75316420]
    %1544 = vrot.lane.b32.xlu0 %v1543, 96
    %v1545 = vpop.permute.xlu0 %1544
    %v1547 = vmul.f32 %v1539, %v1545
    %v1549 = vrot.slane %v1535, 1
    %v1550 = vrot.slane %v1535, 2
    %v1551 = vrot.slane %v1535, 3
    %1555 = vst.msk [vmem:[#allocation4 + $0x6] sm:$0x1] %vm306, %v1535
    %1556 = vst.msk [vmem:[#allocation4 + $0x16] sm:$0x1] %vm306, %v1549
    %1557 = vst.msk [vmem:[#allocation4 + $0x26] sm:$0x1] %vm306, %v1550
    %1558 = vst.msk [vmem:[#allocation4 + $0x36] sm:$0x1] %vm306, %v1551
    %v1560 = vrot.slane %v1547, 1
    %v1561 = vrot.slane %v1547, 2
    %v1562 = vrot.slane %v1547, 3
    %1566 = vst.msk [vmem:[#allocation5 + $0x9] sm:$0x1] %vm306, %v1547
    %1567 = vst.msk [vmem:[#allocation5 + $0x19] sm:$0x1] %vm306, %v1560
    %1568 = vst.msk [vmem:[#allocation5 + $0x29] sm:$0x1] %vm306, %v1561
    %1569 = vst.msk [vmem:[#allocation5 + $0x39] sm:$0x1] %vm306, %v1562
    %v1570 = vsub.f32 1.0, %v1518
    %1572 = vset.pattern.permute.xlu0 0
    %1573 = vperm.xlu0 %1572, %v1570
    %v1574 = vpop.permute.xlu0 %1573
    %v1576 = vmul.f32 %v1574, %v1369
    %v1577 = vadd.f32 %v1535, %v1576
    %v1578 = vsub.f32 1.0, %v1523
    %1580 = vset.pattern.permute.xlu0 0
    %1581 = vperm.xlu0 %1580, %v1578
    %v1582 = vpop.permute.xlu0 %1581
    %v1584 = vmul.f32 %v1582, %v1377
    %v1585 = vadd.f32 %v1547, %v1584
    %v1587 = vsel %vm127, %v1577, 0
    %1589 = vmatpush.msra.mxu0 0.0
    %1590 = vmatpush.msra.mxu0 0.0
    %1591 = vmatpush.msra.mxu0 0.0
    %1592 = vmatpush.msra.mxu0 0.0
    %1593 = vmatpush.msra.mxu0 0.0
    %1594 = vmatpush.msra.mxu0 0.0
    %1595 = vmatpush.msra.mxu0 0.0
    %1596 = vmatpush.msra.mxu0 0.0
    %1597 = vmatpush.msra.mxu0 0.0
    %1598 = vmatpush.msra.mxu0 0.0
    %1599 = vmatpush.msra.mxu0 0.0
    %1600 = vmatpush.msra.mxu0 0.0
    %1601 = vmatpush.msra.mxu0 %v111
    %1602 = vmatpush.msra.mxu0 %v110
    %1603 = vmatpush.msra.mxu0 %v109
    %1604 = vmatpush.msra.mxu0 %v108
    %1605 = vmatmul.f32.gmra.mxu0 %v1587
    %v1606 = vpop.f32.mrf.mxu0
    %v1607 = vadd.f32 %v125, %v1606
    %1608 = vdwg.mxu0
    %v1610 = vsel %vm127, %v1585, 0
    %1612 = vmatpush.msra.mxu0 0.0
    %1613 = vmatpush.msra.mxu0 0.0
    %1614 = vmatpush.msra.mxu0 0.0
    %1615 = vmatpush.msra.mxu0 0.0
    %1616 = vmatpush.msra.mxu0 0.0
    %1617 = vmatpush.msra.mxu0 0.0
    %1618 = vmatpush.msra.mxu0 0.0
    %1619 = vmatpush.msra.mxu0 0.0
    %1620 = vmatpush.msra.mxu0 0.0
    %1621 = vmatpush.msra.mxu0 0.0
    %1622 = vmatpush.msra.mxu0 0.0
    %1623 = vmatpush.msra.mxu0 0.0
    %1624 = vmatpush.msra.mxu0 %v115
    %1625 = vmatpush.msra.mxu0 %v114
    %1626 = vmatpush.msra.mxu0 %v113
    %1627 = vmatpush.msra.mxu0 %v112
    %1628 = vmatmul.f32.gmra.mxu0 %v1610
    %v1629 = vpop.f32.mrf.mxu0
    %v1630 = vadd.f32 %v152, %v1629
    %1631 = vdwg.mxu0
    %s1632 = scalar_lea.vmem [#allocation6], 14
    %v1633 = vld [vmem:[%s1632] sm:$0x3]
    %v1634 = vunpack.c.l.bf16 %v1633
    %s1635 = scalar_lea.vmem [#allocation9], 16
    %v1636 = vld [vmem:[%s1635] sm:$0x3]
    %v1637 = vunpack.c.l.bf16 %v1636
    %v1638 = vadd.f32 %v1634, %v1607
    %v1639 = vxor.u32 %v1638, 2147483648
    %v1640 = vmul.f32 %v1639, 1.442695
    %v1641 = vpow.pop %v1640
    %v1642 = vadd.f32 %v1641, 1.0
    %v1643 = vrcp.pop %v1642
    %v1644 = vmul.f32 %v1642, %v1643
    %v1645 = vsub.f32 1.0, %v1644
    %v1646 = vmul.f32 %v1643, %v1645
    %v1647 = vadd.f32 %v1643, %v1646
    %vm1648 = vweird.f32 %v1642
    %vm1649 = vweird.f32 %v1643
    %vm1650 = vmor %vm1648, %vm1649
    %v1651 = vsel %vm1650, %v1643, %v1647
    %v1652 = vand.u32 2147483647, %v1642
    %vm1653 = vcmp.eq.f32.partialorder %v1652, 8.507059e+37
    %v1654 = vand.u32 %v1642, 2147483648
    %v1655 = vor.u32 1.1754944e-38, %v1654
    %v1656 = vsel %vm1653, %v1655, %v1651
    %v1657 = vmul.f32 1.0, %v1656
    %1659 = vrot.lane.b32.xlu0 %v1607, 64
    %v1660 = vpop.permute.xlu0 %1659
    %v1662 = vmul.f32 %v1657, %v1660
    %1664 = vrot.lane.b32.xlu0 %v1662, 64
    %v1665 = vpop.permute.xlu0 %1664
    %v1667 = vadd.f32 %v1634, %v1665
    %v1668 = vtanh.pop %v1667
    %v1669 = vsub.f32 1.0, %v1657
    %1671 = vrot.lane.b32.xlu0 %v1668, 96
    %v1672 = vpop.permute.xlu0 %1671
    %v1674 = vmul.f32 %v1669, %v1672
    %1675 = vrot.lane.b32.xlu0 %v1577, 32
    %v1676 = vpop.permute.xlu0 %1675
    %v1678 = vmul.f32 %v1657, %v1676
    %v1679 = vadd.f32 %v1674, %v1678
    %v1680 = vadd.f32 %v1637, %v1630
    %v1681 = vxor.u32 %v1680, 2147483648
    %v1682 = vmul.f32 %v1681, 1.442695
    %v1683 = vpow.pop %v1682
    %v1684 = vadd.f32 %v1683, 1.0
    %v1685 = vrcp.pop %v1684
    %v1686 = vmul.f32 %v1684, %v1685
    %v1687 = vsub.f32 1.0, %v1686
    %v1688 = vmul.f32 %v1685, %v1687
    %v1689 = vadd.f32 %v1685, %v1688
    %vm1690 = vweird.f32 %v1684
    %vm1691 = vweird.f32 %v1685
    %vm1692 = vmor %vm1690, %vm1691
    %v1693 = vsel %vm1692, %v1685, %v1689
    %v1694 = vand.u32 2147483647, %v1684
    %vm1695 = vcmp.eq.f32.partialorder %v1694, 8.507059e+37
    %v1696 = vand.u32 %v1684, 2147483648
    %v1697 = vor.u32 1.1754944e-38, %v1696
    %v1698 = vsel %vm1695, %v1697, %v1693
    %v1699 = vmul.f32 1.0, %v1698
    %1701 = vrot.lane.b32.xlu0 %v1630, 64
    %v1702 = vpop.permute.xlu0 %1701
    %v1704 = vmul.f32 %v1699, %v1702
    %1706 = vrot.lane.b32.xlu0 %v1704, 64
    %v1707 = vpop.permute.xlu0 %1706
    %v1709 = vadd.f32 %v1637, %v1707
    %v1710 = vtanh.pop %v1709
    %v1711 = vsub.f32 1.0, %v1699
    %1713 = vrot.lane.b32.xlu0 %v1710, 96
    %v1714 = vpop.permute.xlu0 %1713
    %v1716 = vmul.f32 %v1711, %v1714
    %1717 = vrot.lane.b32.xlu0 %v1585, 32
    %v1718 = vpop.permute.xlu0 %1717
    %v1720 = vmul.f32 %v1699, %v1718
    %v1721 = vadd.f32 %v1716, %v1720
    %s1722 = sadd.s32 %s119, 7
    %v1723 = vstv %s1722
    %vm1724 = vcmp.gt.s32.totalorder %v118, %v1723
    %v1725 = vsel %vm1724, 1, 0
    %v1726 = vcvt.s32.f32 %v1725
    %s1727 = sadd.s32 %s121, 8
    %v1728 = vstv %s1727
    %vm1729 = vcmp.gt.s32.totalorder %v118, %v1728
    %v1730 = vsel %vm1729, 1, 0
    %v1731 = vcvt.s32.f32 %v1730
    %1733 = vset.pattern.permute.xlu0 0
    %1734 = vperm.xlu0 %1733, %v1726
    %v1735 = vpop.permute.xlu0 %1734
    %1738 = vst [vmem:[#allocation1] ss:$2 sm:$0xff] %v1679
    %v1739 = vld.sshfl [vmem:[#allocation1] sm:$0xff pattern:$0x75316420]
    %1740 = vrot.lane.b32.xlu0 %v1739, 96
    %v1741 = vpop.permute.xlu0 %1740
    %v1743 = vmul.f32 %v1735, %v1741
    %1745 = vset.pattern.permute.xlu0 0
    %1746 = vperm.xlu0 %1745, %v1731
    %v1747 = vpop.permute.xlu0 %1746
    %1750 = vst [vmem:[#allocation1] ss:$2 sm:$0xff] %v1721
    %v1751 = vld.sshfl [vmem:[#allocation1] sm:$0xff pattern:$0x75316420]
    %1752 = vrot.lane.b32.xlu0 %v1751, 96
    %v1753 = vpop.permute.xlu0 %1752
    %v1755 = vmul.f32 %v1747, %v1753
    %v1757 = vrot.slane %v1743, 1
    %v1758 = vrot.slane %v1743, 2
    %v1759 = vrot.slane %v1743, 3
    %1763 = vst.msk [vmem:[#allocation4 + $0x7] sm:$0x1] %vm306, %v1743
    %1764 = vst.msk [vmem:[#allocation4 + $0x17] sm:$0x1] %vm306, %v1757
    %1765 = vst.msk [vmem:[#allocation4 + $0x27] sm:$0x1] %vm306, %v1758
    %1766 = vst.msk [vmem:[#allocation4 + $0x37] sm:$0x1] %vm306, %v1759
    %v1768 = vrot.slane %v1755, 1
    %v1769 = vrot.slane %v1755, 2
    %v1770 = vrot.slane %v1755, 3
    %1774 = vst.msk [vmem:[#allocation5 + $0x8] sm:$0x1] %vm306, %v1755
    %1775 = vst.msk [vmem:[#allocation5 + $0x18] sm:$0x1] %vm306, %v1768
    %1776 = vst.msk [vmem:[#allocation5 + $0x28] sm:$0x1] %vm306, %v1769
    %1777 = vst.msk [vmem:[#allocation5 + $0x38] sm:$0x1] %vm306, %v1770
    %v1778 = vsub.f32 1.0, %v1726
    %1780 = vset.pattern.permute.xlu0 0
    %1781 = vperm.xlu0 %1780, %v1778
    %v1782 = vpop.permute.xlu0 %1781
    %v1784 = vmul.f32 %v1782, %v1577
    %v1785 = vadd.f32 %v1743, %v1784
    %v1786 = vsub.f32 1.0, %v1731
    %1788 = vset.pattern.permute.xlu0 0
    %1789 = vperm.xlu0 %1788, %v1786
    %v1790 = vpop.permute.xlu0 %1789
    %v1792 = vmul.f32 %v1790, %v1585
    %v1793 = vadd.f32 %v1755, %v1792
    %v1795 = vsel %vm127, %v1785, 0
    %1797 = vmatpush.msra.mxu0 0.0
    %1798 = vmatpush.msra.mxu0 0.0
    %1799 = vmatpush.msra.mxu0 0.0
    %1800 = vmatpush.msra.mxu0 0.0
    %1801 = vmatpush.msra.mxu0 0.0
    %1802 = vmatpush.msra.mxu0 0.0
    %1803 = vmatpush.msra.mxu0 0.0
    %1804 = vmatpush.msra.mxu0 0.0
    %1805 = vmatpush.msra.mxu0 0.0
    %1806 = vmatpush.msra.mxu0 0.0
    %1807 = vmatpush.msra.mxu0 0.0
    %1808 = vmatpush.msra.mxu0 0.0
    %1809 = vmatpush.msra.mxu0 %v111
    %1810 = vmatpush.msra.mxu0 %v110
    %1811 = vmatpush.msra.mxu0 %v109
    %1812 = vmatpush.msra.mxu0 %v108
    %1813 = vmatmul.f32.gmra.mxu0 %v1795
    %v1814 = vpop.f32.mrf.mxu0
    %v1815 = vadd.f32 %v125, %v1814
    %1816 = vdwg.mxu0
    %v1818 = vsel %vm127, %v1793, 0
    %1820 = vmatpush.msra.mxu0 0.0
    %1821 = vmatpush.msra.mxu0 0.0
    %1822 = vmatpush.msra.mxu0 0.0
    %1823 = vmatpush.msra.mxu0 0.0
    %1824 = vmatpush.msra.mxu0 0.0
    %1825 = vmatpush.msra.mxu0 0.0
    %1826 = vmatpush.msra.mxu0 0.0
    %1827 = vmatpush.msra.mxu0 0.0
    %1828 = vmatpush.msra.mxu0 0.0
    %1829 = vmatpush.msra.mxu0 0.0
    %1830 = vmatpush.msra.mxu0 0.0
    %1831 = vmatpush.msra.mxu0 0.0
    %1832 = vmatpush.msra.mxu0 %v115
    %1833 = vmatpush.msra.mxu0 %v114
    %1834 = vmatpush.msra.mxu0 %v113
    %1835 = vmatpush.msra.mxu0 %v112
    %1836 = vmatmul.f32.gmra.mxu0 %v1818
    %v1837 = vpop.f32.mrf.mxu0
    %v1838 = vadd.f32 %v152, %v1837
    %1839 = vdwg.mxu0
    %s1840 = scalar_lea.vmem [#allocation6], 16
    %v1841 = vld [vmem:[%s1840] sm:$0x3]
    %v1842 = vunpack.c.l.bf16 %v1841
    %s1843 = scalar_lea.vmem [#allocation9], 14
    %v1844 = vld [vmem:[%s1843] sm:$0x3]
    %v1845 = vunpack.c.l.bf16 %v1844
    %v1846 = vadd.f32 %v1842, %v1815
    %v1847 = vxor.u32 %v1846, 2147483648
    %v1848 = vmul.f32 %v1847, 1.442695
    %v1849 = vpow.pop %v1848
    %v1850 = vadd.f32 %v1849, 1.0
    %v1851 = vrcp.pop %v1850
    %v1852 = vmul.f32 %v1850, %v1851
    %v1853 = vsub.f32 1.0, %v1852
    %v1854 = vmul.f32 %v1851, %v1853
    %v1855 = vadd.f32 %v1851, %v1854
    %vm1856 = vweird.f32 %v1850
    %vm1857 = vweird.f32 %v1851
    %vm1858 = vmor %vm1856, %vm1857
    %v1859 = vsel %vm1858, %v1851, %v1855
    %v1860 = vand.u32 2147483647, %v1850
    %vm1861 = vcmp.eq.f32.partialorder %v1860, 8.507059e+37
    %v1862 = vand.u32 %v1850, 2147483648
    %v1863 = vor.u32 1.1754944e-38, %v1862
    %v1864 = vsel %vm1861, %v1863, %v1859
    %v1865 = vmul.f32 1.0, %v1864
    %1867 = vrot.lane.b32.xlu0 %v1815, 64
    %v1868 = vpop.permute.xlu0 %1867
    %v1870 = vmul.f32 %v1865, %v1868
    %1872 = vrot.lane.b32.xlu0 %v1870, 64
    %v1873 = vpop.permute.xlu0 %1872
    %v1875 = vadd.f32 %v1842, %v1873
    %v1876 = vtanh.pop %v1875
    %v1877 = vsub.f32 1.0, %v1865
    %1879 = vrot.lane.b32.xlu0 %v1876, 96
    %v1880 = vpop.permute.xlu0 %1879
    %v1882 = vmul.f32 %v1877, %v1880
    %1883 = vrot.lane.b32.xlu0 %v1785, 32
    %v1884 = vpop.permute.xlu0 %1883
    %v1886 = vmul.f32 %v1865, %v1884
    %v1887 = vadd.f32 %v1882, %v1886
    %v1888 = vadd.f32 %v1845, %v1838
    %v1889 = vxor.u32 %v1888, 2147483648
    %v1890 = vmul.f32 %v1889, 1.442695
    %v1891 = vpow.pop %v1890
    %v1892 = vadd.f32 %v1891, 1.0
    %v1893 = vrcp.pop %v1892
    %v1894 = vmul.f32 %v1892, %v1893
    %v1895 = vsub.f32 1.0, %v1894
    %v1896 = vmul.f32 %v1893, %v1895
    %v1897 = vadd.f32 %v1893, %v1896
    %vm1898 = vweird.f32 %v1892
    %vm1899 = vweird.f32 %v1893
    %vm1900 = vmor %vm1898, %vm1899
    %v1901 = vsel %vm1900, %v1893, %v1897
    %v1902 = vand.u32 2147483647, %v1892
    %vm1903 = vcmp.eq.f32.partialorder %v1902, 8.507059e+37
    %v1904 = vand.u32 %v1892, 2147483648
    %v1905 = vor.u32 1.1754944e-38, %v1904
    %v1906 = vsel %vm1903, %v1905, %v1901
    %v1907 = vmul.f32 1.0, %v1906
    %1909 = vrot.lane.b32.xlu0 %v1838, 64
    %v1910 = vpop.permute.xlu0 %1909
    %v1912 = vmul.f32 %v1907, %v1910
    %1914 = vrot.lane.b32.xlu0 %v1912, 64
    %v1915 = vpop.permute.xlu0 %1914
    %v1917 = vadd.f32 %v1845, %v1915
    %v1918 = vtanh.pop %v1917
    %v1919 = vsub.f32 1.0, %v1907
    %1921 = vrot.lane.b32.xlu0 %v1918, 96
    %v1922 = vpop.permute.xlu0 %1921
    %v1924 = vmul.f32 %v1919, %v1922
    %1925 = vrot.lane.b32.xlu0 %v1793, 32
    %v1926 = vpop.permute.xlu0 %1925
    %v1928 = vmul.f32 %v1907, %v1926
    %v1929 = vadd.f32 %v1924, %v1928
    %s1930 = sadd.s32 %s119, 8
    %v1931 = vstv %s1930
    %vm1932 = vcmp.gt.s32.totalorder %v118, %v1931
    %v1933 = vsel %vm1932, 1, 0
    %v1934 = vcvt.s32.f32 %v1933
    %s1935 = sadd.s32 %s121, 7
    %v1936 = vstv %s1935
    %vm1937 = vcmp.gt.s32.totalorder %v118, %v1936
    %v1938 = vsel %vm1937, 1, 0
    %v1939 = vcvt.s32.f32 %v1938
    %1941 = vset.pattern.permute.xlu0 0
    %1942 = vperm.xlu0 %1941, %v1934
    %v1943 = vpop.permute.xlu0 %1942
    %1946 = vst [vmem:[#allocation1] ss:$2 sm:$0xff] %v1887
    %v1947 = vld.sshfl [vmem:[#allocation1] sm:$0xff pattern:$0x75316420]
    %1948 = vrot.lane.b32.xlu0 %v1947, 96
    %v1949 = vpop.permute.xlu0 %1948
    %v1951 = vmul.f32 %v1943, %v1949
    %1953 = vset.pattern.permute.xlu0 0
    %1954 = vperm.xlu0 %1953, %v1939
    %v1955 = vpop.permute.xlu0 %1954
    %1958 = vst [vmem:[#allocation1] ss:$2 sm:$0xff] %v1929
    %v1959 = vld.sshfl [vmem:[#allocation1] sm:$0xff pattern:$0x75316420]
    %1960 = vrot.lane.b32.xlu0 %v1959, 96
    %v1961 = vpop.permute.xlu0 %1960
    %v1963 = vmul.f32 %v1955, %v1961
    %v1965 = vrot.slane %v1951, 1
    %v1966 = vrot.slane %v1951, 2
    %v1967 = vrot.slane %v1951, 3
    %1971 = vst.msk [vmem:[#allocation4 + $0x8] sm:$0x1] %vm306, %v1951
    %1972 = vst.msk [vmem:[#allocation4 + $0x18] sm:$0x1] %vm306, %v1965
    %1973 = vst.msk [vmem:[#allocation4 + $0x28] sm:$0x1] %vm306, %v1966
    %1974 = vst.msk [vmem:[#allocation4 + $0x38] sm:$0x1] %vm306, %v1967
    %v1976 = vrot.slane %v1963, 1
    %v1977 = vrot.slane %v1963, 2
    %v1978 = vrot.slane %v1963, 3
    %1982 = vst.msk [vmem:[#allocation5 + $0x7] sm:$0x1] %vm306, %v1963
    %1983 = vst.msk [vmem:[#allocation5 + $0x17] sm:$0x1] %vm306, %v1976
    %1984 = vst.msk [vmem:[#allocation5 + $0x27] sm:$0x1] %vm306, %v1977
    %1985 = vst.msk [vmem:[#allocation5 + $0x37] sm:$0x1] %vm306, %v1978
    %v1986 = vsub.f32 1.0, %v1934
    %1988 = vset.pattern.permute.xlu0 0
    %1989 = vperm.xlu0 %1988, %v1986
    %v1990 = vpop.permute.xlu0 %1989
    %v1992 = vmul.f32 %v1990, %v1785
    %v1993 = vadd.f32 %v1951, %v1992
    %v1994 = vsub.f32 1.0, %v1939
    %1996 = vset.pattern.permute.xlu0 0
    %1997 = vperm.xlu0 %1996, %v1994
    %v1998 = vpop.permute.xlu0 %1997
    %v2000 = vmul.f32 %v1998, %v1793
    %v2001 = vadd.f32 %v1963, %v2000
    %v2003 = vsel %vm127, %v1993, 0
    %2005 = vmatpush.msra.mxu0 0.0
    %2006 = vmatpush.msra.mxu0 0.0
    %2007 = vmatpush.msra.mxu0 0.0
    %2008 = vmatpush.msra.mxu0 0.0
    %2009 = vmatpush.msra.mxu0 0.0
    %2010 = vmatpush.msra.mxu0 0.0
    %2011 = vmatpush.msra.mxu0 0.0
    %2012 = vmatpush.msra.mxu0 0.0
    %2013 = vmatpush.msra.mxu0 0.0
    %2014 = vmatpush.msra.mxu0 0.0
    %2015 = vmatpush.msra.mxu0 0.0
    %2016 = vmatpush.msra.mxu0 0.0
    %2017 = vmatpush.msra.mxu0 %v111
    %2018 = vmatpush.msra.mxu0 %v110
    %2019 = vmatpush.msra.mxu0 %v109
    %2020 = vmatpush.msra.mxu0 %v108
    %2021 = vmatmul.f32.gmra.mxu0 %v2003
    %v2022 = vpop.f32.mrf.mxu0
    %v2023 = vadd.f32 %v125, %v2022
    %2024 = vdwg.mxu0
    %v2026 = vsel %vm127, %v2001, 0
    %2028 = vmatpush.msra.mxu0 0.0
    %2029 = vmatpush.msra.mxu0 0.0
    %2030 = vmatpush.msra.mxu0 0.0
    %2031 = vmatpush.msra.mxu0 0.0
    %2032 = vmatpush.msra.mxu0 0.0
    %2033 = vmatpush.msra.mxu0 0.0
    %2034 = vmatpush.msra.mxu0 0.0
    %2035 = vmatpush.msra.mxu0 0.0
    %2036 = vmatpush.msra.mxu0 0.0
    %2037 = vmatpush.msra.mxu0 0.0
    %2038 = vmatpush.msra.mxu0 0.0
    %2039 = vmatpush.msra.mxu0 0.0
    %2040 = vmatpush.msra.mxu0 %v115
    %2041 = vmatpush.msra.mxu0 %v114
    %2042 = vmatpush.msra.mxu0 %v113
    %2043 = vmatpush.msra.mxu0 %v112
    %2044 = vmatmul.f32.gmra.mxu0 %v2026
    %v2045 = vpop.f32.mrf.mxu0
    %v2046 = vadd.f32 %v152, %v2045
    %2047 = vdwg.mxu0
    %s2048 = scalar_lea.vmem [#allocation6], 18
    %v2049 = vld [vmem:[%s2048] sm:$0x3]
    %v2050 = vunpack.c.l.bf16 %v2049
    %s2051 = scalar_lea.vmem [#allocation9], 12
    %v2052 = vld [vmem:[%s2051] sm:$0x3]
    %v2053 = vunpack.c.l.bf16 %v2052
    %v2054 = vadd.f32 %v2050, %v2023
    %v2055 = vxor.u32 %v2054, 2147483648
    %v2056 = vmul.f32 %v2055, 1.442695
    %v2057 = vpow.pop %v2056
    %v2058 = vadd.f32 %v2057, 1.0
    %v2059 = vrcp.pop %v2058
    %v2060 = vmul.f32 %v2058, %v2059
    %v2061 = vsub.f32 1.0, %v2060
    %v2062 = vmul.f32 %v2059, %v2061
    %v2063 = vadd.f32 %v2059, %v2062
    %vm2064 = vweird.f32 %v2058
    %vm2065 = vweird.f32 %v2059
    %vm2066 = vmor %vm2064, %vm2065
    %v2067 = vsel %vm2066, %v2059, %v2063
    %v2068 = vand.u32 2147483647, %v2058
    %vm2069 = vcmp.eq.f32.partialorder %v2068, 8.507059e+37
    %v2070 = vand.u32 %v2058, 2147483648
    %v2071 = vor.u32 1.1754944e-38, %v2070
    %v2072 = vsel %vm2069, %v2071, %v2067
    %v2073 = vmul.f32 1.0, %v2072
    %2075 = vrot.lane.b32.xlu0 %v2023, 64
    %v2076 = vpop.permute.xlu0 %2075
    %v2078 = vmul.f32 %v2073, %v2076
    %2080 = vrot.lane.b32.xlu0 %v2078, 64
    %v2081 = vpop.permute.xlu0 %2080
    %v2083 = vadd.f32 %v2050, %v2081
    %v2084 = vtanh.pop %v2083
    %v2085 = vsub.f32 1.0, %v2073
    %2087 = vrot.lane.b32.xlu0 %v2084, 96
    %v2088 = vpop.permute.xlu0 %2087
    %v2090 = vmul.f32 %v2085, %v2088
    %2091 = vrot.lane.b32.xlu0 %v1993, 32
    %v2092 = vpop.permute.xlu0 %2091
    %v2094 = vmul.f32 %v2073, %v2092
    %v2095 = vadd.f32 %v2090, %v2094
    %v2096 = vadd.f32 %v2053, %v2046
    %v2097 = vxor.u32 %v2096, 2147483648
    %v2098 = vmul.f32 %v2097, 1.442695
    %v2099 = vpow.pop %v2098
    %v2100 = vadd.f32 %v2099, 1.0
    %v2101 = vrcp.pop %v2100
    %v2102 = vmul.f32 %v2100, %v2101
    %v2103 = vsub.f32 1.0, %v2102
    %v2104 = vmul.f32 %v2101, %v2103
    %v2105 = vadd.f32 %v2101, %v2104
    %vm2106 = vweird.f32 %v2100
    %vm2107 = vweird.f32 %v2101
    %vm2108 = vmor %vm2106, %vm2107
    %v2109 = vsel %vm2108, %v2101, %v2105
    %v2110 = vand.u32 2147483647, %v2100
    %vm2111 = vcmp.eq.f32.partialorder %v2110, 8.507059e+37
    %v2112 = vand.u32 %v2100, 2147483648
    %v2113 = vor.u32 1.1754944e-38, %v2112
    %v2114 = vsel %vm2111, %v2113, %v2109
    %v2115 = vmul.f32 1.0, %v2114
    %2117 = vrot.lane.b32.xlu0 %v2046, 64
    %v2118 = vpop.permute.xlu0 %2117
    %v2120 = vmul.f32 %v2115, %v2118
    %2122 = vrot.lane.b32.xlu0 %v2120, 64
    %v2123 = vpop.permute.xlu0 %2122
    %v2125 = vadd.f32 %v2053, %v2123
    %v2126 = vtanh.pop %v2125
    %v2127 = vsub.f32 1.0, %v2115
    %2129 = vrot.lane.b32.xlu0 %v2126, 96
    %v2130 = vpop.permute.xlu0 %2129
    %v2132 = vmul.f32 %v2127, %v2130
    %2133 = vrot.lane.b32.xlu0 %v2001, 32
    %v2134 = vpop.permute.xlu0 %2133
    %v2136 = vmul.f32 %v2115, %v2134
    %v2137 = vadd.f32 %v2132, %v2136
    %s2138 = sadd.s32 %s119, 9
    %v2139 = vstv %s2138
    %vm2140 = vcmp.gt.s32.totalorder %v118, %v2139
    %v2141 = vsel %vm2140, 1, 0
    %v2142 = vcvt.s32.f32 %v2141
    %s2143 = sadd.s32 %s121, 6
    %v2144 = vstv %s2143
    %vm2145 = vcmp.gt.s32.totalorder %v118, %v2144
    %v2146 = vsel %vm2145, 1, 0
    %v2147 = vcvt.s32.f32 %v2146
    %2149 = vset.pattern.permute.xlu0 0
    %2150 = vperm.xlu0 %2149, %v2142
    %v2151 = vpop.permute.xlu0 %2150
    %2154 = vst [vmem:[#allocation1] ss:$2 sm:$0xff] %v2095
    %v2155 = vld.sshfl [vmem:[#allocation1] sm:$0xff pattern:$0x75316420]
    %2156 = vrot.lane.b32.xlu0 %v2155, 96
    %v2157 = vpop.permute.xlu0 %2156
    %v2159 = vmul.f32 %v2151, %v2157
    %2161 = vset.pattern.permute.xlu0 0
    %2162 = vperm.xlu0 %2161, %v2147
    %v2163 = vpop.permute.xlu0 %2162
    %2166 = vst [vmem:[#allocation1] ss:$2 sm:$0xff] %v2137
    %v2167 = vld.sshfl [vmem:[#allocation1] sm:$0xff pattern:$0x75316420]
    %2168 = vrot.lane.b32.xlu0 %v2167, 96
    %v2169 = vpop.permute.xlu0 %2168
    %v2171 = vmul.f32 %v2163, %v2169
    %v2173 = vrot.slane %v2159, 1
    %v2174 = vrot.slane %v2159, 2
    %v2175 = vrot.slane %v2159, 3
    %2179 = vst.msk [vmem:[#allocation4 + $0x9] sm:$0x1] %vm306, %v2159
    %2180 = vst.msk [vmem:[#allocation4 + $0x19] sm:$0x1] %vm306, %v2173
    %2181 = vst.msk [vmem:[#allocation4 + $0x29] sm:$0x1] %vm306, %v2174
    %2182 = vst.msk [vmem:[#allocation4 + $0x39] sm:$0x1] %vm306, %v2175
    %v2184 = vrot.slane %v2171, 1
    %v2185 = vrot.slane %v2171, 2
    %v2186 = vrot.slane %v2171, 3
    %2190 = vst.msk [vmem:[#allocation5 + $0x6] sm:$0x1] %vm306, %v2171
    %2191 = vst.msk [vmem:[#allocation5 + $0x16] sm:$0x1] %vm306, %v2184
    %2192 = vst.msk [vmem:[#allocation5 + $0x26] sm:$0x1] %vm306, %v2185
    %2193 = vst.msk [vmem:[#allocation5 + $0x36] sm:$0x1] %vm306, %v2186
    %v2194 = vsub.f32 1.0, %v2142
    %2196 = vset.pattern.permute.xlu0 0
    %2197 = vperm.xlu0 %2196, %v2194
    %v2198 = vpop.permute.xlu0 %2197
    %v2200 = vmul.f32 %v2198, %v1993
    %v2201 = vadd.f32 %v2159, %v2200
    %v2202 = vsub.f32 1.0, %v2147
    %2204 = vset.pattern.permute.xlu0 0
    %2205 = vperm.xlu0 %2204, %v2202
    %v2206 = vpop.permute.xlu0 %2205
    %v2208 = vmul.f32 %v2206, %v2001
    %v2209 = vadd.f32 %v2171, %v2208
    %v2211 = vsel %vm127, %v2201, 0
    %2213 = vmatpush.msra.mxu0 0.0
    %2214 = vmatpush.msra.mxu0 0.0
    %2215 = vmatpush.msra.mxu0 0.0
    %2216 = vmatpush.msra.mxu0 0.0
    %2217 = vmatpush.msra.mxu0 0.0
    %2218 = vmatpush.msra.mxu0 0.0
    %2219 = vmatpush.msra.mxu0 0.0
    %2220 = vmatpush.msra.mxu0 0.0
    %2221 = vmatpush.msra.mxu0 0.0
    %2222 = vmatpush.msra.mxu0 0.0
    %2223 = vmatpush.msra.mxu0 0.0
    %2224 = vmatpush.msra.mxu0 0.0
    %2225 = vmatpush.msra.mxu0 %v111
    %2226 = vmatpush.msra.mxu0 %v110
    %2227 = vmatpush.msra.mxu0 %v109
    %2228 = vmatpush.msra.mxu0 %v108
    %2229 = vmatmul.f32.gmra.mxu0 %v2211
    %v2230 = vpop.f32.mrf.mxu0
    %v2231 = vadd.f32 %v125, %v2230
    %2232 = vdwg.mxu0
    %v2234 = vsel %vm127, %v2209, 0
    %2236 = vmatpush.msra.mxu0 0.0
    %2237 = vmatpush.msra.mxu0 0.0
    %2238 = vmatpush.msra.mxu0 0.0
    %2239 = vmatpush.msra.mxu0 0.0
    %2240 = vmatpush.msra.mxu0 0.0
    %2241 = vmatpush.msra.mxu0 0.0
    %2242 = vmatpush.msra.mxu0 0.0
    %2243 = vmatpush.msra.mxu0 0.0
    %2244 = vmatpush.msra.mxu0 0.0
    %2245 = vmatpush.msra.mxu0 0.0
    %2246 = vmatpush.msra.mxu0 0.0
    %2247 = vmatpush.msra.mxu0 0.0
    %2248 = vmatpush.msra.mxu0 %v115
    %2249 = vmatpush.msra.mxu0 %v114
    %2250 = vmatpush.msra.mxu0 %v113
    %2251 = vmatpush.msra.mxu0 %v112
    %2252 = vmatmul.f32.gmra.mxu0 %v2234
    %v2253 = vpop.f32.mrf.mxu0
    %v2254 = vadd.f32 %v152, %v2253
    %2255 = vdwg.mxu0
    %s2256 = scalar_lea.vmem [#allocation6], 20
    %v2257 = vld [vmem:[%s2256] sm:$0x3]
    %v2258 = vunpack.c.l.bf16 %v2257
    %s2259 = scalar_lea.vmem [#allocation9], 10
    %v2260 = vld [vmem:[%s2259] sm:$0x3]
    %v2261 = vunpack.c.l.bf16 %v2260
    %v2262 = vadd.f32 %v2258, %v2231
    %v2263 = vxor.u32 %v2262, 2147483648
    %v2264 = vmul.f32 %v2263, 1.442695
    %v2265 = vpow.pop %v2264
    %v2266 = vadd.f32 %v2265, 1.0
    %v2267 = vrcp.pop %v2266
    %v2268 = vmul.f32 %v2266, %v2267
    %v2269 = vsub.f32 1.0, %v2268
    %v2270 = vmul.f32 %v2267, %v2269
    %v2271 = vadd.f32 %v2267, %v2270
    %vm2272 = vweird.f32 %v2266
    %vm2273 = vweird.f32 %v2267
    %vm2274 = vmor %vm2272, %vm2273
    %v2275 = vsel %vm2274, %v2267, %v2271
    %v2276 = vand.u32 2147483647, %v2266
    %vm2277 = vcmp.eq.f32.partialorder %v2276, 8.507059e+37
    %v2278 = vand.u32 %v2266, 2147483648
    %v2279 = vor.u32 1.1754944e-38, %v2278
    %v2280 = vsel %vm2277, %v2279, %v2275
    %v2281 = vmul.f32 1.0, %v2280
    %2283 = vrot.lane.b32.xlu0 %v2231, 64
    %v2284 = vpop.permute.xlu0 %2283
    %v2286 = vmul.f32 %v2281, %v2284
    %2288 = vrot.lane.b32.xlu0 %v2286, 64
    %v2289 = vpop.permute.xlu0 %2288
    %v2291 = vadd.f32 %v2258, %v2289
    %v2292 = vtanh.pop %v2291
    %v2293 = vsub.f32 1.0, %v2281
    %2295 = vrot.lane.b32.xlu0 %v2292, 96
    %v2296 = vpop.permute.xlu0 %2295
    %v2298 = vmul.f32 %v2293, %v2296
    %2299 = vrot.lane.b32.xlu0 %v2201, 32
    %v2300 = vpop.permute.xlu0 %2299
    %v2302 = vmul.f32 %v2281, %v2300
    %v2303 = vadd.f32 %v2298, %v2302
    %v2304 = vadd.f32 %v2261, %v2254
    %v2305 = vxor.u32 %v2304, 2147483648
    %v2306 = vmul.f32 %v2305, 1.442695
    %v2307 = vpow.pop %v2306
    %v2308 = vadd.f32 %v2307, 1.0
    %v2309 = vrcp.pop %v2308
    %v2310 = vmul.f32 %v2308, %v2309
    %v2311 = vsub.f32 1.0, %v2310
    %v2312 = vmul.f32 %v2309, %v2311
    %v2313 = vadd.f32 %v2309, %v2312
    %vm2314 = vweird.f32 %v2308
    %vm2315 = vweird.f32 %v2309
    %vm2316 = vmor %vm2314, %vm2315
    %v2317 = vsel %vm2316, %v2309, %v2313
    %v2318 = vand.u32 2147483647, %v2308
    %vm2319 = vcmp.eq.f32.partialorder %v2318, 8.507059e+37
    %v2320 = vand.u32 %v2308, 2147483648
    %v2321 = vor.u32 1.1754944e-38, %v2320
    %v2322 = vsel %vm2319, %v2321, %v2317
    %v2323 = vmul.f32 1.0, %v2322
    %2325 = vrot.lane.b32.xlu0 %v2254, 64
    %v2326 = vpop.permute.xlu0 %2325
    %v2328 = vmul.f32 %v2323, %v2326
    %2330 = vrot.lane.b32.xlu0 %v2328, 64
    %v2331 = vpop.permute.xlu0 %2330
    %v2333 = vadd.f32 %v2261, %v2331
    %v2334 = vtanh.pop %v2333
    %v2335 = vsub.f32 1.0, %v2323
    %2337 = vrot.lane.b32.xlu0 %v2334, 96
    %v2338 = vpop.permute.xlu0 %2337
    %v2340 = vmul.f32 %v2335, %v2338
    %2341 = vrot.lane.b32.xlu0 %v2209, 32
    %v2342 = vpop.permute.xlu0 %2341
    %v2344 = vmul.f32 %v2323, %v2342
    %v2345 = vadd.f32 %v2340, %v2344
    %s2346 = sadd.s32 %s119, 10
    %v2347 = vstv %s2346
    %vm2348 = vcmp.gt.s32.totalorder %v118, %v2347
    %v2349 = vsel %vm2348, 1, 0
    %v2350 = vcvt.s32.f32 %v2349
    %s2351 = sadd.s32 %s121, 5
    %v2352 = vstv %s2351
    %vm2353 = vcmp.gt.s32.totalorder %v118, %v2352
    %v2354 = vsel %vm2353, 1, 0
    %v2355 = vcvt.s32.f32 %v2354
    %2357 = vset.pattern.permute.xlu0 0
    %2358 = vperm.xlu0 %2357, %v2350
    %v2359 = vpop.permute.xlu0 %2358
    %2362 = vst [vmem:[#allocation1] ss:$2 sm:$0xff] %v2303
    %v2363 = vld.sshfl [vmem:[#allocation1] sm:$0xff pattern:$0x75316420]
    %2364 = vrot.lane.b32.xlu0 %v2363, 96
    %v2365 = vpop.permute.xlu0 %2364
    %v2367 = vmul.f32 %v2359, %v2365
    %2369 = vset.pattern.permute.xlu0 0
    %2370 = vperm.xlu0 %2369, %v2355
    %v2371 = vpop.permute.xlu0 %2370
    %2374 = vst [vmem:[#allocation1] ss:$2 sm:$0xff] %v2345
    %v2375 = vld.sshfl [vmem:[#allocation1] sm:$0xff pattern:$0x75316420]
    %2376 = vrot.lane.b32.xlu0 %v2375, 96
    %v2377 = vpop.permute.xlu0 %2376
    %v2379 = vmul.f32 %v2371, %v2377
    %v2381 = vrot.slane %v2367, 1
    %v2382 = vrot.slane %v2367, 2
    %v2383 = vrot.slane %v2367, 3
    %2387 = vst.msk [vmem:[#allocation4 + $0xa] sm:$0x1] %vm306, %v2367
    %2388 = vst.msk [vmem:[#allocation4 + $0x1a] sm:$0x1] %vm306, %v2381
    %2389 = vst.msk [vmem:[#allocation4 + $0x2a] sm:$0x1] %vm306, %v2382
    %2390 = vst.msk [vmem:[#allocation4 + $0x3a] sm:$0x1] %vm306, %v2383
    %v2392 = vrot.slane %v2379, 1
    %v2393 = vrot.slane %v2379, 2
    %v2394 = vrot.slane %v2379, 3
    %2398 = vst.msk [vmem:[#allocation5 + $0x5] sm:$0x1] %vm306, %v2379
    %2399 = vst.msk [vmem:[#allocation5 + $0x15] sm:$0x1] %vm306, %v2392
    %2400 = vst.msk [vmem:[#allocation5 + $0x25] sm:$0x1] %vm306, %v2393
    %2401 = vst.msk [vmem:[#allocation5 + $0x35] sm:$0x1] %vm306, %v2394
    %v2402 = vsub.f32 1.0, %v2350
    %2404 = vset.pattern.permute.xlu0 0
    %2405 = vperm.xlu0 %2404, %v2402
    %v2406 = vpop.permute.xlu0 %2405
    %v2408 = vmul.f32 %v2406, %v2201
    %v2409 = vadd.f32 %v2367, %v2408
    %v2410 = vsub.f32 1.0, %v2355
    %2412 = vset.pattern.permute.xlu0 0
    %2413 = vperm.xlu0 %2412, %v2410
    %v2414 = vpop.permute.xlu0 %2413
    %v2416 = vmul.f32 %v2414, %v2209
    %v2417 = vadd.f32 %v2379, %v2416
    %v2419 = vsel %vm127, %v2409, 0
    %2421 = vmatpush.msra.mxu0 0.0
    %2422 = vmatpush.msra.mxu0 0.0
    %2423 = vmatpush.msra.mxu0 0.0
    %2424 = vmatpush.msra.mxu0 0.0
    %2425 = vmatpush.msra.mxu0 0.0
    %2426 = vmatpush.msra.mxu0 0.0
    %2427 = vmatpush.msra.mxu0 0.0
    %2428 = vmatpush.msra.mxu0 0.0
    %2429 = vmatpush.msra.mxu0 0.0
    %2430 = vmatpush.msra.mxu0 0.0
    %2431 = vmatpush.msra.mxu0 0.0
    %2432 = vmatpush.msra.mxu0 0.0
    %2433 = vmatpush.msra.mxu0 %v111
    %2434 = vmatpush.msra.mxu0 %v110
    %2435 = vmatpush.msra.mxu0 %v109
    %2436 = vmatpush.msra.mxu0 %v108
    %2437 = vmatmul.f32.gmra.mxu0 %v2419
    %v2438 = vpop.f32.mrf.mxu0
    %v2439 = vadd.f32 %v125, %v2438
    %2440 = vdwg.mxu0
    %v2442 = vsel %vm127, %v2417, 0
    %2444 = vmatpush.msra.mxu0 0.0
    %2445 = vmatpush.msra.mxu0 0.0
    %2446 = vmatpush.msra.mxu0 0.0
    %2447 = vmatpush.msra.mxu0 0.0
    %2448 = vmatpush.msra.mxu0 0.0
    %2449 = vmatpush.msra.mxu0 0.0
    %2450 = vmatpush.msra.mxu0 0.0
    %2451 = vmatpush.msra.mxu0 0.0
    %2452 = vmatpush.msra.mxu0 0.0
    %2453 = vmatpush.msra.mxu0 0.0
    %2454 = vmatpush.msra.mxu0 0.0
    %2455 = vmatpush.msra.mxu0 0.0
    %2456 = vmatpush.msra.mxu0 %v115
    %2457 = vmatpush.msra.mxu0 %v114
    %2458 = vmatpush.msra.mxu0 %v113
    %2459 = vmatpush.msra.mxu0 %v112
    %2460 = vmatmul.f32.gmra.mxu0 %v2442
    %v2461 = vpop.f32.mrf.mxu0
    %v2462 = vadd.f32 %v152, %v2461
    %2463 = vdwg.mxu0
    %s2464 = scalar_lea.vmem [#allocation6], 22
    %v2465 = vld [vmem:[%s2464] sm:$0x3]
    %v2466 = vunpack.c.l.bf16 %v2465
    %s2467 = scalar_lea.vmem [#allocation9], 8
    %v2468 = vld [vmem:[%s2467] sm:$0x3]
    %v2469 = vunpack.c.l.bf16 %v2468
    %v2470 = vadd.f32 %v2466, %v2439
    %v2471 = vxor.u32 %v2470, 2147483648
    %v2472 = vmul.f32 %v2471, 1.442695
    %v2473 = vpow.pop %v2472
    %v2474 = vadd.f32 %v2473, 1.0
    %v2475 = vrcp.pop %v2474
    %v2476 = vmul.f32 %v2474, %v2475
    %v2477 = vsub.f32 1.0, %v2476
    %v2478 = vmul.f32 %v2475, %v2477
    %v2479 = vadd.f32 %v2475, %v2478
    %vm2480 = vweird.f32 %v2474
    %vm2481 = vweird.f32 %v2475
    %vm2482 = vmor %vm2480, %vm2481
    %v2483 = vsel %vm2482, %v2475, %v2479
    %v2484 = vand.u32 2147483647, %v2474
    %vm2485 = vcmp.eq.f32.partialorder %v2484, 8.507059e+37
    %v2486 = vand.u32 %v2474, 2147483648
    %v2487 = vor.u32 1.1754944e-38, %v2486
    %v2488 = vsel %vm2485, %v2487, %v2483
    %v2489 = vmul.f32 1.0, %v2488
    %2491 = vrot.lane.b32.xlu0 %v2439, 64
    %v2492 = vpop.permute.xlu0 %2491
    %v2494 = vmul.f32 %v2489, %v2492
    %2496 = vrot.lane.b32.xlu0 %v2494, 64
    %v2497 = vpop.permute.xlu0 %2496
    %v2499 = vadd.f32 %v2466, %v2497
    %v2500 = vtanh.pop %v2499
    %v2501 = vsub.f32 1.0, %v2489
    %2503 = vrot.lane.b32.xlu0 %v2500, 96
    %v2504 = vpop.permute.xlu0 %2503
    %v2506 = vmul.f32 %v2501, %v2504
    %2507 = vrot.lane.b32.xlu0 %v2409, 32
    %v2508 = vpop.permute.xlu0 %2507
    %v2510 = vmul.f32 %v2489, %v2508
    %v2511 = vadd.f32 %v2506, %v2510
    %v2512 = vadd.f32 %v2469, %v2462
    %v2513 = vxor.u32 %v2512, 2147483648
    %v2514 = vmul.f32 %v2513, 1.442695
    %v2515 = vpow.pop %v2514
    %v2516 = vadd.f32 %v2515, 1.0
    %v2517 = vrcp.pop %v2516
    %v2518 = vmul.f32 %v2516, %v2517
    %v2519 = vsub.f32 1.0, %v2518
    %v2520 = vmul.f32 %v2517, %v2519
    %v2521 = vadd.f32 %v2517, %v2520
    %vm2522 = vweird.f32 %v2516
    %vm2523 = vweird.f32 %v2517
    %vm2524 = vmor %vm2522, %vm2523
    %v2525 = vsel %vm2524, %v2517, %v2521
    %v2526 = vand.u32 2147483647, %v2516
    %vm2527 = vcmp.eq.f32.partialorder %v2526, 8.507059e+37
    %v2528 = vand.u32 %v2516, 2147483648
    %v2529 = vor.u32 1.1754944e-38, %v2528
    %v2530 = vsel %vm2527, %v2529, %v2525
    %v2531 = vmul.f32 1.0, %v2530
    %2533 = vrot.lane.b32.xlu0 %v2462, 64
    %v2534 = vpop.permute.xlu0 %2533
    %v2536 = vmul.f32 %v2531, %v2534
    %2538 = vrot.lane.b32.xlu0 %v2536, 64
    %v2539 = vpop.permute.xlu0 %2538
    %v2541 = vadd.f32 %v2469, %v2539
    %v2542 = vtanh.pop %v2541
    %v2543 = vsub.f32 1.0, %v2531
    %2545 = vrot.lane.b32.xlu0 %v2542, 96
    %v2546 = vpop.permute.xlu0 %2545
    %v2548 = vmul.f32 %v2543, %v2546
    %2549 = vrot.lane.b32.xlu0 %v2417, 32
    %v2550 = vpop.permute.xlu0 %2549
    %v2552 = vmul.f32 %v2531, %v2550
    %v2553 = vadd.f32 %v2548, %v2552
    %s2554 = sadd.s32 %s119, 11
    %v2555 = vstv %s2554
    %vm2556 = vcmp.gt.s32.totalorder %v118, %v2555
    %v2557 = vsel %vm2556, 1, 0
    %v2558 = vcvt.s32.f32 %v2557
    %s2559 = sadd.s32 %s121, 4
    %v2560 = vstv %s2559
    %vm2561 = vcmp.gt.s32.totalorder %v118, %v2560
    %v2562 = vsel %vm2561, 1, 0
    %v2563 = vcvt.s32.f32 %v2562
    %2565 = vset.pattern.permute.xlu0 0
    %2566 = vperm.xlu0 %2565, %v2558
    %v2567 = vpop.permute.xlu0 %2566
    %2570 = vst [vmem:[#allocation1] ss:$2 sm:$0xff] %v2511
    %v2571 = vld.sshfl [vmem:[#allocation1] sm:$0xff pattern:$0x75316420]
    %2572 = vrot.lane.b32.xlu0 %v2571, 96
    %v2573 = vpop.permute.xlu0 %2572
    %v2575 = vmul.f32 %v2567, %v2573
    %2577 = vset.pattern.permute.xlu0 0
    %2578 = vperm.xlu0 %2577, %v2563
    %v2579 = vpop.permute.xlu0 %2578
    %2582 = vst [vmem:[#allocation1] ss:$2 sm:$0xff] %v2553
    %v2583 = vld.sshfl [vmem:[#allocation1] sm:$0xff pattern:$0x75316420]
    %2584 = vrot.lane.b32.xlu0 %v2583, 96
    %v2585 = vpop.permute.xlu0 %2584
    %v2587 = vmul.f32 %v2579, %v2585
    %v2589 = vrot.slane %v2575, 1
    %v2590 = vrot.slane %v2575, 2
    %v2591 = vrot.slane %v2575, 3
    %2595 = vst.msk [vmem:[#allocation4 + $0xb] sm:$0x1] %vm306, %v2575
    %2596 = vst.msk [vmem:[#allocation4 + $0x1b] sm:$0x1] %vm306, %v2589
    %2597 = vst.msk [vmem:[#allocation4 + $0x2b] sm:$0x1] %vm306, %v2590
    %2598 = vst.msk [vmem:[#allocation4 + $0x3b] sm:$0x1] %vm306, %v2591
    %v2600 = vrot.slane %v2587, 1
    %v2601 = vrot.slane %v2587, 2
    %v2602 = vrot.slane %v2587, 3
    %2606 = vst.msk [vmem:[#allocation5 + $0x4] sm:$0x1] %vm306, %v2587
    %2607 = vst.msk [vmem:[#allocation5 + $0x14] sm:$0x1] %vm306, %v2600
    %2608 = vst.msk [vmem:[#allocation5 + $0x24] sm:$0x1] %vm306, %v2601
    %2609 = vst.msk [vmem:[#allocation5 + $0x34] sm:$0x1] %vm306, %v2602
    %v2610 = vsub.f32 1.0, %v2558
    %2612 = vset.pattern.permute.xlu0 0
    %2613 = vperm.xlu0 %2612, %v2610
    %v2614 = vpop.permute.xlu0 %2613
    %v2616 = vmul.f32 %v2614, %v2409
    %v2617 = vadd.f32 %v2575, %v2616
    %v2618 = vsub.f32 1.0, %v2563
    %2620 = vset.pattern.permute.xlu0 0
    %2621 = vperm.xlu0 %2620, %v2618
    %v2622 = vpop.permute.xlu0 %2621
    %v2624 = vmul.f32 %v2622, %v2417
    %v2625 = vadd.f32 %v2587, %v2624
    %v2627 = vsel %vm127, %v2617, 0
    %2629 = vmatpush.msra.mxu0 0.0
    %2630 = vmatpush.msra.mxu0 0.0
    %2631 = vmatpush.msra.mxu0 0.0
    %2632 = vmatpush.msra.mxu0 0.0
    %2633 = vmatpush.msra.mxu0 0.0
    %2634 = vmatpush.msra.mxu0 0.0
    %2635 = vmatpush.msra.mxu0 0.0
    %2636 = vmatpush.msra.mxu0 0.0
    %2637 = vmatpush.msra.mxu0 0.0
    %2638 = vmatpush.msra.mxu0 0.0
    %2639 = vmatpush.msra.mxu0 0.0
    %2640 = vmatpush.msra.mxu0 0.0
    %2641 = vmatpush.msra.mxu0 %v111
    %2642 = vmatpush.msra.mxu0 %v110
    %2643 = vmatpush.msra.mxu0 %v109
    %2644 = vmatpush.msra.mxu0 %v108
    %2645 = vmatmul.f32.gmra.mxu0 %v2627
    %v2646 = vpop.f32.mrf.mxu0
    %v2647 = vadd.f32 %v125, %v2646
    %2648 = vdwg.mxu0
    %v2650 = vsel %vm127, %v2625, 0
    %2652 = vmatpush.msra.mxu0 0.0
    %2653 = vmatpush.msra.mxu0 0.0
    %2654 = vmatpush.msra.mxu0 0.0
    %2655 = vmatpush.msra.mxu0 0.0
    %2656 = vmatpush.msra.mxu0 0.0
    %2657 = vmatpush.msra.mxu0 0.0
    %2658 = vmatpush.msra.mxu0 0.0
    %2659 = vmatpush.msra.mxu0 0.0
    %2660 = vmatpush.msra.mxu0 0.0
    %2661 = vmatpush.msra.mxu0 0.0
    %2662 = vmatpush.msra.mxu0 0.0
    %2663 = vmatpush.msra.mxu0 0.0
    %2664 = vmatpush.msra.mxu0 %v115
    %2665 = vmatpush.msra.mxu0 %v114
    %2666 = vmatpush.msra.mxu0 %v113
    %2667 = vmatpush.msra.mxu0 %v112
    %2668 = vmatmul.f32.gmra.mxu0 %v2650
    %v2669 = vpop.f32.mrf.mxu0
    %v2670 = vadd.f32 %v152, %v2669
    %2671 = vdwg.mxu0
    %s2672 = scalar_lea.vmem [#allocation6], 24
    %v2673 = vld [vmem:[%s2672] sm:$0x3]
    %v2674 = vunpack.c.l.bf16 %v2673
    %s2675 = scalar_lea.vmem [#allocation9], 6
    %v2676 = vld [vmem:[%s2675] sm:$0x3]
    %v2677 = vunpack.c.l.bf16 %v2676
    %v2678 = vadd.f32 %v2674, %v2647
    %v2679 = vxor.u32 %v2678, 2147483648
    %v2680 = vmul.f32 %v2679, 1.442695
    %v2681 = vpow.pop %v2680
    %v2682 = vadd.f32 %v2681, 1.0
    %v2683 = vrcp.pop %v2682
    %v2684 = vmul.f32 %v2682, %v2683
    %v2685 = vsub.f32 1.0, %v2684
    %v2686 = vmul.f32 %v2683, %v2685
    %v2687 = vadd.f32 %v2683, %v2686
    %vm2688 = vweird.f32 %v2682
    %vm2689 = vweird.f32 %v2683
    %vm2690 = vmor %vm2688, %vm2689
    %v2691 = vsel %vm2690, %v2683, %v2687
    %v2692 = vand.u32 2147483647, %v2682
    %vm2693 = vcmp.eq.f32.partialorder %v2692, 8.507059e+37
    %v2694 = vand.u32 %v2682, 2147483648
    %v2695 = vor.u32 1.1754944e-38, %v2694
    %v2696 = vsel %vm2693, %v2695, %v2691
    %v2697 = vmul.f32 1.0, %v2696
    %2699 = vrot.lane.b32.xlu0 %v2647, 64
    %v2700 = vpop.permute.xlu0 %2699
    %v2702 = vmul.f32 %v2697, %v2700
    %2704 = vrot.lane.b32.xlu0 %v2702, 64
    %v2705 = vpop.permute.xlu0 %2704
    %v2707 = vadd.f32 %v2674, %v2705
    %v2708 = vtanh.pop %v2707
    %v2709 = vsub.f32 1.0, %v2697
    %2711 = vrot.lane.b32.xlu0 %v2708, 96
    %v2712 = vpop.permute.xlu0 %2711
    %v2714 = vmul.f32 %v2709, %v2712
    %2715 = vrot.lane.b32.xlu0 %v2617, 32
    %v2716 = vpop.permute.xlu0 %2715
    %v2718 = vmul.f32 %v2697, %v2716
    %v2719 = vadd.f32 %v2714, %v2718
    %v2720 = vadd.f32 %v2677, %v2670
    %v2721 = vxor.u32 %v2720, 2147483648
    %v2722 = vmul.f32 %v2721, 1.442695
    %v2723 = vpow.pop %v2722
    %v2724 = vadd.f32 %v2723, 1.0
    %v2725 = vrcp.pop %v2724
    %v2726 = vmul.f32 %v2724, %v2725
    %v2727 = vsub.f32 1.0, %v2726
    %v2728 = vmul.f32 %v2725, %v2727
    %v2729 = vadd.f32 %v2725, %v2728
    %vm2730 = vweird.f32 %v2724
    %vm2731 = vweird.f32 %v2725
    %vm2732 = vmor %vm2730, %vm2731
    %v2733 = vsel %vm2732, %v2725, %v2729
    %v2734 = vand.u32 2147483647, %v2724
    %vm2735 = vcmp.eq.f32.partialorder %v2734, 8.507059e+37
    %v2736 = vand.u32 %v2724, 2147483648
    %v2737 = vor.u32 1.1754944e-38, %v2736
    %v2738 = vsel %vm2735, %v2737, %v2733
    %v2739 = vmul.f32 1.0, %v2738
    %2741 = vrot.lane.b32.xlu0 %v2670, 64
    %v2742 = vpop.permute.xlu0 %2741
    %v2744 = vmul.f32 %v2739, %v2742
    %2746 = vrot.lane.b32.xlu0 %v2744, 64
    %v2747 = vpop.permute.xlu0 %2746
    %v2749 = vadd.f32 %v2677, %v2747
    %v2750 = vtanh.pop %v2749
    %v2751 = vsub.f32 1.0, %v2739
    %2753 = vrot.lane.b32.xlu0 %v2750, 96
    %v2754 = vpop.permute.xlu0 %2753
    %v2756 = vmul.f32 %v2751, %v2754
    %2757 = vrot.lane.b32.xlu0 %v2625, 32
    %v2758 = vpop.permute.xlu0 %2757
    %v2760 = vmul.f32 %v2739, %v2758
    %v2761 = vadd.f32 %v2756, %v2760
    %s2762 = sadd.s32 %s119, 12
    %v2763 = vstv %s2762
    %vm2764 = vcmp.gt.s32.totalorder %v118, %v2763
    %v2765 = vsel %vm2764, 1, 0
    %v2766 = vcvt.s32.f32 %v2765
    %s2767 = sadd.s32 %s121, 3
    %v2768 = vstv %s2767
    %vm2769 = vcmp.gt.s32.totalorder %v118, %v2768
    %v2770 = vsel %vm2769, 1, 0
    %v2771 = vcvt.s32.f32 %v2770
    %2773 = vset.pattern.permute.xlu0 0
    %2774 = vperm.xlu0 %2773, %v2766
    %v2775 = vpop.permute.xlu0 %2774
    %2778 = vst [vmem:[#allocation1] ss:$2 sm:$0xff] %v2719
    %v2779 = vld.sshfl [vmem:[#allocation1] sm:$0xff pattern:$0x75316420]
    %2780 = vrot.lane.b32.xlu0 %v2779, 96
    %v2781 = vpop.permute.xlu0 %2780
    %v2783 = vmul.f32 %v2775, %v2781
    %2785 = vset.pattern.permute.xlu0 0
    %2786 = vperm.xlu0 %2785, %v2771
    %v2787 = vpop.permute.xlu0 %2786
    %2790 = vst [vmem:[#allocation1] ss:$2 sm:$0xff] %v2761
    %v2791 = vld.sshfl [vmem:[#allocation1] sm:$0xff pattern:$0x75316420]
    %2792 = vrot.lane.b32.xlu0 %v2791, 96
    %v2793 = vpop.permute.xlu0 %2792
    %v2795 = vmul.f32 %v2787, %v2793
    %v2797 = vrot.slane %v2783, 1
    %v2798 = vrot.slane %v2783, 2
    %v2799 = vrot.slane %v2783, 3
    %2803 = vst.msk [vmem:[#allocation4 + $0xc] sm:$0x1] %vm306, %v2783
    %2804 = vst.msk [vmem:[#allocation4 + $0x1c] sm:$0x1] %vm306, %v2797
    %2805 = vst.msk [vmem:[#allocation4 + $0x2c] sm:$0x1] %vm306, %v2798
    %2806 = vst.msk [vmem:[#allocation4 + $0x3c] sm:$0x1] %vm306, %v2799
    %v2808 = vrot.slane %v2795, 1
    %v2809 = vrot.slane %v2795, 2
    %v2810 = vrot.slane %v2795, 3
    %2814 = vst.msk [vmem:[#allocation5 + $0x3] sm:$0x1] %vm306, %v2795
    %2815 = vst.msk [vmem:[#allocation5 + $0x13] sm:$0x1] %vm306, %v2808
    %2816 = vst.msk [vmem:[#allocation5 + $0x23] sm:$0x1] %vm306, %v2809
    %2817 = vst.msk [vmem:[#allocation5 + $0x33] sm:$0x1] %vm306, %v2810
    %v2818 = vsub.f32 1.0, %v2766
    %2820 = vset.pattern.permute.xlu0 0
    %2821 = vperm.xlu0 %2820, %v2818
    %v2822 = vpop.permute.xlu0 %2821
    %v2824 = vmul.f32 %v2822, %v2617
    %v2825 = vadd.f32 %v2783, %v2824
    %v2826 = vsub.f32 1.0, %v2771
    %2828 = vset.pattern.permute.xlu0 0
    %2829 = vperm.xlu0 %2828, %v2826
    %v2830 = vpop.permute.xlu0 %2829
    %v2832 = vmul.f32 %v2830, %v2625
    %v2833 = vadd.f32 %v2795, %v2832
    %v2835 = vsel %vm127, %v2825, 0
    %2837 = vmatpush.msra.mxu0 0.0
    %2838 = vmatpush.msra.mxu0 0.0
    %2839 = vmatpush.msra.mxu0 0.0
    %2840 = vmatpush.msra.mxu0 0.0
    %2841 = vmatpush.msra.mxu0 0.0
    %2842 = vmatpush.msra.mxu0 0.0
    %2843 = vmatpush.msra.mxu0 0.0
    %2844 = vmatpush.msra.mxu0 0.0
    %2845 = vmatpush.msra.mxu0 0.0
    %2846 = vmatpush.msra.mxu0 0.0
    %2847 = vmatpush.msra.mxu0 0.0
    %2848 = vmatpush.msra.mxu0 0.0
    %2849 = vmatpush.msra.mxu0 %v111
    %2850 = vmatpush.msra.mxu0 %v110
    %2851 = vmatpush.msra.mxu0 %v109
    %2852 = vmatpush.msra.mxu0 %v108
    %2853 = vmatmul.f32.gmra.mxu0 %v2835
    %v2854 = vpop.f32.mrf.mxu0
    %v2855 = vadd.f32 %v125, %v2854
    %2856 = vdwg.mxu0
    %v2858 = vsel %vm127, %v2833, 0
    %2860 = vmatpush.msra.mxu0 0.0
    %2861 = vmatpush.msra.mxu0 0.0
    %2862 = vmatpush.msra.mxu0 0.0
    %2863 = vmatpush.msra.mxu0 0.0
    %2864 = vmatpush.msra.mxu0 0.0
    %2865 = vmatpush.msra.mxu0 0.0
    %2866 = vmatpush.msra.mxu0 0.0
    %2867 = vmatpush.msra.mxu0 0.0
    %2868 = vmatpush.msra.mxu0 0.0
    %2869 = vmatpush.msra.mxu0 0.0
    %2870 = vmatpush.msra.mxu0 0.0
    %2871 = vmatpush.msra.mxu0 0.0
    %2872 = vmatpush.msra.mxu0 %v115
    %2873 = vmatpush.msra.mxu0 %v114
    %2874 = vmatpush.msra.mxu0 %v113
    %2875 = vmatpush.msra.mxu0 %v112
    %2876 = vmatmul.f32.gmra.mxu0 %v2858
    %v2877 = vpop.f32.mrf.mxu0
    %v2878 = vadd.f32 %v152, %v2877
    %2879 = vdwg.mxu0
    %s2880 = scalar_lea.vmem [#allocation6], 26
    %v2881 = vld [vmem:[%s2880] sm:$0x3]
    %v2882 = vunpack.c.l.bf16 %v2881
    %s2883 = scalar_lea.vmem [#allocation9], 4
    %v2884 = vld [vmem:[%s2883] sm:$0x3]
    %v2885 = vunpack.c.l.bf16 %v2884
    %v2886 = vadd.f32 %v2882, %v2855
    %v2887 = vxor.u32 %v2886, 2147483648
    %v2888 = vmul.f32 %v2887, 1.442695
    %v2889 = vpow.pop %v2888
    %v2890 = vadd.f32 %v2889, 1.0
    %v2891 = vrcp.pop %v2890
    %v2892 = vmul.f32 %v2890, %v2891
    %v2893 = vsub.f32 1.0, %v2892
    %v2894 = vmul.f32 %v2891, %v2893
    %v2895 = vadd.f32 %v2891, %v2894
    %vm2896 = vweird.f32 %v2890
    %vm2897 = vweird.f32 %v2891
    %vm2898 = vmor %vm2896, %vm2897
    %v2899 = vsel %vm2898, %v2891, %v2895
    %v2900 = vand.u32 2147483647, %v2890
    %vm2901 = vcmp.eq.f32.partialorder %v2900, 8.507059e+37
    %v2902 = vand.u32 %v2890, 2147483648
    %v2903 = vor.u32 1.1754944e-38, %v2902
    %v2904 = vsel %vm2901, %v2903, %v2899
    %v2905 = vmul.f32 1.0, %v2904
    %2907 = vrot.lane.b32.xlu0 %v2855, 64
    %v2908 = vpop.permute.xlu0 %2907
    %v2910 = vmul.f32 %v2905, %v2908
    %2912 = vrot.lane.b32.xlu0 %v2910, 64
    %v2913 = vpop.permute.xlu0 %2912
    %v2915 = vadd.f32 %v2882, %v2913
    %v2916 = vtanh.pop %v2915
    %v2917 = vsub.f32 1.0, %v2905
    %2919 = vrot.lane.b32.xlu0 %v2916, 96
    %v2920 = vpop.permute.xlu0 %2919
    %v2922 = vmul.f32 %v2917, %v2920
    %2923 = vrot.lane.b32.xlu0 %v2825, 32
    %v2924 = vpop.permute.xlu0 %2923
    %v2926 = vmul.f32 %v2905, %v2924
    %v2927 = vadd.f32 %v2922, %v2926
    %v2928 = vadd.f32 %v2885, %v2878
    %v2929 = vxor.u32 %v2928, 2147483648
    %v2930 = vmul.f32 %v2929, 1.442695
    %v2931 = vpow.pop %v2930
    %v2932 = vadd.f32 %v2931, 1.0
    %v2933 = vrcp.pop %v2932
    %v2934 = vmul.f32 %v2932, %v2933
    %v2935 = vsub.f32 1.0, %v2934
    %v2936 = vmul.f32 %v2933, %v2935
    %v2937 = vadd.f32 %v2933, %v2936
    %vm2938 = vweird.f32 %v2932
    %vm2939 = vweird.f32 %v2933
    %vm2940 = vmor %vm2938, %vm2939
    %v2941 = vsel %vm2940, %v2933, %v2937
    %v2942 = vand.u32 2147483647, %v2932
    %vm2943 = vcmp.eq.f32.partialorder %v2942, 8.507059e+37
    %v2944 = vand.u32 %v2932, 2147483648
    %v2945 = vor.u32 1.1754944e-38, %v2944
    %v2946 = vsel %vm2943, %v2945, %v2941
    %v2947 = vmul.f32 1.0, %v2946
    %2949 = vrot.lane.b32.xlu0 %v2878, 64
    %v2950 = vpop.permute.xlu0 %2949
    %v2952 = vmul.f32 %v2947, %v2950
    %2954 = vrot.lane.b32.xlu0 %v2952, 64
    %v2955 = vpop.permute.xlu0 %2954
    %v2957 = vadd.f32 %v2885, %v2955
    %v2958 = vtanh.pop %v2957
    %v2959 = vsub.f32 1.0, %v2947
    %2961 = vrot.lane.b32.xlu0 %v2958, 96
    %v2962 = vpop.permute.xlu0 %2961
    %v2964 = vmul.f32 %v2959, %v2962
    %2965 = vrot.lane.b32.xlu0 %v2833, 32
    %v2966 = vpop.permute.xlu0 %2965
    %v2968 = vmul.f32 %v2947, %v2966
    %v2969 = vadd.f32 %v2964, %v2968
    %s2970 = sadd.s32 %s119, 13
    %v2971 = vstv %s2970
    %vm2972 = vcmp.gt.s32.totalorder %v118, %v2971
    %v2973 = vsel %vm2972, 1, 0
    %v2974 = vcvt.s32.f32 %v2973
    %s2975 = sadd.s32 %s121, 2
    %v2976 = vstv %s2975
    %vm2977 = vcmp.gt.s32.totalorder %v118, %v2976
    %v2978 = vsel %vm2977, 1, 0
    %v2979 = vcvt.s32.f32 %v2978
    %2981 = vset.pattern.permute.xlu0 0
    %2982 = vperm.xlu0 %2981, %v2974
    %v2983 = vpop.permute.xlu0 %2982
    %2986 = vst [vmem:[#allocation1] ss:$2 sm:$0xff] %v2927
    %v2987 = vld.sshfl [vmem:[#allocation1] sm:$0xff pattern:$0x75316420]
    %2988 = vrot.lane.b32.xlu0 %v2987, 96
    %v2989 = vpop.permute.xlu0 %2988
    %v2991 = vmul.f32 %v2983, %v2989
    %2993 = vset.pattern.permute.xlu0 0
    %2994 = vperm.xlu0 %2993, %v2979
    %v2995 = vpop.permute.xlu0 %2994
    %2998 = vst [vmem:[#allocation1] ss:$2 sm:$0xff] %v2969
    %v2999 = vld.sshfl [vmem:[#allocation1] sm:$0xff pattern:$0x75316420]
    %3000 = vrot.lane.b32.xlu0 %v2999, 96
    %v3001 = vpop.permute.xlu0 %3000
    %v3003 = vmul.f32 %v2995, %v3001
    %v3005 = vrot.slane %v2991, 1
    %v3006 = vrot.slane %v2991, 2
    %v3007 = vrot.slane %v2991, 3
    %3011 = vst.msk [vmem:[#allocation4 + $0xd] sm:$0x1] %vm306, %v2991
    %3012 = vst.msk [vmem:[#allocation4 + $0x1d] sm:$0x1] %vm306, %v3005
    %3013 = vst.msk [vmem:[#allocation4 + $0x2d] sm:$0x1] %vm306, %v3006
    %3014 = vst.msk [vmem:[#allocation4 + $0x3d] sm:$0x1] %vm306, %v3007
    %v3016 = vrot.slane %v3003, 1
    %v3017 = vrot.slane %v3003, 2
    %v3018 = vrot.slane %v3003, 3
    %3022 = vst.msk [vmem:[#allocation5 + $0x2] sm:$0x1] %vm306, %v3003
    %3023 = vst.msk [vmem:[#allocation5 + $0x12] sm:$0x1] %vm306, %v3016
    %3024 = vst.msk [vmem:[#allocation5 + $0x22] sm:$0x1] %vm306, %v3017
    %3025 = vst.msk [vmem:[#allocation5 + $0x32] sm:$0x1] %vm306, %v3018
    %v3026 = vsub.f32 1.0, %v2974
    %3028 = vset.pattern.permute.xlu0 0
    %3029 = vperm.xlu0 %3028, %v3026
    %v3030 = vpop.permute.xlu0 %3029
    %v3032 = vmul.f32 %v3030, %v2825
    %v3033 = vadd.f32 %v2991, %v3032
    %v3034 = vsub.f32 1.0, %v2979
    %3036 = vset.pattern.permute.xlu0 0
    %3037 = vperm.xlu0 %3036, %v3034
    %v3038 = vpop.permute.xlu0 %3037
    %v3040 = vmul.f32 %v3038, %v2833
    %v3041 = vadd.f32 %v3003, %v3040
    %v3043 = vsel %vm127, %v3033, 0
    %3045 = vmatpush.msra.mxu0 0.0
    %3046 = vmatpush.msra.mxu0 0.0
    %3047 = vmatpush.msra.mxu0 0.0
    %3048 = vmatpush.msra.mxu0 0.0
    %3049 = vmatpush.msra.mxu0 0.0
    %3050 = vmatpush.msra.mxu0 0.0
    %3051 = vmatpush.msra.mxu0 0.0
    %3052 = vmatpush.msra.mxu0 0.0
    %3053 = vmatpush.msra.mxu0 0.0
    %3054 = vmatpush.msra.mxu0 0.0
    %3055 = vmatpush.msra.mxu0 0.0
    %3056 = vmatpush.msra.mxu0 0.0
    %3057 = vmatpush.msra.mxu0 %v111
    %3058 = vmatpush.msra.mxu0 %v110
    %3059 = vmatpush.msra.mxu0 %v109
    %3060 = vmatpush.msra.mxu0 %v108
    %3061 = vmatmul.f32.gmra.mxu0 %v3043
    %v3062 = vpop.f32.mrf.mxu0
    %v3063 = vadd.f32 %v125, %v3062
    %3064 = vdwg.mxu0
    %v3066 = vsel %vm127, %v3041, 0
    %3068 = vmatpush.msra.mxu0 0.0
    %3069 = vmatpush.msra.mxu0 0.0
    %3070 = vmatpush.msra.mxu0 0.0
    %3071 = vmatpush.msra.mxu0 0.0
    %3072 = vmatpush.msra.mxu0 0.0
    %3073 = vmatpush.msra.mxu0 0.0
    %3074 = vmatpush.msra.mxu0 0.0
    %3075 = vmatpush.msra.mxu0 0.0
    %3076 = vmatpush.msra.mxu0 0.0
    %3077 = vmatpush.msra.mxu0 0.0
    %3078 = vmatpush.msra.mxu0 0.0
    %3079 = vmatpush.msra.mxu0 0.0
    %3080 = vmatpush.msra.mxu0 %v115
    %3081 = vmatpush.msra.mxu0 %v114
    %3082 = vmatpush.msra.mxu0 %v113
    %3083 = vmatpush.msra.mxu0 %v112
    %3084 = vmatmul.f32.gmra.mxu0 %v3066
    %v3085 = vpop.f32.mrf.mxu0
    %v3086 = vadd.f32 %v152, %v3085
    %3087 = vdwg.mxu0
    %s3088 = scalar_lea.vmem [#allocation6], 28
    %v3089 = vld [vmem:[%s3088] sm:$0x3]
    %v3090 = vunpack.c.l.bf16 %v3089
    %s3091 = scalar_lea.vmem [#allocation9], 2
    %v3092 = vld [vmem:[%s3091] sm:$0x3]
    %v3093 = vunpack.c.l.bf16 %v3092
    %v3094 = vadd.f32 %v3090, %v3063
    %v3095 = vxor.u32 %v3094, 2147483648
    %v3096 = vmul.f32 %v3095, 1.442695
    %v3097 = vpow.pop %v3096
    %v3098 = vadd.f32 %v3097, 1.0
    %v3099 = vrcp.pop %v3098
    %v3100 = vmul.f32 %v3098, %v3099
    %v3101 = vsub.f32 1.0, %v3100
    %v3102 = vmul.f32 %v3099, %v3101
    %v3103 = vadd.f32 %v3099, %v3102
    %vm3104 = vweird.f32 %v3098
    %vm3105 = vweird.f32 %v3099
    %vm3106 = vmor %vm3104, %vm3105
    %v3107 = vsel %vm3106, %v3099, %v3103
    %v3108 = vand.u32 2147483647, %v3098
    %vm3109 = vcmp.eq.f32.partialorder %v3108, 8.507059e+37
    %v3110 = vand.u32 %v3098, 2147483648
    %v3111 = vor.u32 1.1754944e-38, %v3110
    %v3112 = vsel %vm3109, %v3111, %v3107
    %v3113 = vmul.f32 1.0, %v3112
    %3115 = vrot.lane.b32.xlu0 %v3063, 64
    %v3116 = vpop.permute.xlu0 %3115
    %v3118 = vmul.f32 %v3113, %v3116
    %3120 = vrot.lane.b32.xlu0 %v3118, 64
    %v3121 = vpop.permute.xlu0 %3120
    %v3123 = vadd.f32 %v3090, %v3121
    %v3124 = vtanh.pop %v3123
    %v3125 = vsub.f32 1.0, %v3113
    %3127 = vrot.lane.b32.xlu0 %v3124, 96
    %v3128 = vpop.permute.xlu0 %3127
    %v3130 = vmul.f32 %v3125, %v3128
    %3131 = vrot.lane.b32.xlu0 %v3033, 32
    %v3132 = vpop.permute.xlu0 %3131
    %v3134 = vmul.f32 %v3113, %v3132
    %v3135 = vadd.f32 %v3130, %v3134
    %v3136 = vadd.f32 %v3093, %v3086
    %v3137 = vxor.u32 %v3136, 2147483648
    %v3138 = vmul.f32 %v3137, 1.442695
    %v3139 = vpow.pop %v3138
    %v3140 = vadd.f32 %v3139, 1.0
    %v3141 = vrcp.pop %v3140
    %v3142 = vmul.f32 %v3140, %v3141
    %v3143 = vsub.f32 1.0, %v3142
    %v3144 = vmul.f32 %v3141, %v3143
    %v3145 = vadd.f32 %v3141, %v3144
    %vm3146 = vweird.f32 %v3140
    %vm3147 = vweird.f32 %v3141
    %vm3148 = vmor %vm3146, %vm3147
    %v3149 = vsel %vm3148, %v3141, %v3145
    %v3150 = vand.u32 2147483647, %v3140
    %vm3151 = vcmp.eq.f32.partialorder %v3150, 8.507059e+37
    %v3152 = vand.u32 %v3140, 2147483648
    %v3153 = vor.u32 1.1754944e-38, %v3152
    %v3154 = vsel %vm3151, %v3153, %v3149
    %v3155 = vmul.f32 1.0, %v3154
    %3157 = vrot.lane.b32.xlu0 %v3086, 64
    %v3158 = vpop.permute.xlu0 %3157
    %v3160 = vmul.f32 %v3155, %v3158
    %3162 = vrot.lane.b32.xlu0 %v3160, 64
    %v3163 = vpop.permute.xlu0 %3162
    %v3165 = vadd.f32 %v3093, %v3163
    %v3166 = vtanh.pop %v3165
    %v3167 = vsub.f32 1.0, %v3155
    %3169 = vrot.lane.b32.xlu0 %v3166, 96
    %v3170 = vpop.permute.xlu0 %3169
    %v3172 = vmul.f32 %v3167, %v3170
    %3173 = vrot.lane.b32.xlu0 %v3041, 32
    %v3174 = vpop.permute.xlu0 %3173
    %v3176 = vmul.f32 %v3155, %v3174
    %v3177 = vadd.f32 %v3172, %v3176
    %s3178 = sadd.s32 %s119, 14
    %v3179 = vstv %s3178
    %vm3180 = vcmp.gt.s32.totalorder %v118, %v3179
    %v3181 = vsel %vm3180, 1, 0
    %v3182 = vcvt.s32.f32 %v3181
    %s3183 = sadd.s32 %s121, 1
    %v3184 = vstv %s3183
    %vm3185 = vcmp.gt.s32.totalorder %v118, %v3184
    %v3186 = vsel %vm3185, 1, 0
    %v3187 = vcvt.s32.f32 %v3186
    %3189 = vset.pattern.permute.xlu0 0
    %3190 = vperm.xlu0 %3189, %v3182
    %v3191 = vpop.permute.xlu0 %3190
    %3194 = vst [vmem:[#allocation1] ss:$2 sm:$0xff] %v3135
    %v3195 = vld.sshfl [vmem:[#allocation1] sm:$0xff pattern:$0x75316420]
    %3196 = vrot.lane.b32.xlu0 %v3195, 96
    %v3197 = vpop.permute.xlu0 %3196
    %v3199 = vmul.f32 %v3191, %v3197
    %3201 = vset.pattern.permute.xlu0 0
    %3202 = vperm.xlu0 %3201, %v3187
    %v3203 = vpop.permute.xlu0 %3202
    %3206 = vst [vmem:[#allocation1] ss:$2 sm:$0xff] %v3177
    %v3207 = vld.sshfl [vmem:[#allocation1] sm:$0xff pattern:$0x75316420]
    %3208 = vrot.lane.b32.xlu0 %v3207, 96
    %v3209 = vpop.permute.xlu0 %3208
    %v3211 = vmul.f32 %v3203, %v3209
    %v3213 = vrot.slane %v3199, 1
    %v3214 = vrot.slane %v3199, 2
    %v3215 = vrot.slane %v3199, 3
    %3219 = vst.msk [vmem:[#allocation4 + $0xe] sm:$0x1] %vm306, %v3199
    %3220 = vst.msk [vmem:[#allocation4 + $0x1e] sm:$0x1] %vm306, %v3213
    %3221 = vst.msk [vmem:[#allocation4 + $0x2e] sm:$0x1] %vm306, %v3214
    %3222 = vst.msk [vmem:[#allocation4 + $0x3e] sm:$0x1] %vm306, %v3215
    %v3224 = vrot.slane %v3211, 1
    %v3225 = vrot.slane %v3211, 2
    %v3226 = vrot.slane %v3211, 3
    %3230 = vst.msk [vmem:[#allocation5 + $0x1] sm:$0x1] %vm306, %v3211
    %3231 = vst.msk [vmem:[#allocation5 + $0x11] sm:$0x1] %vm306, %v3224
    %3232 = vst.msk [vmem:[#allocation5 + $0x21] sm:$0x1] %vm306, %v3225
    %3233 = vst.msk [vmem:[#allocation5 + $0x31] sm:$0x1] %vm306, %v3226
    %v3234 = vsub.f32 1.0, %v3182
    %3236 = vset.pattern.permute.xlu0 0
    %3237 = vperm.xlu0 %3236, %v3234
    %v3238 = vpop.permute.xlu0 %3237
    %v3240 = vmul.f32 %v3238, %v3033
    %v3241 = vadd.f32 %v3199, %v3240
    %v3242 = vsub.f32 1.0, %v3187
    %3244 = vset.pattern.permute.xlu0 0
    %3245 = vperm.xlu0 %3244, %v3242
    %v3246 = vpop.permute.xlu0 %3245
    %v3248 = vmul.f32 %v3246, %v3041
    %v3249 = vadd.f32 %v3211, %v3248
    %v3251 = vsel %vm127, %v3241, 0
    %3253 = vmatpush.msra.mxu0 0.0
    %3254 = vmatpush.msra.mxu0 0.0
    %3255 = vmatpush.msra.mxu0 0.0
    %3256 = vmatpush.msra.mxu0 0.0
    %3257 = vmatpush.msra.mxu0 0.0
    %3258 = vmatpush.msra.mxu0 0.0
    %3259 = vmatpush.msra.mxu0 0.0
    %3260 = vmatpush.msra.mxu0 0.0
    %3261 = vmatpush.msra.mxu0 0.0
    %3262 = vmatpush.msra.mxu0 0.0
    %3263 = vmatpush.msra.mxu0 0.0
    %3264 = vmatpush.msra.mxu0 0.0
    %3265 = vmatpush.msra.mxu0 %v111
    %3266 = vmatpush.msra.mxu0 %v110
    %3267 = vmatpush.msra.mxu0 %v109
    %3268 = vmatpush.msra.mxu0 %v108
    %3269 = vmatmul.f32.gmra.mxu0 %v3251
    %v3270 = vpop.f32.mrf.mxu0
    %v3271 = vadd.f32 %v125, %v3270
    %3272 = vdwg.mxu0
    %v3274 = vsel %vm127, %v3249, 0
    %3276 = vmatpush.msra.mxu0 0.0
    %3277 = vmatpush.msra.mxu0 0.0
    %3278 = vmatpush.msra.mxu0 0.0
    %3279 = vmatpush.msra.mxu0 0.0
    %3280 = vmatpush.msra.mxu0 0.0
    %3281 = vmatpush.msra.mxu0 0.0
    %3282 = vmatpush.msra.mxu0 0.0
    %3283 = vmatpush.msra.mxu0 0.0
    %3284 = vmatpush.msra.mxu0 0.0
    %3285 = vmatpush.msra.mxu0 0.0
    %3286 = vmatpush.msra.mxu0 0.0
    %3287 = vmatpush.msra.mxu0 0.0
    %3288 = vmatpush.msra.mxu0 %v115
    %3289 = vmatpush.msra.mxu0 %v114
    %3290 = vmatpush.msra.mxu0 %v113
    %3291 = vmatpush.msra.mxu0 %v112
    %3292 = vmatmul.f32.gmra.mxu0 %v3274
    %v3293 = vpop.f32.mrf.mxu0
    %v3294 = vadd.f32 %v152, %v3293
    %3295 = vdwg.mxu0
    %s3296 = scalar_lea.vmem [#allocation6], 30
    %v3297 = vld [vmem:[%s3296] sm:$0x3]
    %v3298 = vunpack.c.l.bf16 %v3297
    %v3299 = vld [vmem:[#allocation9] sm:$0x3]
    %v3300 = vunpack.c.l.bf16 %v3299
    %v3301 = vadd.f32 %v3298, %v3271
    %v3302 = vxor.u32 %v3301, 2147483648
    %v3303 = vmul.f32 %v3302, 1.442695
    %v3304 = vpow.pop %v3303
    %v3305 = vadd.f32 %v3304, 1.0
    %v3306 = vrcp.pop %v3305
    %v3307 = vmul.f32 %v3305, %v3306
    %v3308 = vsub.f32 1.0, %v3307
    %v3309 = vmul.f32 %v3306, %v3308
    %v3310 = vadd.f32 %v3306, %v3309
    %vm3311 = vweird.f32 %v3305
    %vm3312 = vweird.f32 %v3306
    %vm3313 = vmor %vm3311, %vm3312
    %v3314 = vsel %vm3313, %v3306, %v3310
    %v3315 = vand.u32 2147483647, %v3305
    %vm3316 = vcmp.eq.f32.partialorder %v3315, 8.507059e+37
    %v3317 = vand.u32 %v3305, 2147483648
    %v3318 = vor.u32 1.1754944e-38, %v3317
    %v3319 = vsel %vm3316, %v3318, %v3314
    %v3320 = vmul.f32 1.0, %v3319
    %3322 = vrot.lane.b32.xlu0 %v3271, 64
    %v3323 = vpop.permute.xlu0 %3322
    %v3325 = vmul.f32 %v3320, %v3323
    %3327 = vrot.lane.b32.xlu0 %v3325, 64
    %v3328 = vpop.permute.xlu0 %3327
    %v3330 = vadd.f32 %v3298, %v3328
    %v3331 = vtanh.pop %v3330
    %v3332 = vsub.f32 1.0, %v3320
    %3334 = vrot.lane.b32.xlu0 %v3331, 96
    %v3335 = vpop.permute.xlu0 %3334
    %v3337 = vmul.f32 %v3332, %v3335
    %3338 = vrot.lane.b32.xlu0 %v3241, 32
    %v3339 = vpop.permute.xlu0 %3338
    %v3341 = vmul.f32 %v3320, %v3339
    %v3342 = vadd.f32 %v3337, %v3341
    %v3343 = vadd.f32 %v3300, %v3294
    %v3344 = vxor.u32 %v3343, 2147483648
    %v3345 = vmul.f32 %v3344, 1.442695
    %v3346 = vpow.pop %v3345
    %v3347 = vadd.f32 %v3346, 1.0
    %v3348 = vrcp.pop %v3347
    %v3349 = vmul.f32 %v3347, %v3348
    %v3350 = vsub.f32 1.0, %v3349
    %v3351 = vmul.f32 %v3348, %v3350
    %v3352 = vadd.f32 %v3348, %v3351
    %vm3353 = vweird.f32 %v3347
    %vm3354 = vweird.f32 %v3348
    %vm3355 = vmor %vm3353, %vm3354
    %v3356 = vsel %vm3355, %v3348, %v3352
    %v3357 = vand.u32 2147483647, %v3347
    %vm3358 = vcmp.eq.f32.partialorder %v3357, 8.507059e+37
    %v3359 = vand.u32 %v3347, 2147483648
    %v3360 = vor.u32 1.1754944e-38, %v3359
    %v3361 = vsel %vm3358, %v3360, %v3356
    %v3362 = vmul.f32 1.0, %v3361
    %3364 = vrot.lane.b32.xlu0 %v3294, 64
    %v3365 = vpop.permute.xlu0 %3364
    %v3367 = vmul.f32 %v3362, %v3365
    %3369 = vrot.lane.b32.xlu0 %v3367, 64
    %v3370 = vpop.permute.xlu0 %3369
    %v3372 = vadd.f32 %v3300, %v3370
    %v3373 = vtanh.pop %v3372
    %v3374 = vsub.f32 1.0, %v3362
    %3376 = vrot.lane.b32.xlu0 %v3373, 96
    %v3377 = vpop.permute.xlu0 %3376
    %v3379 = vmul.f32 %v3374, %v3377
    %3380 = vrot.lane.b32.xlu0 %v3249, 32
    %v3381 = vpop.permute.xlu0 %3380
    %v3383 = vmul.f32 %v3362, %v3381
    %v3384 = vadd.f32 %v3379, %v3383
    %s3385 = sadd.s32 %s119, 15
    %v3386 = vstv %s3385
    %vm3387 = vcmp.gt.s32.totalorder %v118, %v3386
    %v3388 = vsel %vm3387, 1, 0
    %v3389 = vcvt.s32.f32 %v3388
    %v3390 = vstv %s121
    %vm3391 = vcmp.gt.s32.totalorder %v118, %v3390
    %v3392 = vsel %vm3391, 1, 0
    %v3393 = vcvt.s32.f32 %v3392
    %3395 = vset.pattern.permute.xlu0 0
    %3396 = vperm.xlu0 %3395, %v3389
    %v3397 = vpop.permute.xlu0 %3396
    %3400 = vst [vmem:[#allocation1] ss:$2 sm:$0xff] %v3342
    %v3401 = vld.sshfl [vmem:[#allocation1] sm:$0xff pattern:$0x75316420]
    %3402 = vrot.lane.b32.xlu0 %v3401, 96
    %v3403 = vpop.permute.xlu0 %3402
    %v3405 = vmul.f32 %v3397, %v3403
    %3407 = vset.pattern.permute.xlu0 0
    %3408 = vperm.xlu0 %3407, %v3393
    %v3409 = vpop.permute.xlu0 %3408
    %3412 = vst [vmem:[#allocation1] ss:$2 sm:$0xff] %v3384
    %v3413 = vld.sshfl [vmem:[#allocation1] sm:$0xff pattern:$0x75316420]
    %3414 = vrot.lane.b32.xlu0 %v3413, 96
    %v3415 = vpop.permute.xlu0 %3414
    %v3417 = vmul.f32 %v3409, %v3415
    %v3419 = vrot.slane %v3405, 1
    %v3420 = vrot.slane %v3405, 2
    %v3421 = vrot.slane %v3405, 3
    %3425 = vst.msk [vmem:[#allocation4 + $0xf] sm:$0x1] %vm306, %v3405
    %3426 = vst.msk [vmem:[#allocation4 + $0x1f] sm:$0x1] %vm306, %v3419
    %3427 = vst.msk [vmem:[#allocation4 + $0x2f] sm:$0x1] %vm306, %v3420
    %3428 = vst.msk [vmem:[#allocation4 + $0x3f] sm:$0x1] %vm306, %v3421
    %v3430 = vrot.slane %v3417, 1
    %v3431 = vrot.slane %v3417, 2
    %v3432 = vrot.slane %v3417, 3
    %3436 = vst.msk [vmem:[#allocation5] sm:$0x1] %vm306, %v3417
    %3437 = vst.msk [vmem:[#allocation5 + $0x10] sm:$0x1] %vm306, %v3430
    %3438 = vst.msk [vmem:[#allocation5 + $0x20] sm:$0x1] %vm306, %v3431
    %3439 = vst.msk [vmem:[#allocation5 + $0x30] sm:$0x1] %vm306, %v3432
    %v3440 = vsub.f32 1.0, %v3389
    %3442 = vset.pattern.permute.xlu0 0
    %3443 = vperm.xlu0 %3442, %v3440
    %v3444 = vpop.permute.xlu0 %3443
    %v3446 = vmul.f32 %v3444, %v3241
    %v3447 = vadd.f32 %v3405, %v3446
    %v3448 = vsub.f32 1.0, %v3393
    %3450 = vset.pattern.permute.xlu0 0
    %3451 = vperm.xlu0 %3450, %v3448
    %v3452 = vpop.permute.xlu0 %3451
    %v3454 = vmul.f32 %v3452, %v3249
    %v3455 = vadd.f32 %v3417, %v3454
    %vm3456 = vcmask 257024
    %3457 = vst.msk [vmem:[#allocation2] sm:$0xf] %vm3456, %v3447
    %3458 = vst.msk [vmem:[#allocation3] sm:$0xf] %vm3456, %v3455
    %v3459 = vld [vmem:[#allocation4] sm:$0xff]
    %v3460 = vld [vmem:[#allocation4 + $0x8] sm:$0xff]
    %v3461 = vld [vmem:[#allocation4 + $0x10] sm:$0xff]
    %v3462 = vld [vmem:[#allocation4 + $0x18] sm:$0xff]
    %v3463 = vld [vmem:[#allocation4 + $0x20] sm:$0xff]
    %v3464 = vld [vmem:[#allocation4 + $0x28] sm:$0xff]
    %v3465 = vld [vmem:[#allocation4 + $0x30] sm:$0xff]
    %v3466 = vld [vmem:[#allocation4 + $0x38] sm:$0xff]
    %v3467 = vpack.c.bf16 %v3459, %v3459
    %v3468 = vpack.c.bf16 %v3460, %v3460
    %v3469 = vpack.c.bf16 %v3461, %v3461
    %v3470 = vpack.c.bf16 %v3462, %v3462
    %v3471 = vpack.c.bf16 %v3463, %v3463
    %v3472 = vpack.c.bf16 %v3464, %v3464
    %v3473 = vpack.c.bf16 %v3465, %v3465
    %v3474 = vpack.c.bf16 %v3466, %v3466
    %3475 = vst.msk [vmem:[#allocation14] sm:$0xf] %vm3456, %v3467
    %3476 = vst.msk [vmem:[#allocation14 + $0x4] sm:$0xf] %vm3456, %v3468
    %3477 = vst.msk [vmem:[#allocation14 + $0x8] sm:$0xf] %vm3456, %v3469
    %3478 = vst.msk [vmem:[#allocation14 + $0xc] sm:$0xf] %vm3456, %v3470
    %3479 = vst.msk [vmem:[#allocation14 + $0x10] sm:$0xf] %vm3456, %v3471
    %3480 = vst.msk [vmem:[#allocation14 + $0x14] sm:$0xf] %vm3456, %v3472
    %3481 = vst.msk [vmem:[#allocation14 + $0x18] sm:$0xf] %vm3456, %v3473
    %3482 = vst.msk [vmem:[#allocation14 + $0x1c] sm:$0xf] %vm3456, %v3474
    %v3483 = vld [vmem:[#allocation5] sm:$0xff]
    %v3484 = vld [vmem:[#allocation5 + $0x8] sm:$0xff]
    %v3485 = vld [vmem:[#allocation5 + $0x10] sm:$0xff]
    %v3486 = vld [vmem:[#allocation5 + $0x18] sm:$0xff]
    %v3487 = vld [vmem:[#allocation5 + $0x20] sm:$0xff]
    %v3488 = vld [vmem:[#allocation5 + $0x28] sm:$0xff]
    %v3489 = vld [vmem:[#allocation5 + $0x30] sm:$0xff]
    %v3490 = vld [vmem:[#allocation5 + $0x38] sm:$0xff]
    %v3491 = vpack.c.bf16 %v3483, %v3483
    %v3492 = vpack.c.bf16 %v3484, %v3484
    %v3493 = vpack.c.bf16 %v3485, %v3485
    %v3494 = vpack.c.bf16 %v3486, %v3486
    %v3495 = vpack.c.bf16 %v3487, %v3487
    %v3496 = vpack.c.bf16 %v3488, %v3488
    %v3497 = vpack.c.bf16 %v3489, %v3489
    %v3498 = vpack.c.bf16 %v3490, %v3490
    %3499 = vst.msk [vmem:[#allocation15] sm:$0xf] %vm3456, %v3491
    %3500 = vst.msk [vmem:[#allocation15 + $0x4] sm:$0xf] %vm3456, %v3492
    %3501 = vst.msk [vmem:[#allocation15 + $0x8] sm:$0xf] %vm3456, %v3493
    %3502 = vst.msk [vmem:[#allocation15 + $0xc] sm:$0xf] %vm3456, %v3494
    %3503 = vst.msk [vmem:[#allocation15 + $0x10] sm:$0xf] %vm3456, %v3495
    %3504 = vst.msk [vmem:[#allocation15 + $0x14] sm:$0xf] %vm3456, %v3496
    %3505 = vst.msk [vmem:[#allocation15 + $0x18] sm:$0xf] %vm3456, %v3497
    %3506 = vst.msk [vmem:[#allocation15 + $0x1c] sm:$0xf] %vm3456, %v3498
    // Predicated region
    $region50: #{tpu_custom_call.1} parent=1 // pred_check
      _
    $region51: #{tpu_custom_call.1} parent=1 // pred_check_branch
      %3508 = sbr.rel (0) target = $region53
    $region52: #{tpu_custom_call.1} parent=1 // pred_region
      %3510 = vsyncadd [#allocation8], 0
      %s3511 = sshll.u32 [#allocation14], 4
      %s3512 = int_to_ptr.vmem [resolvable:$true] %s3511
      %s3513 = sshll.u32 %s7, 4
      %s3514 = int_to_ptr.hbm [resolvable:$true] %s3513
      %3519 = dma.vmem_to_hbm [thread:$0]  %s3512, 512, %s3514, [#allocation8], 64, 64, 4
    $region53: #{tpu_custom_call.1} parent=1 // pred_fallthru
      _
    // Predicated region
    $region54: #{tpu_custom_call.1} parent=1 // pred_check
      _
    $region55: #{tpu_custom_call.1} parent=1 // pred_check_branch
      %3521 = sbr.rel (0) target = $region57
    $region56: #{tpu_custom_call.1} parent=1 // pred_region
      %s3522 = ssub.s32 0, 0
      %s3523 = smul.u32 2, %s3522
      %3525 = vsyncadd [#allocation16], 0
      %s3526 = smul.addr %s3523, 4
      %s3527 = scalar_lea.hbm %s8, %s3526
      %s3528 = sshll.u32 [#allocation15], 4
      %s3529 = int_to_ptr.vmem [resolvable:$true] %s3528
      %s3530 = sshll.u32 %s3527, 4
      %s3531 = int_to_ptr.hbm [resolvable:$true] %s3530
      %3536 = dma.vmem_to_hbm [thread:$0]  %s3529, 512, %s3531, [#allocation16], 64, 64, 4
    $region57: #{tpu_custom_call.1} parent=1 // pred_fallthru
      _
    // Predicated region
    $region58: #{tpu_custom_call.1} parent=1 // pred_check
      _
    $region59: #{tpu_custom_call.1} parent=1 // pred_check_branch
      %3538 = sbr.rel (0) target = $region61
    $region60: #{tpu_custom_call.1} parent=1 // pred_region
      %3540 = dma.done [#allocation8], 512
    $region61: #{tpu_custom_call.1} parent=1 // pred_fallthru
      _
    // Predicated region
    $region62: #{tpu_custom_call.1} parent=1 // pred_check
      _
    $region63: #{tpu_custom_call.1} parent=1 // pred_check_branch
      %3542 = sbr.rel (0) target = $region65
    $region64: #{tpu_custom_call.1} parent=1 // pred_region
      %3544 = dma.done [#allocation16], 512
    $region65: #{tpu_custom_call.1} parent=1 // pred_fallthru
      _
    %3545 = vsyncpa [#allocation7], 1
    %3546 = vsyncpa [#allocation10], 1
    %3547 = vsyncpa [#allocation13], 1
    %3548 = vsyncpa [#allocation8], 1
    %3549 = vsyncpa [#allocation16], 1

</llo_original>
